<compile_context>
chip_gen: v7x
topology: tpu7x:2x2x1
jax: 0.10.0
libtpu: 0.0.40
codegen_flags: <defaults>
</compile_context>

<pallas_src>
import functools

import jax
import jax.numpy as jnp
from jax import lax
from jax.experimental import pallas as pl
from jax.experimental.pallas import tpu as pltpu

# ----------------------------- model config ---------------------------------
B = 2                     # batch (matches hint = [[0], [1]])
C = 3                     # input channels
IMG = 16                  # spatial size (small stand-in for 224)
PATCH = 8                 # patch size -> 4 patches
NPAT = (IMG // PATCH) ** 2
S = NPAT + 1              # tokens (cls + patches)
D = 32                    # hidden size
NH = 4                    # attention heads
HD = D // NH              # head dim
MLP = 64                  # MLP intermediate size
LAYERS = 2                # encoder layers
NUM_HINT = 2
NUM_CATEGORY = 7
NUM_COLOR = 5
HEAD_N = NUM_CATEGORY + NUM_COLOR
HEAD_PAD = 128            # lane-dense padded classifier-head width
LN_EPS = 1e-12            # HF ViT default
ATTN_SCALE = 1.0 / float(HD) ** 0.5


# ----------------------------- in-kernel helpers -----------------------------
def _gelu(x):
    # exact (erf) GELU, same as torch.nn.GELU default / HF ViT "gelu"
    return 0.5 * x * (1.0 + lax.erf(x * 0.7071067811865476))


def _layernorm(x, g, b, eps=LN_EPS):
    mean = jnp.mean(x, axis=-1, keepdims=True)
    var = jnp.mean((x - mean) ** 2, axis=-1, keepdims=True)
    return (x - mean) * lax.rsqrt(var + eps) * g + b


# ----------------------------- the fused kernel ------------------------------
def _grip_fused_kernel(
    patches_ref, hint_ref,
    patch_w_ref, patch_b_ref, cls_ref, pos_ref,
    ln1g_ref, ln1b_ref, wqkv_ref, bqkv_ref, wo_ref, bo_ref,
    ln2g_ref, ln2b_ref, w1_ref, b1_ref, w2_ref, b2_ref,
    lng_ref, lnb_ref, head_wx_ref, head_wh_ref, head_b_ref,
    out_ref, buf_ref,
):
    f32 = jnp.float32

    # 1) patch embedding: im2col'd Conv2d(kernel=P, stride=P) as a matmul.
    patch_emb = (jnp.dot(patches_ref[...], patch_w_ref[...],
                         preferred_element_type=f32) + patch_b_ref[...])

    # 2) token embeddings: [cls; patches] + pos_emb, assembled in VMEM scratch.
    cls_pos0 = cls_ref[...] + pos_ref[0:1, :]          # [1, D]
    pos_rest = pos_ref[1:S, :]                         # [NPAT, D]
    for b in range(B):
        buf_ref[b * S: b * S + 1, :] = cls_pos0
        buf_ref[b * S + 1:(b + 1) * S, :] = (
            patch_emb[b * NPAT:(b + 1) * NPAT, :] + pos_rest)
    h = buf_ref[...]                                   # [B*S, D]

    # 3) transformer encoder (pre-LN, HF-ViT style), weights stacked on layer axis.
    for l in range(LAYERS):
        hn = _layernorm(h, ln1g_ref[l], ln1b_ref[l])
        qkv = (jnp.dot(hn, wqkv_ref[l], preferred_element_type=f32)
               + bqkv_ref[l])                          # [B*S, 3D]

        # multi-head self-attention, one (batch, head) tile at a time, in VMEM.
        for b in range(B):
            r0, r1 = b * S, (b + 1) * S
            for hh in range(NH):
                c0 = hh * HD
                q_bh = qkv[r0:r1, c0:c0 + HD]                    # [S, HD]
                k_bh = qkv[r0:r1, D + c0:D + c0 + HD]            # [S, HD]
                v_bh = qkv[r0:r1, 2 * D + c0:2 * D + c0 + HD]    # [S, HD]
                s = lax.dot_general(q_bh, k_bh, (((1,), (1,)), ((), ())),
                                    preferred_element_type=f32) * ATTN_SCALE
                s = s - jnp.max(s, axis=-1, keepdims=True)
                p = jnp.exp(s)
                p = p * pl.reciprocal(jnp.sum(p, axis=-1, keepdims=True),
                                      approx=True)
                buf_ref[r0:r1, c0:c0 + HD] = jnp.dot(
                    p, v_bh, preferred_element_type=f32)
        ctx = buf_ref[...]                             # heads merged: [B*S, D]

        # output projection + residual (fused add)
        h = h + jnp.dot(ctx, wo_ref[l], preferred_element_type=f32) + bo_ref[l]

        # MLP block + residual (fused add)
        hn = _layernorm(h, ln2g_ref[l], ln2b_ref[l])
        mid = _gelu(jnp.dot(hn, w1_ref[l], preferred_element_type=f32)
                    + b1_ref[l])
        h = h + jnp.dot(mid, w2_ref[l], preferred_element_type=f32) + b2_ref[l]

    # 4) final layernorm -> last_hidden_state
    h = _layernorm(h, lng_ref[...], lnb_ref[...])

    # 5) fused classifier heads on CLS token + in-kernel one-hot hint.
    hint_iota = lax.broadcasted_iota(jnp.int32, (B, NUM_HINT), 1)
    hint_oh = (hint_iota == hint_ref[...]).astype(f32)            # [B, NUM_HINT]
    for b in range(B):
        cls_b = h[b * S: b * S + 1, :]                            # [1, D]
        logits = (jnp.dot(cls_b, head_wx_ref[...], preferred_element_type=f32)
                  + jnp.dot(hint_oh[b:b + 1, :], head_wh_ref[...],
                            preferred_element_type=f32)
                  + head_b_ref[...])                              # [1, HEAD_PAD]
        out_ref[b:b + 1, :] = logits.astype(out_ref.dtype)


# ----------------------------- parameter init / packing ----------------------
def init_params(key):
    def nrm(k, shape, scale=0.02):
        return scale * jax.random.normal(k, shape, jnp.float32)

    keys = iter(jax.random.split(key, 64))
    params = {
        "patch_w": nrm(next(keys), (C * PATCH * PATCH, D)),
        "patch_b": nrm(next(keys), (D,)),
        "cls": nrm(next(keys), (1, 1, D)),
        "pos_emb": nrm(next(keys), (1, S, D)),
        "ln_g": jnp.ones((D,), jnp.float32),
        "ln_b": jnp.zeros((D,), jnp.float32),
        "cat_w": nrm(next(keys), (D + NUM_HINT, NUM_CATEGORY)),
        "cat_b": nrm(next(keys), (NUM_CATEGORY,)),
        "col_w": nrm(next(keys), (D + NUM_HINT, NUM_COLOR)),
        "col_b": nrm(next(keys), (NUM_COLOR,)),
        "layers": [],
    }
    for _ in range(LAYERS):
        params["layers"].append({
            "ln1_g": jnp.ones((D,), jnp.float32),
            "ln1_b": jnp.zeros((D,), jnp.float32),
            "wq": nrm(next(keys), (D, D)), "bq": nrm(next(keys), (D,)),
            "wk": nrm(next(keys), (D, D)), "bk": nrm(next(keys), (D,)),
            "wv": nrm(next(keys), (D, D)), "bv": nrm(next(keys), (D,)),
            "wo": nrm(next(keys), (D, D)), "bo": nrm(next(keys), (D,)),
            "ln2_g": jnp.ones((D,), jnp.float32),
            "ln2_b": jnp.zeros((D,), jnp.float32),
            "w1": nrm(next(keys), (D, MLP)), "b1": nrm(next(keys), (MLP,)),
            "w2": nrm(next(keys), (MLP, D)), "b2": nrm(next(keys), (D,)),
        })
    return params


def pack_params(p):
    """One-time (outside jit) repack: stack layer weights, fuse QKV and heads."""
    L = {k: jnp.stack([lyr[k] for lyr in p["layers"]]) for k in p["layers"][0]}
    packed = {
        "patch_w": p["patch_w"],
        "patch_b": p["patch_b"].reshape(1, D),
        "cls": p["cls"].reshape(1, D),
        "pos": p["pos_emb"].reshape(S, D),
        "ln1_g": L["ln1_g"].reshape(LAYERS, 1, D),
        "ln1_b": L["ln1_b"].reshape(LAYERS, 1, D),
        "wqkv": jnp.concatenate([L["wq"], L["wk"], L["wv"]], axis=-1),  # [L,D,3D]
        "bqkv": jnp.concatenate([L["bq"], L["bk"], L["bv"]],
                                axis=-1).reshape(LAYERS, 1, 3 * D),
        "wo": L["wo"],
        "bo": L["bo"].reshape(LAYERS, 1, D),
        "ln2_g": L["ln2_g"].reshape(LAYERS, 1, D),
        "ln2_b": L["ln2_b"].reshape(LAYERS, 1, D),
        "w1": L["w1"], "b1": L["b1"].reshape(LAYERS, 1, MLP),
        "w2": L["w2"], "b2": L["b2"].reshape(LAYERS, 1, D),
        "ln_g": p["ln_g"].reshape(1, D),
        "ln_b": p["ln_b"].reshape(1, D),
    }
    head_w = jnp.concatenate([p["cat_w"], p["col_w"]], axis=1)      # [D+2, 12]
    head_b = jnp.concatenate([p["cat_b"], p["col_b"]], axis=0)      # [12]
    pad = HEAD_PAD - HEAD_N
    packed["head_wx"] = jnp.pad(head_w[:D], ((0, 0), (0, pad)))     # [D, 128]
    packed["head_wh"] = jnp.pad(head_w[D:], ((0, 0), (0, pad)))     # [2, 128]
    packed["head_b"] = jnp.pad(head_b, (0, pad)).reshape(1, HEAD_PAD)
    return packed


# ----------------------------- forward pass ----------------------------------
def _full_spec(shape):
    nd = len(shape)
    return pl.BlockSpec(shape, lambda i: (0,) * nd)


def grip_forward(packed, num_hint, pixel_values, hint):
    """Mirrors GRIPImageModelScript.forward (hint is the module-level tensor;
    the `num_hint` forward argument is unused by the original module)."""
    del num_hint  # original module uses self.num_hint, ignores the argument

    Bn, Cn, H, W = pixel_values.shape
    P = PATCH
    # conv(kernel=P, stride=P) realized as im2col (C,P,P-major, matches torch
    # conv weight [D,C,P,P] flattening) -> matmul inside the fused kernel.
    patches = pixel_values.reshape(Bn, Cn, H // P, P, W // P, P)
    patches = patches.transpose(0, 2, 4, 1, 3, 5).reshape(
        Bn * (H // P) * (W // P), Cn * P * P)
    hint_i = hint.astype(jnp.int32).reshape(Bn, 1)

    inputs = [
        patches, hint_i,
        packed["patch_w"], packed["patch_b"], packed["cls"], packed["pos"],
        packed["ln1_g"], packed["ln1_b"], packed["wqkv"], packed["bqkv"],
        packed["wo"], packed["bo"], packed["ln2_g"], packed["ln2_b"],
        packed["w1"], packed["b1"], packed["w2"], packed["b2"],
        packed["ln_g"], packed["ln_b"],
        packed["head_wx"], packed["head_wh"], packed["head_b"],
    ]

    out = pl.pallas_call(
        _grip_fused_kernel,
        out_shape=jax.ShapeDtypeStruct((Bn, HEAD_PAD), jnp.float32),
        grid=(1,),
        in_specs=[_full_spec(x.shape) for x in inputs],
        out_specs=pl.BlockSpec((Bn, HEAD_PAD), lambda i: (0, 0)),
        scratch_shapes=[pltpu.VMEM((Bn * S, D), jnp.float32)],
        compiler_params=pltpu.CompilerParams(
            dimension_semantics=("arbitrary",)),
    )(*inputs)

    category_logits = out[:, :NUM_CATEGORY]
    color_logits = out[:, NUM_CATEGORY:NUM_CATEGORY + NUM_COLOR]
    return category_logits, color_logits


# ----------------------------- main ------------------------------------------
if __name__ == "__main__":
    key = jax.random.PRNGKey(0)
    pkey, xkey = jax.random.split(key)
    params = init_params(pkey)
    packed = pack_params(params)            # one-time fuse/stack, outside jit

    pixel_values = jax.random.uniform(xkey, (B, C, IMG, IMG), jnp.float32)
    hint = jnp.array([[0], [1]], dtype=jnp.int32)   # torch.LongTensor([[0],[1]])

    fwd = jax.jit(functools.partial(grip_forward, packed))
    cat_logits, col_logits = fwd(NUM_HINT, pixel_values, hint)
    jax.block_until_ready((cat_logits, col_logits))

    assert cat_logits.shape == (B, NUM_CATEGORY)
    assert col_logits.shape == (B, NUM_COLOR)
    print("KERNEL_OK")
</pallas_src>

<mosaic_0001>
module attributes {stable_mosaic.version = 11 : i64} {
  func.func @_grip_fused_kernel(%arg0: i32, %arg1: memref<8x192xf32, #tpu.memory_space<vmem>>, %arg2: memref<2x1xi32, #tpu.memory_space<vmem>>, %arg3: memref<192x32xf32, #tpu.memory_space<vmem>>, %arg4: memref<1x32xf32, #tpu.memory_space<vmem>>, %arg5: memref<1x32xf32, #tpu.memory_space<vmem>>, %arg6: memref<5x32xf32, #tpu.memory_space<vmem>>, %arg7: memref<2x1x32xf32, #tpu.memory_space<vmem>>, %arg8: memref<2x1x32xf32, #tpu.memory_space<vmem>>, %arg9: memref<2x32x96xf32, #tpu.memory_space<vmem>>, %arg10: memref<2x1x96xf32, #tpu.memory_space<vmem>>, %arg11: memref<2x32x32xf32, #tpu.memory_space<vmem>>, %arg12: memref<2x1x32xf32, #tpu.memory_space<vmem>>, %arg13: memref<2x1x32xf32, #tpu.memory_space<vmem>>, %arg14: memref<2x1x32xf32, #tpu.memory_space<vmem>>, %arg15: memref<2x32x64xf32, #tpu.memory_space<vmem>>, %arg16: memref<2x1x64xf32, #tpu.memory_space<vmem>>, %arg17: memref<2x64x32xf32, #tpu.memory_space<vmem>>, %arg18: memref<2x1x32xf32, #tpu.memory_space<vmem>>, %arg19: memref<1x32xf32, #tpu.memory_space<vmem>>, %arg20: memref<1x32xf32, #tpu.memory_space<vmem>>, %arg21: memref<32x128xf32, #tpu.memory_space<vmem>>, %arg22: memref<2x128xf32, #tpu.memory_space<vmem>>, %arg23: memref<1x128xf32, #tpu.memory_space<vmem>>, %arg24: memref<2x128xf32, #tpu.memory_space<vmem>>, %arg25: memref<10x32xf32, #tpu.memory_space<vmem>>) attributes {dimension_semantics = [#tpu.dimension_semantics<arbitrary>], iteration_bounds = array<i64: 1>, scalar_prefetch = 0 : i64, scratch_operands = 1 : i64, tpu.core_type = #tpu.core_type<tc>, window_params = [{pipeline_mode = #tpu.pipeline_mode<synchronous>, transform_indices = @transform_0, window_bounds = array<i64: 8, 192>}, {pipeline_mode = #tpu.pipeline_mode<synchronous>, transform_indices = @transform_1, window_bounds = array<i64: 2, 1>}, {pipeline_mode = #tpu.pipeline_mode<synchronous>, transform_indices = @transform_2, window_bounds = array<i64: 192, 32>}, {pipeline_mode = #tpu.pipeline_mode<synchronous>, transform_indices = @transform_3, window_bounds = array<i64: 1, 32>}, {pipeline_mode = #tpu.pipeline_mode<synchronous>, transform_indices = @transform_4, window_bounds = array<i64: 1, 32>}, {pipeline_mode = #tpu.pipeline_mode<synchronous>, transform_indices = @transform_5, window_bounds = array<i64: 5, 32>}, {pipeline_mode = #tpu.pipeline_mode<synchronous>, transform_indices = @transform_6, window_bounds = array<i64: 2, 1, 32>}, {pipeline_mode = #tpu.pipeline_mode<synchronous>, transform_indices = @transform_7, window_bounds = array<i64: 2, 1, 32>}, {pipeline_mode = #tpu.pipeline_mode<synchronous>, transform_indices = @transform_8, window_bounds = array<i64: 2, 32, 96>}, {pipeline_mode = #tpu.pipeline_mode<synchronous>, transform_indices = @transform_9, window_bounds = array<i64: 2, 1, 96>}, {pipeline_mode = #tpu.pipeline_mode<synchronous>, transform_indices = @transform_10, window_bounds = array<i64: 2, 32, 32>}, {pipeline_mode = #tpu.pipeline_mode<synchronous>, transform_indices = @transform_11, window_bounds = array<i64: 2, 1, 32>}, {pipeline_mode = #tpu.pipeline_mode<synchronous>, transform_indices = @transform_12, window_bounds = array<i64: 2, 1, 32>}, {pipeline_mode = #tpu.pipeline_mode<synchronous>, transform_indices = @transform_13, window_bounds = array<i64: 2, 1, 32>}, {pipeline_mode = #tpu.pipeline_mode<synchronous>, transform_indices = @transform_14, window_bounds = array<i64: 2, 32, 64>}, {pipeline_mode = #tpu.pipeline_mode<synchronous>, transform_indices = @transform_15, window_bounds = array<i64: 2, 1, 64>}, {pipeline_mode = #tpu.pipeline_mode<synchronous>, transform_indices = @transform_16, window_bounds = array<i64: 2, 64, 32>}, {pipeline_mode = #tpu.pipeline_mode<synchronous>, transform_indices = @transform_17, window_bounds = array<i64: 2, 1, 32>}, {pipeline_mode = #tpu.pipeline_mode<synchronous>, transform_indices = @transform_18, window_bounds = array<i64: 1, 32>}, {pipeline_mode = #tpu.pipeline_mode<synchronous>, transform_indices = @transform_19, window_bounds = array<i64: 1, 32>}, {pipeline_mode = #tpu.pipeline_mode<synchronous>, transform_indices = @transform_20, window_bounds = array<i64: 32, 128>}, {pipeline_mode = #tpu.pipeline_mode<synchronous>, transform_indices = @transform_21, window_bounds = array<i64: 2, 128>}, {pipeline_mode = #tpu.pipeline_mode<synchronous>, transform_indices = @transform_22, window_bounds = array<i64: 1, 128>}, {pipeline_mode = #tpu.pipeline_mode<synchronous>, transform_indices = @transform_23, window_bounds = array<i64: 2, 128>}]} {
    %c0 = arith.constant 0 : index
    %c0_0 = arith.constant 0 : index
    %0 = vector.load %arg1[%c0, %c0_0] : memref<8x192xf32, #tpu.memory_space<vmem>>, vector<8x192xf32>
    %c0_1 = arith.constant 0 : index
    %c0_2 = arith.constant 0 : index
    %1 = vector.load %arg3[%c0_1, %c0_2] : memref<192x32xf32, #tpu.memory_space<vmem>>, vector<192x32xf32>
    %cst = arith.constant dense<0.000000e+00> : vector<8x32xf32>
    %2 = tpu.matmul %0, %1, %cst {dimension_numbers = #tpu.dot_dimension_numbers<[1], [0], [0], [1], [0, 0, 1, 1], [], []>} : vector<8x192xf32>, vector<192x32xf32>, vector<8x32xf32> -> vector<8x32xf32>
    %c0_3 = arith.constant 0 : index
    %c0_4 = arith.constant 0 : index
    %3 = vector.load %arg4[%c0_3, %c0_4] : memref<1x32xf32, #tpu.memory_space<vmem>>, vector<1x32xf32>
    %4 = vector.broadcast %3 : vector<1x32xf32> to vector<8x32xf32>
    %5 = arith.addf %2, %4 : vector<8x32xf32>
    %c0_5 = arith.constant 0 : index
    %c0_6 = arith.constant 0 : index
    %6 = vector.load %arg5[%c0_5, %c0_6] : memref<1x32xf32, #tpu.memory_space<vmem>>, vector<1x32xf32>
    %c0_7 = arith.constant 0 : index
    %c0_8 = arith.constant 0 : index
    %7 = vector.load %arg6[%c0_7, %c0_8] : memref<5x32xf32, #tpu.memory_space<vmem>>, vector<1x32xf32>
    %8 = arith.addf %6, %7 : vector<1x32xf32>
    %c1 = arith.constant 1 : index
    %c0_9 = arith.constant 0 : index
    %9 = vector.load %arg6[%c1, %c0_9] : memref<5x32xf32, #tpu.memory_space<vmem>>, vector<4x32xf32>
    %c0_10 = arith.constant 0 : index
    %c0_11 = arith.constant 0 : index
    %10 = vector.load %arg25[%c0_10, %c0_11] : memref<10x32xf32, #tpu.memory_space<vmem>>, vector<1x32xf32>
    tpu.vector_store %arg25[%c0_10, %c0_11], %8 {strides = array<i32>} : memref<10x32xf32, #tpu.memory_space<vmem>>, vector<1x32xf32>,
    %11 = vector.extract_strided_slice %5 {offsets = [0, 0], sizes = [4, 32], strides = [1, 1]} : vector<8x32xf32> to vector<4x32xf32>
    %12 = arith.addf %11, %9 : vector<4x32xf32>
    %c1_12 = arith.constant 1 : index
    %c0_13 = arith.constant 0 : index
    %13 = vector.load %arg25[%c1_12, %c0_13] : memref<10x32xf32, #tpu.memory_space<vmem>>, vector<4x32xf32>
    tpu.vector_store %arg25[%c1_12, %c0_13], %12 {strides = array<i32>} : memref<10x32xf32, #tpu.memory_space<vmem>>, vector<4x32xf32>,
    %c5 = arith.constant 5 : index
    %c0_14 = arith.constant 0 : index
    %14 = vector.load %arg25[%c5, %c0_14] : memref<10x32xf32, #tpu.memory_space<vmem>>, vector<1x32xf32>
    tpu.vector_store %arg25[%c5, %c0_14], %8 {strides = array<i32>} : memref<10x32xf32, #tpu.memory_space<vmem>>, vector<1x32xf32>,
    %15 = vector.extract_strided_slice %5 {offsets = [4, 0], sizes = [4, 32], strides = [1, 1]} : vector<8x32xf32> to vector<4x32xf32>
    %16 = arith.addf %15, %9 : vector<4x32xf32>
    %c6 = arith.constant 6 : index
    %c0_15 = arith.constant 0 : index
    %17 = vector.load %arg25[%c6, %c0_15] : memref<10x32xf32, #tpu.memory_space<vmem>>, vector<4x32xf32>
    tpu.vector_store %arg25[%c6, %c0_15], %16 {strides = array<i32>} : memref<10x32xf32, #tpu.memory_space<vmem>>, vector<4x32xf32>,
    %c0_16 = arith.constant 0 : index
    %c0_17 = arith.constant 0 : index
    %18 = vector.load %arg25[%c0_16, %c0_17] : memref<10x32xf32, #tpu.memory_space<vmem>>, vector<10x32xf32>
    %c0_18 = arith.constant 0 : index
    %c0_19 = arith.constant 0 : index
    %c0_20 = arith.constant 0 : index
    %19 = vector.load %arg7[%c0_18, %c0_19, %c0_20] : memref<2x1x32xf32, #tpu.memory_space<vmem>>, vector<1x1x32xf32>
    %20 = vector.shape_cast %19 : vector<1x1x32xf32> to vector<1x32xf32>
    %c0_21 = arith.constant 0 : index
    %c0_22 = arith.constant 0 : index
    %c0_23 = arith.constant 0 : index
    %21 = vector.load %arg8[%c0_21, %c0_22, %c0_23] : memref<2x1x32xf32, #tpu.memory_space<vmem>>, vector<1x1x32xf32>
    %22 = vector.shape_cast %21 : vector<1x1x32xf32> to vector<1x32xf32>
    %cst_24 = arith.constant dense<0.000000e+00> : vector<10xf32>
    %23 = vector.multi_reduction <add>, %18, %cst_24 [1] : vector<10x32xf32> to vector<10xf32>
    %24 = vector.shape_cast %23 : vector<10xf32> to vector<10x1xf32>
    %cst_25 = arith.constant 3.200000e+01 : f32
    %25 = vector.broadcast %cst_25 : f32 to vector<10x1xf32>
    %26 = arith.divf %24, %25 : vector<10x1xf32>
    %27 = vector.broadcast %26 : vector<10x1xf32> to vector<10x32xf32>
    %28 = arith.subf %18, %27 : vector<10x32xf32>
    %29 = arith.mulf %28, %28 : vector<10x32xf32>
    %cst_26 = arith.constant dense<0.000000e+00> : vector<10xf32>
    %30 = vector.multi_reduction <add>, %29, %cst_26 [1] : vector<10x32xf32> to vector<10xf32>
    %31 = vector.shape_cast %30 : vector<10xf32> to vector<10x1xf32>
    %cst_27 = arith.constant 3.200000e+01 : f32
    %32 = vector.broadcast %cst_27 : f32 to vector<10x1xf32>
    %33 = arith.divf %31, %32 : vector<10x1xf32>
    %34 = vector.broadcast %26 : vector<10x1xf32> to vector<10x32xf32>
    %35 = arith.subf %18, %34 : vector<10x32xf32>
    %cst_28 = arith.constant 9.99999996E-13 : f32
    %36 = vector.broadcast %cst_28 : f32 to vector<10x1xf32>
    %37 = arith.addf %33, %36 : vector<10x1xf32>
    %38 = math.rsqrt %37 : vector<10x1xf32>
    %39 = vector.broadcast %38 : vector<10x1xf32> to vector<10x32xf32>
    %40 = arith.mulf %35, %39 : vector<10x32xf32>
    %41 = vector.broadcast %20 : vector<1x32xf32> to vector<10x32xf32>
    %42 = arith.mulf %40, %41 : vector<10x32xf32>
    %43 = vector.broadcast %22 : vector<1x32xf32> to vector<10x32xf32>
    %44 = arith.addf %42, %43 : vector<10x32xf32>
    %c0_29 = arith.constant 0 : index
    %c0_30 = arith.constant 0 : index
    %c0_31 = arith.constant 0 : index
    %45 = vector.load %arg9[%c0_29, %c0_30, %c0_31] : memref<2x32x96xf32, #tpu.memory_space<vmem>>, vector<1x32x96xf32>
    %46 = vector.shape_cast %45 : vector<1x32x96xf32> to vector<32x96xf32>
    %cst_32 = arith.constant dense<0.000000e+00> : vector<10x96xf32>
    %47 = tpu.matmul %44, %46, %cst_32 {dimension_numbers = #tpu.dot_dimension_numbers<[1], [0], [0], [1], [0, 0, 1, 1], [], []>} : vector<10x32xf32>, vector<32x96xf32>, vector<10x96xf32> -> vector<10x96xf32>
    %c0_33 = arith.constant 0 : index
    %c0_34 = arith.constant 0 : index
    %c0_35 = arith.constant 0 : index
    %48 = vector.load %arg10[%c0_33, %c0_34, %c0_35] : memref<2x1x96xf32, #tpu.memory_space<vmem>>, vector<1x1x96xf32>
    %49 = vector.shape_cast %48 : vector<1x1x96xf32> to vector<1x96xf32>
    %50 = vector.broadcast %49 : vector<1x96xf32> to vector<10x96xf32>
    %51 = arith.addf %47, %50 : vector<10x96xf32>
    %52 = vector.extract_strided_slice %51 {offsets = [0, 0], sizes = [5, 8], strides = [1, 1]} : vector<10x96xf32> to vector<5x8xf32>
    %53 = vector.extract_strided_slice %51 {offsets = [0, 32], sizes = [5, 8], strides = [1, 1]} : vector<10x96xf32> to vector<5x8xf32>
    %54 = vector.extract_strided_slice %51 {offsets = [0, 64], sizes = [5, 8], strides = [1, 1]} : vector<10x96xf32> to vector<5x8xf32>
    %cst_36 = arith.constant dense<0.000000e+00> : vector<5x5xf32>
    %55 = tpu.matmul %52, %53, %cst_36 {dimension_numbers = #tpu.dot_dimension_numbers<[1], [1], [0], [0], [0, 0, 1, 0], [], []>} : vector<5x8xf32>, vector<5x8xf32>, vector<5x5xf32> -> vector<5x5xf32>
    %cst_37 = arith.constant 0.353553385 : f32
    %56 = vector.broadcast %cst_37 : f32 to vector<5x5xf32>
    %57 = arith.mulf %55, %56 : vector<5x5xf32>
    %cst_38 = arith.constant dense<0xFF800000> : vector<5xf32>
    %58 = vector.multi_reduction <maximumf>, %57, %cst_38 [1] : vector<5x5xf32> to vector<5xf32>
    %59 = vector.shape_cast %58 : vector<5xf32> to vector<5x1xf32>
    %60 = vector.broadcast %59 : vector<5x1xf32> to vector<5x5xf32>
    %61 = arith.subf %57, %60 : vector<5x5xf32>
    %62 = math.exp %61 : vector<5x5xf32>
    %cst_39 = arith.constant dense<0.000000e+00> : vector<5xf32>
    %63 = vector.multi_reduction <add>, %62, %cst_39 [1] : vector<5x5xf32> to vector<5xf32>
    %64 = vector.shape_cast %63 : vector<5xf32> to vector<5x1xf32>
    %65 = tpu.reciprocal %64 {approx = true} : vector<5x1xf32> -> vector<5x1xf32>
    %66 = vector.broadcast %65 : vector<5x1xf32> to vector<5x5xf32>
    %67 = arith.mulf %62, %66 : vector<5x5xf32>
    %cst_40 = arith.constant dense<0.000000e+00> : vector<5x8xf32>
    %68 = tpu.matmul %67, %54, %cst_40 {dimension_numbers = #tpu.dot_dimension_numbers<[1], [0], [0], [1], [0, 0, 1, 1], [], []>} : vector<5x5xf32>, vector<5x8xf32>, vector<5x8xf32> -> vector<5x8xf32>
    %c0_41 = arith.constant 0 : index
    %c0_42 = arith.constant 0 : index
    %69 = vector.load %arg25[%c0_41, %c0_42] : memref<10x32xf32, #tpu.memory_space<vmem>>, vector<5x8xf32>
    tpu.vector_store %arg25[%c0_41, %c0_42], %68 {strides = array<i32>} : memref<10x32xf32, #tpu.memory_space<vmem>>, vector<5x8xf32>,
    %70 = vector.extract_strided_slice %51 {offsets = [0, 8], sizes = [5, 8], strides = [1, 1]} : vector<10x96xf32> to vector<5x8xf32>
    %71 = vector.extract_strided_slice %51 {offsets = [0, 40], sizes = [5, 8], strides = [1, 1]} : vector<10x96xf32> to vector<5x8xf32>
    %72 = vector.extract_strided_slice %51 {offsets = [0, 72], sizes = [5, 8], strides = [1, 1]} : vector<10x96xf32> to vector<5x8xf32>
    %cst_43 = arith.constant dense<0.000000e+00> : vector<5x5xf32>
    %73 = tpu.matmul %70, %71, %cst_43 {dimension_numbers = #tpu.dot_dimension_numbers<[1], [1], [0], [0], [0, 0, 1, 0], [], []>} : vector<5x8xf32>, vector<5x8xf32>, vector<5x5xf32> -> vector<5x5xf32>
    %cst_44 = arith.constant 0.353553385 : f32
    %74 = vector.broadcast %cst_44 : f32 to vector<5x5xf32>
    %75 = arith.mulf %73, %74 : vector<5x5xf32>
    %cst_45 = arith.constant dense<0xFF800000> : vector<5xf32>
    %76 = vector.multi_reduction <maximumf>, %75, %cst_45 [1] : vector<5x5xf32> to vector<5xf32>
    %77 = vector.shape_cast %76 : vector<5xf32> to vector<5x1xf32>
    %78 = vector.broadcast %77 : vector<5x1xf32> to vector<5x5xf32>
    %79 = arith.subf %75, %78 : vector<5x5xf32>
    %80 = math.exp %79 : vector<5x5xf32>
    %cst_46 = arith.constant dense<0.000000e+00> : vector<5xf32>
    %81 = vector.multi_reduction <add>, %80, %cst_46 [1] : vector<5x5xf32> to vector<5xf32>
    %82 = vector.shape_cast %81 : vector<5xf32> to vector<5x1xf32>
    %83 = tpu.reciprocal %82 {approx = true} : vector<5x1xf32> -> vector<5x1xf32>
    %84 = vector.broadcast %83 : vector<5x1xf32> to vector<5x5xf32>
    %85 = arith.mulf %80, %84 : vector<5x5xf32>
    %cst_47 = arith.constant dense<0.000000e+00> : vector<5x8xf32>
    %86 = tpu.matmul %85, %72, %cst_47 {dimension_numbers = #tpu.dot_dimension_numbers<[1], [0], [0], [1], [0, 0, 1, 1], [], []>} : vector<5x5xf32>, vector<5x8xf32>, vector<5x8xf32> -> vector<5x8xf32>
    %c0_48 = arith.constant 0 : index
    %c8 = arith.constant 8 : index
    %87 = vector.load %arg25[%c0_48, %c8] : memref<10x32xf32, #tpu.memory_space<vmem>>, vector<5x8xf32>
    tpu.vector_store %arg25[%c0_48, %c8], %86 {strides = array<i32>} : memref<10x32xf32, #tpu.memory_space<vmem>>, vector<5x8xf32>,
    %88 = vector.extract_strided_slice %51 {offsets = [0, 16], sizes = [5, 8], strides = [1, 1]} : vector<10x96xf32> to vector<5x8xf32>
    %89 = vector.extract_strided_slice %51 {offsets = [0, 48], sizes = [5, 8], strides = [1, 1]} : vector<10x96xf32> to vector<5x8xf32>
    %90 = vector.extract_strided_slice %51 {offsets = [0, 80], sizes = [5, 8], strides = [1, 1]} : vector<10x96xf32> to vector<5x8xf32>
    %cst_49 = arith.constant dense<0.000000e+00> : vector<5x5xf32>
    %91 = tpu.matmul %88, %89, %cst_49 {dimension_numbers = #tpu.dot_dimension_numbers<[1], [1], [0], [0], [0, 0, 1, 0], [], []>} : vector<5x8xf32>, vector<5x8xf32>, vector<5x5xf32> -> vector<5x5xf32>
    %cst_50 = arith.constant 0.353553385 : f32
    %92 = vector.broadcast %cst_50 : f32 to vector<5x5xf32>
    %93 = arith.mulf %91, %92 : vector<5x5xf32>
    %cst_51 = arith.constant dense<0xFF800000> : vector<5xf32>
    %94 = vector.multi_reduction <maximumf>, %93, %cst_51 [1] : vector<5x5xf32> to vector<5xf32>
    %95 = vector.shape_cast %94 : vector<5xf32> to vector<5x1xf32>
    %96 = vector.broadcast %95 : vector<5x1xf32> to vector<5x5xf32>
    %97 = arith.subf %93, %96 : vector<5x5xf32>
    %98 = math.exp %97 : vector<5x5xf32>
    %cst_52 = arith.constant dense<0.000000e+00> : vector<5xf32>
    %99 = vector.multi_reduction <add>, %98, %cst_52 [1] : vector<5x5xf32> to vector<5xf32>
    %100 = vector.shape_cast %99 : vector<5xf32> to vector<5x1xf32>
    %101 = tpu.reciprocal %100 {approx = true} : vector<5x1xf32> -> vector<5x1xf32>
    %102 = vector.broadcast %101 : vector<5x1xf32> to vector<5x5xf32>
    %103 = arith.mulf %98, %102 : vector<5x5xf32>
    %cst_53 = arith.constant dense<0.000000e+00> : vector<5x8xf32>
    %104 = tpu.matmul %103, %90, %cst_53 {dimension_numbers = #tpu.dot_dimension_numbers<[1], [0], [0], [1], [0, 0, 1, 1], [], []>} : vector<5x5xf32>, vector<5x8xf32>, vector<5x8xf32> -> vector<5x8xf32>
    %c0_54 = arith.constant 0 : index
    %c16 = arith.constant 16 : index
    %105 = vector.load %arg25[%c0_54, %c16] : memref<10x32xf32, #tpu.memory_space<vmem>>, vector<5x8xf32>
    tpu.vector_store %arg25[%c0_54, %c16], %104 {strides = array<i32>} : memref<10x32xf32, #tpu.memory_space<vmem>>, vector<5x8xf32>,
    %106 = vector.extract_strided_slice %51 {offsets = [0, 24], sizes = [5, 8], strides = [1, 1]} : vector<10x96xf32> to vector<5x8xf32>
    %107 = vector.extract_strided_slice %51 {offsets = [0, 56], sizes = [5, 8], strides = [1, 1]} : vector<10x96xf32> to vector<5x8xf32>
    %108 = vector.extract_strided_slice %51 {offsets = [0, 88], sizes = [5, 8], strides = [1, 1]} : vector<10x96xf32> to vector<5x8xf32>
    %cst_55 = arith.constant dense<0.000000e+00> : vector<5x5xf32>
    %109 = tpu.matmul %106, %107, %cst_55 {dimension_numbers = #tpu.dot_dimension_numbers<[1], [1], [0], [0], [0, 0, 1, 0], [], []>} : vector<5x8xf32>, vector<5x8xf32>, vector<5x5xf32> -> vector<5x5xf32>
    %cst_56 = arith.constant 0.353553385 : f32
    %110 = vector.broadcast %cst_56 : f32 to vector<5x5xf32>
    %111 = arith.mulf %109, %110 : vector<5x5xf32>
    %cst_57 = arith.constant dense<0xFF800000> : vector<5xf32>
    %112 = vector.multi_reduction <maximumf>, %111, %cst_57 [1] : vector<5x5xf32> to vector<5xf32>
    %113 = vector.shape_cast %112 : vector<5xf32> to vector<5x1xf32>
    %114 = vector.broadcast %113 : vector<5x1xf32> to vector<5x5xf32>
    %115 = arith.subf %111, %114 : vector<5x5xf32>
    %116 = math.exp %115 : vector<5x5xf32>
    %cst_58 = arith.constant dense<0.000000e+00> : vector<5xf32>
    %117 = vector.multi_reduction <add>, %116, %cst_58 [1] : vector<5x5xf32> to vector<5xf32>
    %118 = vector.shape_cast %117 : vector<5xf32> to vector<5x1xf32>
    %119 = tpu.reciprocal %118 {approx = true} : vector<5x1xf32> -> vector<5x1xf32>
    %120 = vector.broadcast %119 : vector<5x1xf32> to vector<5x5xf32>
    %121 = arith.mulf %116, %120 : vector<5x5xf32>
    %cst_59 = arith.constant dense<0.000000e+00> : vector<5x8xf32>
    %122 = tpu.matmul %121, %108, %cst_59 {dimension_numbers = #tpu.dot_dimension_numbers<[1], [0], [0], [1], [0, 0, 1, 1], [], []>} : vector<5x5xf32>, vector<5x8xf32>, vector<5x8xf32> -> vector<5x8xf32>
    %c0_60 = arith.constant 0 : index
    %c24 = arith.constant 24 : index
    %123 = vector.load %arg25[%c0_60, %c24] : memref<10x32xf32, #tpu.memory_space<vmem>>, vector<5x8xf32>
    tpu.vector_store %arg25[%c0_60, %c24], %122 {strides = array<i32>} : memref<10x32xf32, #tpu.memory_space<vmem>>, vector<5x8xf32>,
    %124 = vector.extract_strided_slice %51 {offsets = [5, 0], sizes = [5, 8], strides = [1, 1]} : vector<10x96xf32> to vector<5x8xf32>
    %125 = vector.extract_strided_slice %51 {offsets = [5, 32], sizes = [5, 8], strides = [1, 1]} : vector<10x96xf32> to vector<5x8xf32>
    %126 = vector.extract_strided_slice %51 {offsets = [5, 64], sizes = [5, 8], strides = [1, 1]} : vector<10x96xf32> to vector<5x8xf32>
    %cst_61 = arith.constant dense<0.000000e+00> : vector<5x5xf32>
    %127 = tpu.matmul %124, %125, %cst_61 {dimension_numbers = #tpu.dot_dimension_numbers<[1], [1], [0], [0], [0, 0, 1, 0], [], []>} : vector<5x8xf32>, vector<5x8xf32>, vector<5x5xf32> -> vector<5x5xf32>
    %cst_62 = arith.constant 0.353553385 : f32
    %128 = vector.broadcast %cst_62 : f32 to vector<5x5xf32>
    %129 = arith.mulf %127, %128 : vector<5x5xf32>
    %cst_63 = arith.constant dense<0xFF800000> : vector<5xf32>
    %130 = vector.multi_reduction <maximumf>, %129, %cst_63 [1] : vector<5x5xf32> to vector<5xf32>
    %131 = vector.shape_cast %130 : vector<5xf32> to vector<5x1xf32>
    %132 = vector.broadcast %131 : vector<5x1xf32> to vector<5x5xf32>
    %133 = arith.subf %129, %132 : vector<5x5xf32>
    %134 = math.exp %133 : vector<5x5xf32>
    %cst_64 = arith.constant dense<0.000000e+00> : vector<5xf32>
    %135 = vector.multi_reduction <add>, %134, %cst_64 [1] : vector<5x5xf32> to vector<5xf32>
    %136 = vector.shape_cast %135 : vector<5xf32> to vector<5x1xf32>
    %137 = tpu.reciprocal %136 {approx = true} : vector<5x1xf32> -> vector<5x1xf32>
    %138 = vector.broadcast %137 : vector<5x1xf32> to vector<5x5xf32>
    %139 = arith.mulf %134, %138 : vector<5x5xf32>
    %cst_65 = arith.constant dense<0.000000e+00> : vector<5x8xf32>
    %140 = tpu.matmul %139, %126, %cst_65 {dimension_numbers = #tpu.dot_dimension_numbers<[1], [0], [0], [1], [0, 0, 1, 1], [], []>} : vector<5x5xf32>, vector<5x8xf32>, vector<5x8xf32> -> vector<5x8xf32>
    %c5_66 = arith.constant 5 : index
    %c0_67 = arith.constant 0 : index
    %141 = vector.load %arg25[%c5_66, %c0_67] : memref<10x32xf32, #tpu.memory_space<vmem>>, vector<5x8xf32>
    tpu.vector_store %arg25[%c5_66, %c0_67], %140 {strides = array<i32>} : memref<10x32xf32, #tpu.memory_space<vmem>>, vector<5x8xf32>,
    %142 = vector.extract_strided_slice %51 {offsets = [5, 8], sizes = [5, 8], strides = [1, 1]} : vector<10x96xf32> to vector<5x8xf32>
    %143 = vector.extract_strided_slice %51 {offsets = [5, 40], sizes = [5, 8], strides = [1, 1]} : vector<10x96xf32> to vector<5x8xf32>
    %144 = vector.extract_strided_slice %51 {offsets = [5, 72], sizes = [5, 8], strides = [1, 1]} : vector<10x96xf32> to vector<5x8xf32>
    %cst_68 = arith.constant dense<0.000000e+00> : vector<5x5xf32>
    %145 = tpu.matmul %142, %143, %cst_68 {dimension_numbers = #tpu.dot_dimension_numbers<[1], [1], [0], [0], [0, 0, 1, 0], [], []>} : vector<5x8xf32>, vector<5x8xf32>, vector<5x5xf32> -> vector<5x5xf32>
    %cst_69 = arith.constant 0.353553385 : f32
    %146 = vector.broadcast %cst_69 : f32 to vector<5x5xf32>
    %147 = arith.mulf %145, %146 : vector<5x5xf32>
    %cst_70 = arith.constant dense<0xFF800000> : vector<5xf32>
    %148 = vector.multi_reduction <maximumf>, %147, %cst_70 [1] : vector<5x5xf32> to vector<5xf32>
    %149 = vector.shape_cast %148 : vector<5xf32> to vector<5x1xf32>
    %150 = vector.broadcast %149 : vector<5x1xf32> to vector<5x5xf32>
    %151 = arith.subf %147, %150 : vector<5x5xf32>
    %152 = math.exp %151 : vector<5x5xf32>
    %cst_71 = arith.constant dense<0.000000e+00> : vector<5xf32>
    %153 = vector.multi_reduction <add>, %152, %cst_71 [1] : vector<5x5xf32> to vector<5xf32>
    %154 = vector.shape_cast %153 : vector<5xf32> to vector<5x1xf32>
    %155 = tpu.reciprocal %154 {approx = true} : vector<5x1xf32> -> vector<5x1xf32>
    %156 = vector.broadcast %155 : vector<5x1xf32> to vector<5x5xf32>
    %157 = arith.mulf %152, %156 : vector<5x5xf32>
    %cst_72 = arith.constant dense<0.000000e+00> : vector<5x8xf32>
    %158 = tpu.matmul %157, %144, %cst_72 {dimension_numbers = #tpu.dot_dimension_numbers<[1], [0], [0], [1], [0, 0, 1, 1], [], []>} : vector<5x5xf32>, vector<5x8xf32>, vector<5x8xf32> -> vector<5x8xf32>
    %c5_73 = arith.constant 5 : index
    %c8_74 = arith.constant 8 : index
    %159 = vector.load %arg25[%c5_73, %c8_74] : memref<10x32xf32, #tpu.memory_space<vmem>>, vector<5x8xf32>
    tpu.vector_store %arg25[%c5_73, %c8_74], %158 {strides = array<i32>} : memref<10x32xf32, #tpu.memory_space<vmem>>, vector<5x8xf32>,
    %160 = vector.extract_strided_slice %51 {offsets = [5, 16], sizes = [5, 8], strides = [1, 1]} : vector<10x96xf32> to vector<5x8xf32>
    %161 = vector.extract_strided_slice %51 {offsets = [5, 48], sizes = [5, 8], strides = [1, 1]} : vector<10x96xf32> to vector<5x8xf32>
    %162 = vector.extract_strided_slice %51 {offsets = [5, 80], sizes = [5, 8], strides = [1, 1]} : vector<10x96xf32> to vector<5x8xf32>
    %cst_75 = arith.constant dense<0.000000e+00> : vector<5x5xf32>
    %163 = tpu.matmul %160, %161, %cst_75 {dimension_numbers = #tpu.dot_dimension_numbers<[1], [1], [0], [0], [0, 0, 1, 0], [], []>} : vector<5x8xf32>, vector<5x8xf32>, vector<5x5xf32> -> vector<5x5xf32>
    %cst_76 = arith.constant 0.353553385 : f32
    %164 = vector.broadcast %cst_76 : f32 to vector<5x5xf32>
    %165 = arith.mulf %163, %164 : vector<5x5xf32>
    %cst_77 = arith.constant dense<0xFF800000> : vector<5xf32>
    %166 = vector.multi_reduction <maximumf>, %165, %cst_77 [1] : vector<5x5xf32> to vector<5xf32>
    %167 = vector.shape_cast %166 : vector<5xf32> to vector<5x1xf32>
    %168 = vector.broadcast %167 : vector<5x1xf32> to vector<5x5xf32>
    %169 = arith.subf %165, %168 : vector<5x5xf32>
    %170 = math.exp %169 : vector<5x5xf32>
    %cst_78 = arith.constant dense<0.000000e+00> : vector<5xf32>
    %171 = vector.multi_reduction <add>, %170, %cst_78 [1] : vector<5x5xf32> to vector<5xf32>
    %172 = vector.shape_cast %171 : vector<5xf32> to vector<5x1xf32>
    %173 = tpu.reciprocal %172 {approx = true} : vector<5x1xf32> -> vector<5x1xf32>
    %174 = vector.broadcast %173 : vector<5x1xf32> to vector<5x5xf32>
    %175 = arith.mulf %170, %174 : vector<5x5xf32>
    %cst_79 = arith.constant dense<0.000000e+00> : vector<5x8xf32>
    %176 = tpu.matmul %175, %162, %cst_79 {dimension_numbers = #tpu.dot_dimension_numbers<[1], [0], [0], [1], [0, 0, 1, 1], [], []>} : vector<5x5xf32>, vector<5x8xf32>, vector<5x8xf32> -> vector<5x8xf32>
    %c5_80 = arith.constant 5 : index
    %c16_81 = arith.constant 16 : index
    %177 = vector.load %arg25[%c5_80, %c16_81] : memref<10x32xf32, #tpu.memory_space<vmem>>, vector<5x8xf32>
    tpu.vector_store %arg25[%c5_80, %c16_81], %176 {strides = array<i32>} : memref<10x32xf32, #tpu.memory_space<vmem>>, vector<5x8xf32>,
    %178 = vector.extract_strided_slice %51 {offsets = [5, 24], sizes = [5, 8], strides = [1, 1]} : vector<10x96xf32> to vector<5x8xf32>
    %179 = vector.extract_strided_slice %51 {offsets = [5, 56], sizes = [5, 8], strides = [1, 1]} : vector<10x96xf32> to vector<5x8xf32>
    %180 = vector.extract_strided_slice %51 {offsets = [5, 88], sizes = [5, 8], strides = [1, 1]} : vector<10x96xf32> to vector<5x8xf32>
    %cst_82 = arith.constant dense<0.000000e+00> : vector<5x5xf32>
    %181 = tpu.matmul %178, %179, %cst_82 {dimension_numbers = #tpu.dot_dimension_numbers<[1], [1], [0], [0], [0, 0, 1, 0], [], []>} : vector<5x8xf32>, vector<5x8xf32>, vector<5x5xf32> -> vector<5x5xf32>
    %cst_83 = arith.constant 0.353553385 : f32
    %182 = vector.broadcast %cst_83 : f32 to vector<5x5xf32>
    %183 = arith.mulf %181, %182 : vector<5x5xf32>
    %cst_84 = arith.constant dense<0xFF800000> : vector<5xf32>
    %184 = vector.multi_reduction <maximumf>, %183, %cst_84 [1] : vector<5x5xf32> to vector<5xf32>
    %185 = vector.shape_cast %184 : vector<5xf32> to vector<5x1xf32>
    %186 = vector.broadcast %185 : vector<5x1xf32> to vector<5x5xf32>
    %187 = arith.subf %183, %186 : vector<5x5xf32>
    %188 = math.exp %187 : vector<5x5xf32>
    %cst_85 = arith.constant dense<0.000000e+00> : vector<5xf32>
    %189 = vector.multi_reduction <add>, %188, %cst_85 [1] : vector<5x5xf32> to vector<5xf32>
    %190 = vector.shape_cast %189 : vector<5xf32> to vector<5x1xf32>
    %191 = tpu.reciprocal %190 {approx = true} : vector<5x1xf32> -> vector<5x1xf32>
    %192 = vector.broadcast %191 : vector<5x1xf32> to vector<5x5xf32>
    %193 = arith.mulf %188, %192 : vector<5x5xf32>
    %cst_86 = arith.constant dense<0.000000e+00> : vector<5x8xf32>
    %194 = tpu.matmul %193, %180, %cst_86 {dimension_numbers = #tpu.dot_dimension_numbers<[1], [0], [0], [1], [0, 0, 1, 1], [], []>} : vector<5x5xf32>, vector<5x8xf32>, vector<5x8xf32> -> vector<5x8xf32>
    %c5_87 = arith.constant 5 : index
    %c24_88 = arith.constant 24 : index
    %195 = vector.load %arg25[%c5_87, %c24_88] : memref<10x32xf32, #tpu.memory_space<vmem>>, vector<5x8xf32>
    tpu.vector_store %arg25[%c5_87, %c24_88], %194 {strides = array<i32>} : memref<10x32xf32, #tpu.memory_space<vmem>>, vector<5x8xf32>,
    %c0_89 = arith.constant 0 : index
    %c0_90 = arith.constant 0 : index
    %196 = vector.load %arg25[%c0_89, %c0_90] : memref<10x32xf32, #tpu.memory_space<vmem>>, vector<10x32xf32>
    %c0_91 = arith.constant 0 : index
    %c0_92 = arith.constant 0 : index
    %c0_93 = arith.constant 0 : index
    %197 = vector.load %arg11[%c0_91, %c0_92, %c0_93] : memref<2x32x32xf32, #tpu.memory_space<vmem>>, vector<1x32x32xf32>
    %198 = vector.shape_cast %197 : vector<1x32x32xf32> to vector<32x32xf32>
    %cst_94 = arith.constant dense<0.000000e+00> : vector<10x32xf32>
    %199 = tpu.matmul %196, %198, %cst_94 {dimension_numbers = #tpu.dot_dimension_numbers<[1], [0], [0], [1], [0, 0, 1, 1], [], []>} : vector<10x32xf32>, vector<32x32xf32>, vector<10x32xf32> -> vector<10x32xf32>
    %200 = arith.addf %18, %199 : vector<10x32xf32>
    %c0_95 = arith.constant 0 : index
    %c0_96 = arith.constant 0 : index
    %c0_97 = arith.constant 0 : index
    %201 = vector.load %arg12[%c0_95, %c0_96, %c0_97] : memref<2x1x32xf32, #tpu.memory_space<vmem>>, vector<1x1x32xf32>
    %202 = vector.shape_cast %201 : vector<1x1x32xf32> to vector<1x32xf32>
    %203 = vector.broadcast %202 : vector<1x32xf32> to vector<10x32xf32>
    %204 = arith.addf %200, %203 : vector<10x32xf32>
    %c0_98 = arith.constant 0 : index
    %c0_99 = arith.constant 0 : index
    %c0_100 = arith.constant 0 : index
    %205 = vector.load %arg13[%c0_98, %c0_99, %c0_100] : memref<2x1x32xf32, #tpu.memory_space<vmem>>, vector<1x1x32xf32>
    %206 = vector.shape_cast %205 : vector<1x1x32xf32> to vector<1x32xf32>
    %c0_101 = arith.constant 0 : index
    %c0_102 = arith.constant 0 : index
    %c0_103 = arith.constant 0 : index
    %207 = vector.load %arg14[%c0_101, %c0_102, %c0_103] : memref<2x1x32xf32, #tpu.memory_space<vmem>>, vector<1x1x32xf32>
    %208 = vector.shape_cast %207 : vector<1x1x32xf32> to vector<1x32xf32>
    %cst_104 = arith.constant dense<0.000000e+00> : vector<10xf32>
    %209 = vector.multi_reduction <add>, %204, %cst_104 [1] : vector<10x32xf32> to vector<10xf32>
    %210 = vector.shape_cast %209 : vector<10xf32> to vector<10x1xf32>
    %cst_105 = arith.constant 3.200000e+01 : f32
    %211 = vector.broadcast %cst_105 : f32 to vector<10x1xf32>
    %212 = arith.divf %210, %211 : vector<10x1xf32>
    %213 = vector.broadcast %212 : vector<10x1xf32> to vector<10x32xf32>
    %214 = arith.subf %204, %213 : vector<10x32xf32>
    %215 = arith.mulf %214, %214 : vector<10x32xf32>
    %cst_106 = arith.constant dense<0.000000e+00> : vector<10xf32>
    %216 = vector.multi_reduction <add>, %215, %cst_106 [1] : vector<10x32xf32> to vector<10xf32>
    %217 = vector.shape_cast %216 : vector<10xf32> to vector<10x1xf32>
    %cst_107 = arith.constant 3.200000e+01 : f32
    %218 = vector.broadcast %cst_107 : f32 to vector<10x1xf32>
    %219 = arith.divf %217, %218 : vector<10x1xf32>
    %220 = vector.broadcast %212 : vector<10x1xf32> to vector<10x32xf32>
    %221 = arith.subf %204, %220 : vector<10x32xf32>
    %cst_108 = arith.constant 9.99999996E-13 : f32
    %222 = vector.broadcast %cst_108 : f32 to vector<10x1xf32>
    %223 = arith.addf %219, %222 : vector<10x1xf32>
    %224 = math.rsqrt %223 : vector<10x1xf32>
    %225 = vector.broadcast %224 : vector<10x1xf32> to vector<10x32xf32>
    %226 = arith.mulf %221, %225 : vector<10x32xf32>
    %227 = vector.broadcast %206 : vector<1x32xf32> to vector<10x32xf32>
    %228 = arith.mulf %226, %227 : vector<10x32xf32>
    %229 = vector.broadcast %208 : vector<1x32xf32> to vector<10x32xf32>
    %230 = arith.addf %228, %229 : vector<10x32xf32>
    %c0_109 = arith.constant 0 : index
    %c0_110 = arith.constant 0 : index
    %c0_111 = arith.constant 0 : index
    %231 = vector.load %arg15[%c0_109, %c0_110, %c0_111] : memref<2x32x64xf32, #tpu.memory_space<vmem>>, vector<1x32x64xf32>
    %232 = vector.shape_cast %231 : vector<1x32x64xf32> to vector<32x64xf32>
    %cst_112 = arith.constant dense<0.000000e+00> : vector<10x64xf32>
    %233 = tpu.matmul %230, %232, %cst_112 {dimension_numbers = #tpu.dot_dimension_numbers<[1], [0], [0], [1], [0, 0, 1, 1], [], []>} : vector<10x32xf32>, vector<32x64xf32>, vector<10x64xf32> -> vector<10x64xf32>
    %c0_113 = arith.constant 0 : index
    %c0_114 = arith.constant 0 : index
    %c0_115 = arith.constant 0 : index
    %234 = vector.load %arg16[%c0_113, %c0_114, %c0_115] : memref<2x1x64xf32, #tpu.memory_space<vmem>>, vector<1x1x64xf32>
    %235 = vector.shape_cast %234 : vector<1x1x64xf32> to vector<1x64xf32>
    %236 = vector.broadcast %235 : vector<1x64xf32> to vector<10x64xf32>
    %237 = arith.addf %233, %236 : vector<10x64xf32>
    %cst_116 = arith.constant 5.000000e-01 : f32
    %238 = vector.broadcast %cst_116 : f32 to vector<10x64xf32>
    %239 = arith.mulf %238, %237 : vector<10x64xf32>
    %cst_117 = arith.constant 0.707106769 : f32
    %240 = vector.broadcast %cst_117 : f32 to vector<10x64xf32>
    %241 = arith.mulf %237, %240 : vector<10x64xf32>
    %242 = math.erf %241 : vector<10x64xf32>
    %cst_118 = arith.constant 1.000000e+00 : f32
    %243 = vector.broadcast %cst_118 : f32 to vector<10x64xf32>
    %244 = arith.addf %243, %242 : vector<10x64xf32>
    %245 = arith.mulf %239, %244 : vector<10x64xf32>
    %c0_119 = arith.constant 0 : index
    %c0_120 = arith.constant 0 : index
    %c0_121 = arith.constant 0 : index
    %246 = vector.load %arg17[%c0_119, %c0_120, %c0_121] : memref<2x64x32xf32, #tpu.memory_space<vmem>>, vector<1x64x32xf32>
    %247 = vector.shape_cast %246 : vector<1x64x32xf32> to vector<64x32xf32>
    %cst_122 = arith.constant dense<0.000000e+00> : vector<10x32xf32>
    %248 = tpu.matmul %245, %247, %cst_122 {dimension_numbers = #tpu.dot_dimension_numbers<[1], [0], [0], [1], [0, 0, 1, 1], [], []>} : vector<10x64xf32>, vector<64x32xf32>, vector<10x32xf32> -> vector<10x32xf32>
    %249 = arith.addf %204, %248 : vector<10x32xf32>
    %c0_123 = arith.constant 0 : index
    %c0_124 = arith.constant 0 : index
    %c0_125 = arith.constant 0 : index
    %250 = vector.load %arg18[%c0_123, %c0_124, %c0_125] : memref<2x1x32xf32, #tpu.memory_space<vmem>>, vector<1x1x32xf32>
    %251 = vector.shape_cast %250 : vector<1x1x32xf32> to vector<1x32xf32>
    %252 = vector.broadcast %251 : vector<1x32xf32> to vector<10x32xf32>
    %253 = arith.addf %249, %252 : vector<10x32xf32>
    %c1_126 = arith.constant 1 : index
    %c0_127 = arith.constant 0 : index
    %c0_128 = arith.constant 0 : index
    %254 = vector.load %arg7[%c1_126, %c0_127, %c0_128] : memref<2x1x32xf32, #tpu.memory_space<vmem>>, vector<1x1x32xf32>
    %255 = vector.shape_cast %254 : vector<1x1x32xf32> to vector<1x32xf32>
    %c1_129 = arith.constant 1 : index
    %c0_130 = arith.constant 0 : index
    %c0_131 = arith.constant 0 : index
    %256 = vector.load %arg8[%c1_129, %c0_130, %c0_131] : memref<2x1x32xf32, #tpu.memory_space<vmem>>, vector<1x1x32xf32>
    %257 = vector.shape_cast %256 : vector<1x1x32xf32> to vector<1x32xf32>
    %cst_132 = arith.constant dense<0.000000e+00> : vector<10xf32>
    %258 = vector.multi_reduction <add>, %253, %cst_132 [1] : vector<10x32xf32> to vector<10xf32>
    %259 = vector.shape_cast %258 : vector<10xf32> to vector<10x1xf32>
    %cst_133 = arith.constant 3.200000e+01 : f32
    %260 = vector.broadcast %cst_133 : f32 to vector<10x1xf32>
    %261 = arith.divf %259, %260 : vector<10x1xf32>
    %262 = vector.broadcast %261 : vector<10x1xf32> to vector<10x32xf32>
    %263 = arith.subf %253, %262 : vector<10x32xf32>
    %264 = arith.mulf %263, %263 : vector<10x32xf32>
    %cst_134 = arith.constant dense<0.000000e+00> : vector<10xf32>
    %265 = vector.multi_reduction <add>, %264, %cst_134 [1] : vector<10x32xf32> to vector<10xf32>
    %266 = vector.shape_cast %265 : vector<10xf32> to vector<10x1xf32>
    %cst_135 = arith.constant 3.200000e+01 : f32
    %267 = vector.broadcast %cst_135 : f32 to vector<10x1xf32>
    %268 = arith.divf %266, %267 : vector<10x1xf32>
    %269 = vector.broadcast %261 : vector<10x1xf32> to vector<10x32xf32>
    %270 = arith.subf %253, %269 : vector<10x32xf32>
    %cst_136 = arith.constant 9.99999996E-13 : f32
    %271 = vector.broadcast %cst_136 : f32 to vector<10x1xf32>
    %272 = arith.addf %268, %271 : vector<10x1xf32>
    %273 = math.rsqrt %272 : vector<10x1xf32>
    %274 = vector.broadcast %273 : vector<10x1xf32> to vector<10x32xf32>
    %275 = arith.mulf %270, %274 : vector<10x32xf32>
    %276 = vector.broadcast %255 : vector<1x32xf32> to vector<10x32xf32>
    %277 = arith.mulf %275, %276 : vector<10x32xf32>
    %278 = vector.broadcast %257 : vector<1x32xf32> to vector<10x32xf32>
    %279 = arith.addf %277, %278 : vector<10x32xf32>
    %c1_137 = arith.constant 1 : index
    %c0_138 = arith.constant 0 : index
    %c0_139 = arith.constant 0 : index
    %280 = vector.load %arg9[%c1_137, %c0_138, %c0_139] : memref<2x32x96xf32, #tpu.memory_space<vmem>>, vector<1x32x96xf32>
    %281 = vector.shape_cast %280 : vector<1x32x96xf32> to vector<32x96xf32>
    %cst_140 = arith.constant dense<0.000000e+00> : vector<10x96xf32>
    %282 = tpu.matmul %279, %281, %cst_140 {dimension_numbers = #tpu.dot_dimension_numbers<[1], [0], [0], [1], [0, 0, 1, 1], [], []>} : vector<10x32xf32>, vector<32x96xf32>, vector<10x96xf32> -> vector<10x96xf32>
    %c1_141 = arith.constant 1 : index
    %c0_142 = arith.constant 0 : index
    %c0_143 = arith.constant 0 : index
    %283 = vector.load %arg10[%c1_141, %c0_142, %c0_143] : memref<2x1x96xf32, #tpu.memory_space<vmem>>, vector<1x1x96xf32>
    %284 = vector.shape_cast %283 : vector<1x1x96xf32> to vector<1x96xf32>
    %285 = vector.broadcast %284 : vector<1x96xf32> to vector<10x96xf32>
    %286 = arith.addf %282, %285 : vector<10x96xf32>
    %287 = vector.extract_strided_slice %286 {offsets = [0, 0], sizes = [5, 8], strides = [1, 1]} : vector<10x96xf32> to vector<5x8xf32>
    %288 = vector.extract_strided_slice %286 {offsets = [0, 32], sizes = [5, 8], strides = [1, 1]} : vector<10x96xf32> to vector<5x8xf32>
    %289 = vector.extract_strided_slice %286 {offsets = [0, 64], sizes = [5, 8], strides = [1, 1]} : vector<10x96xf32> to vector<5x8xf32>
    %cst_144 = arith.constant dense<0.000000e+00> : vector<5x5xf32>
    %290 = tpu.matmul %287, %288, %cst_144 {dimension_numbers = #tpu.dot_dimension_numbers<[1], [1], [0], [0], [0, 0, 1, 0], [], []>} : vector<5x8xf32>, vector<5x8xf32>, vector<5x5xf32> -> vector<5x5xf32>
    %cst_145 = arith.constant 0.353553385 : f32
    %291 = vector.broadcast %cst_145 : f32 to vector<5x5xf32>
    %292 = arith.mulf %290, %291 : vector<5x5xf32>
    %cst_146 = arith.constant dense<0xFF800000> : vector<5xf32>
    %293 = vector.multi_reduction <maximumf>, %292, %cst_146 [1] : vector<5x5xf32> to vector<5xf32>
    %294 = vector.shape_cast %293 : vector<5xf32> to vector<5x1xf32>
    %295 = vector.broadcast %294 : vector<5x1xf32> to vector<5x5xf32>
    %296 = arith.subf %292, %295 : vector<5x5xf32>
    %297 = math.exp %296 : vector<5x5xf32>
    %cst_147 = arith.constant dense<0.000000e+00> : vector<5xf32>
    %298 = vector.multi_reduction <add>, %297, %cst_147 [1] : vector<5x5xf32> to vector<5xf32>
    %299 = vector.shape_cast %298 : vector<5xf32> to vector<5x1xf32>
    %300 = tpu.reciprocal %299 {approx = true} : vector<5x1xf32> -> vector<5x1xf32>
    %301 = vector.broadcast %300 : vector<5x1xf32> to vector<5x5xf32>
    %302 = arith.mulf %297, %301 : vector<5x5xf32>
    %cst_148 = arith.constant dense<0.000000e+00> : vector<5x8xf32>
    %303 = tpu.matmul %302, %289, %cst_148 {dimension_numbers = #tpu.dot_dimension_numbers<[1], [0], [0], [1], [0, 0, 1, 1], [], []>} : vector<5x5xf32>, vector<5x8xf32>, vector<5x8xf32> -> vector<5x8xf32>
    %c0_149 = arith.constant 0 : index
    %c0_150 = arith.constant 0 : index
    %304 = vector.load %arg25[%c0_149, %c0_150] : memref<10x32xf32, #tpu.memory_space<vmem>>, vector<5x8xf32>
    tpu.vector_store %arg25[%c0_149, %c0_150], %303 {strides = array<i32>} : memref<10x32xf32, #tpu.memory_space<vmem>>, vector<5x8xf32>,
    %305 = vector.extract_strided_slice %286 {offsets = [0, 8], sizes = [5, 8], strides = [1, 1]} : vector<10x96xf32> to vector<5x8xf32>
    %306 = vector.extract_strided_slice %286 {offsets = [0, 40], sizes = [5, 8], strides = [1, 1]} : vector<10x96xf32> to vector<5x8xf32>
    %307 = vector.extract_strided_slice %286 {offsets = [0, 72], sizes = [5, 8], strides = [1, 1]} : vector<10x96xf32> to vector<5x8xf32>
    %cst_151 = arith.constant dense<0.000000e+00> : vector<5x5xf32>
    %308 = tpu.matmul %305, %306, %cst_151 {dimension_numbers = #tpu.dot_dimension_numbers<[1], [1], [0], [0], [0, 0, 1, 0], [], []>} : vector<5x8xf32>, vector<5x8xf32>, vector<5x5xf32> -> vector<5x5xf32>
    %cst_152 = arith.constant 0.353553385 : f32
    %309 = vector.broadcast %cst_152 : f32 to vector<5x5xf32>
    %310 = arith.mulf %308, %309 : vector<5x5xf32>
    %cst_153 = arith.constant dense<0xFF800000> : vector<5xf32>
    %311 = vector.multi_reduction <maximumf>, %310, %cst_153 [1] : vector<5x5xf32> to vector<5xf32>
    %312 = vector.shape_cast %311 : vector<5xf32> to vector<5x1xf32>
    %313 = vector.broadcast %312 : vector<5x1xf32> to vector<5x5xf32>
    %314 = arith.subf %310, %313 : vector<5x5xf32>
    %315 = math.exp %314 : vector<5x5xf32>
    %cst_154 = arith.constant dense<0.000000e+00> : vector<5xf32>
    %316 = vector.multi_reduction <add>, %315, %cst_154 [1] : vector<5x5xf32> to vector<5xf32>
    %317 = vector.shape_cast %316 : vector<5xf32> to vector<5x1xf32>
    %318 = tpu.reciprocal %317 {approx = true} : vector<5x1xf32> -> vector<5x1xf32>
    %319 = vector.broadcast %318 : vector<5x1xf32> to vector<5x5xf32>
    %320 = arith.mulf %315, %319 : vector<5x5xf32>
    %cst_155 = arith.constant dense<0.000000e+00> : vector<5x8xf32>
    %321 = tpu.matmul %320, %307, %cst_155 {dimension_numbers = #tpu.dot_dimension_numbers<[1], [0], [0], [1], [0, 0, 1, 1], [], []>} : vector<5x5xf32>, vector<5x8xf32>, vector<5x8xf32> -> vector<5x8xf32>
    %c0_156 = arith.constant 0 : index
    %c8_157 = arith.constant 8 : index
    %322 = vector.load %arg25[%c0_156, %c8_157] : memref<10x32xf32, #tpu.memory_space<vmem>>, vector<5x8xf32>
    tpu.vector_store %arg25[%c0_156, %c8_157], %321 {strides = array<i32>} : memref<10x32xf32, #tpu.memory_space<vmem>>, vector<5x8xf32>,
    %323 = vector.extract_strided_slice %286 {offsets = [0, 16], sizes = [5, 8], strides = [1, 1]} : vector<10x96xf32> to vector<5x8xf32>
    %324 = vector.extract_strided_slice %286 {offsets = [0, 48], sizes = [5, 8], strides = [1, 1]} : vector<10x96xf32> to vector<5x8xf32>
    %325 = vector.extract_strided_slice %286 {offsets = [0, 80], sizes = [5, 8], strides = [1, 1]} : vector<10x96xf32> to vector<5x8xf32>
    %cst_158 = arith.constant dense<0.000000e+00> : vector<5x5xf32>
    %326 = tpu.matmul %323, %324, %cst_158 {dimension_numbers = #tpu.dot_dimension_numbers<[1], [1], [0], [0], [0, 0, 1, 0], [], []>} : vector<5x8xf32>, vector<5x8xf32>, vector<5x5xf32> -> vector<5x5xf32>
    %cst_159 = arith.constant 0.353553385 : f32
    %327 = vector.broadcast %cst_159 : f32 to vector<5x5xf32>
    %328 = arith.mulf %326, %327 : vector<5x5xf32>
    %cst_160 = arith.constant dense<0xFF800000> : vector<5xf32>
    %329 = vector.multi_reduction <maximumf>, %328, %cst_160 [1] : vector<5x5xf32> to vector<5xf32>
    %330 = vector.shape_cast %329 : vector<5xf32> to vector<5x1xf32>
    %331 = vector.broadcast %330 : vector<5x1xf32> to vector<5x5xf32>
    %332 = arith.subf %328, %331 : vector<5x5xf32>
    %333 = math.exp %332 : vector<5x5xf32>
    %cst_161 = arith.constant dense<0.000000e+00> : vector<5xf32>
    %334 = vector.multi_reduction <add>, %333, %cst_161 [1] : vector<5x5xf32> to vector<5xf32>
    %335 = vector.shape_cast %334 : vector<5xf32> to vector<5x1xf32>
    %336 = tpu.reciprocal %335 {approx = true} : vector<5x1xf32> -> vector<5x1xf32>
    %337 = vector.broadcast %336 : vector<5x1xf32> to vector<5x5xf32>
    %338 = arith.mulf %333, %337 : vector<5x5xf32>
    %cst_162 = arith.constant dense<0.000000e+00> : vector<5x8xf32>
    %339 = tpu.matmul %338, %325, %cst_162 {dimension_numbers = #tpu.dot_dimension_numbers<[1], [0], [0], [1], [0, 0, 1, 1], [], []>} : vector<5x5xf32>, vector<5x8xf32>, vector<5x8xf32> -> vector<5x8xf32>
    %c0_163 = arith.constant 0 : index
    %c16_164 = arith.constant 16 : index
    %340 = vector.load %arg25[%c0_163, %c16_164] : memref<10x32xf32, #tpu.memory_space<vmem>>, vector<5x8xf32>
    tpu.vector_store %arg25[%c0_163, %c16_164], %339 {strides = array<i32>} : memref<10x32xf32, #tpu.memory_space<vmem>>, vector<5x8xf32>,
    %341 = vector.extract_strided_slice %286 {offsets = [0, 24], sizes = [5, 8], strides = [1, 1]} : vector<10x96xf32> to vector<5x8xf32>
    %342 = vector.extract_strided_slice %286 {offsets = [0, 56], sizes = [5, 8], strides = [1, 1]} : vector<10x96xf32> to vector<5x8xf32>
    %343 = vector.extract_strided_slice %286 {offsets = [0, 88], sizes = [5, 8], strides = [1, 1]} : vector<10x96xf32> to vector<5x8xf32>
    %cst_165 = arith.constant dense<0.000000e+00> : vector<5x5xf32>
    %344 = tpu.matmul %341, %342, %cst_165 {dimension_numbers = #tpu.dot_dimension_numbers<[1], [1], [0], [0], [0, 0, 1, 0], [], []>} : vector<5x8xf32>, vector<5x8xf32>, vector<5x5xf32> -> vector<5x5xf32>
    %cst_166 = arith.constant 0.353553385 : f32
    %345 = vector.broadcast %cst_166 : f32 to vector<5x5xf32>
    %346 = arith.mulf %344, %345 : vector<5x5xf32>
    %cst_167 = arith.constant dense<0xFF800000> : vector<5xf32>
    %347 = vector.multi_reduction <maximumf>, %346, %cst_167 [1] : vector<5x5xf32> to vector<5xf32>
    %348 = vector.shape_cast %347 : vector<5xf32> to vector<5x1xf32>
    %349 = vector.broadcast %348 : vector<5x1xf32> to vector<5x5xf32>
    %350 = arith.subf %346, %349 : vector<5x5xf32>
    %351 = math.exp %350 : vector<5x5xf32>
    %cst_168 = arith.constant dense<0.000000e+00> : vector<5xf32>
    %352 = vector.multi_reduction <add>, %351, %cst_168 [1] : vector<5x5xf32> to vector<5xf32>
    %353 = vector.shape_cast %352 : vector<5xf32> to vector<5x1xf32>
    %354 = tpu.reciprocal %353 {approx = true} : vector<5x1xf32> -> vector<5x1xf32>
    %355 = vector.broadcast %354 : vector<5x1xf32> to vector<5x5xf32>
    %356 = arith.mulf %351, %355 : vector<5x5xf32>
    %cst_169 = arith.constant dense<0.000000e+00> : vector<5x8xf32>
    %357 = tpu.matmul %356, %343, %cst_169 {dimension_numbers = #tpu.dot_dimension_numbers<[1], [0], [0], [1], [0, 0, 1, 1], [], []>} : vector<5x5xf32>, vector<5x8xf32>, vector<5x8xf32> -> vector<5x8xf32>
    %c0_170 = arith.constant 0 : index
    %c24_171 = arith.constant 24 : index
    %358 = vector.load %arg25[%c0_170, %c24_171] : memref<10x32xf32, #tpu.memory_space<vmem>>, vector<5x8xf32>
    tpu.vector_store %arg25[%c0_170, %c24_171], %357 {strides = array<i32>} : memref<10x32xf32, #tpu.memory_space<vmem>>, vector<5x8xf32>,
    %359 = vector.extract_strided_slice %286 {offsets = [5, 0], sizes = [5, 8], strides = [1, 1]} : vector<10x96xf32> to vector<5x8xf32>
    %360 = vector.extract_strided_slice %286 {offsets = [5, 32], sizes = [5, 8], strides = [1, 1]} : vector<10x96xf32> to vector<5x8xf32>
    %361 = vector.extract_strided_slice %286 {offsets = [5, 64], sizes = [5, 8], strides = [1, 1]} : vector<10x96xf32> to vector<5x8xf32>
    %cst_172 = arith.constant dense<0.000000e+00> : vector<5x5xf32>
    %362 = tpu.matmul %359, %360, %cst_172 {dimension_numbers = #tpu.dot_dimension_numbers<[1], [1], [0], [0], [0, 0, 1, 0], [], []>} : vector<5x8xf32>, vector<5x8xf32>, vector<5x5xf32> -> vector<5x5xf32>
    %cst_173 = arith.constant 0.353553385 : f32
    %363 = vector.broadcast %cst_173 : f32 to vector<5x5xf32>
    %364 = arith.mulf %362, %363 : vector<5x5xf32>
    %cst_174 = arith.constant dense<0xFF800000> : vector<5xf32>
    %365 = vector.multi_reduction <maximumf>, %364, %cst_174 [1] : vector<5x5xf32> to vector<5xf32>
    %366 = vector.shape_cast %365 : vector<5xf32> to vector<5x1xf32>
    %367 = vector.broadcast %366 : vector<5x1xf32> to vector<5x5xf32>
    %368 = arith.subf %364, %367 : vector<5x5xf32>
    %369 = math.exp %368 : vector<5x5xf32>
    %cst_175 = arith.constant dense<0.000000e+00> : vector<5xf32>
    %370 = vector.multi_reduction <add>, %369, %cst_175 [1] : vector<5x5xf32> to vector<5xf32>
    %371 = vector.shape_cast %370 : vector<5xf32> to vector<5x1xf32>
    %372 = tpu.reciprocal %371 {approx = true} : vector<5x1xf32> -> vector<5x1xf32>
    %373 = vector.broadcast %372 : vector<5x1xf32> to vector<5x5xf32>
    %374 = arith.mulf %369, %373 : vector<5x5xf32>
    %cst_176 = arith.constant dense<0.000000e+00> : vector<5x8xf32>
    %375 = tpu.matmul %374, %361, %cst_176 {dimension_numbers = #tpu.dot_dimension_numbers<[1], [0], [0], [1], [0, 0, 1, 1], [], []>} : vector<5x5xf32>, vector<5x8xf32>, vector<5x8xf32> -> vector<5x8xf32>
    %c5_177 = arith.constant 5 : index
    %c0_178 = arith.constant 0 : index
    %376 = vector.load %arg25[%c5_177, %c0_178] : memref<10x32xf32, #tpu.memory_space<vmem>>, vector<5x8xf32>
    tpu.vector_store %arg25[%c5_177, %c0_178], %375 {strides = array<i32>} : memref<10x32xf32, #tpu.memory_space<vmem>>, vector<5x8xf32>,
    %377 = vector.extract_strided_slice %286 {offsets = [5, 8], sizes = [5, 8], strides = [1, 1]} : vector<10x96xf32> to vector<5x8xf32>
    %378 = vector.extract_strided_slice %286 {offsets = [5, 40], sizes = [5, 8], strides = [1, 1]} : vector<10x96xf32> to vector<5x8xf32>
    %379 = vector.extract_strided_slice %286 {offsets = [5, 72], sizes = [5, 8], strides = [1, 1]} : vector<10x96xf32> to vector<5x8xf32>
    %cst_179 = arith.constant dense<0.000000e+00> : vector<5x5xf32>
    %380 = tpu.matmul %377, %378, %cst_179 {dimension_numbers = #tpu.dot_dimension_numbers<[1], [1], [0], [0], [0, 0, 1, 0], [], []>} : vector<5x8xf32>, vector<5x8xf32>, vector<5x5xf32> -> vector<5x5xf32>
    %cst_180 = arith.constant 0.353553385 : f32
    %381 = vector.broadcast %cst_180 : f32 to vector<5x5xf32>
    %382 = arith.mulf %380, %381 : vector<5x5xf32>
    %cst_181 = arith.constant dense<0xFF800000> : vector<5xf32>
    %383 = vector.multi_reduction <maximumf>, %382, %cst_181 [1] : vector<5x5xf32> to vector<5xf32>
    %384 = vector.shape_cast %383 : vector<5xf32> to vector<5x1xf32>
    %385 = vector.broadcast %384 : vector<5x1xf32> to vector<5x5xf32>
    %386 = arith.subf %382, %385 : vector<5x5xf32>
    %387 = math.exp %386 : vector<5x5xf32>
    %cst_182 = arith.constant dense<0.000000e+00> : vector<5xf32>
    %388 = vector.multi_reduction <add>, %387, %cst_182 [1] : vector<5x5xf32> to vector<5xf32>
    %389 = vector.shape_cast %388 : vector<5xf32> to vector<5x1xf32>
    %390 = tpu.reciprocal %389 {approx = true} : vector<5x1xf32> -> vector<5x1xf32>
    %391 = vector.broadcast %390 : vector<5x1xf32> to vector<5x5xf32>
    %392 = arith.mulf %387, %391 : vector<5x5xf32>
    %cst_183 = arith.constant dense<0.000000e+00> : vector<5x8xf32>
    %393 = tpu.matmul %392, %379, %cst_183 {dimension_numbers = #tpu.dot_dimension_numbers<[1], [0], [0], [1], [0, 0, 1, 1], [], []>} : vector<5x5xf32>, vector<5x8xf32>, vector<5x8xf32> -> vector<5x8xf32>
    %c5_184 = arith.constant 5 : index
    %c8_185 = arith.constant 8 : index
    %394 = vector.load %arg25[%c5_184, %c8_185] : memref<10x32xf32, #tpu.memory_space<vmem>>, vector<5x8xf32>
    tpu.vector_store %arg25[%c5_184, %c8_185], %393 {strides = array<i32>} : memref<10x32xf32, #tpu.memory_space<vmem>>, vector<5x8xf32>,
    %395 = vector.extract_strided_slice %286 {offsets = [5, 16], sizes = [5, 8], strides = [1, 1]} : vector<10x96xf32> to vector<5x8xf32>
    %396 = vector.extract_strided_slice %286 {offsets = [5, 48], sizes = [5, 8], strides = [1, 1]} : vector<10x96xf32> to vector<5x8xf32>
    %397 = vector.extract_strided_slice %286 {offsets = [5, 80], sizes = [5, 8], strides = [1, 1]} : vector<10x96xf32> to vector<5x8xf32>
    %cst_186 = arith.constant dense<0.000000e+00> : vector<5x5xf32>
    %398 = tpu.matmul %395, %396, %cst_186 {dimension_numbers = #tpu.dot_dimension_numbers<[1], [1], [0], [0], [0, 0, 1, 0], [], []>} : vector<5x8xf32>, vector<5x8xf32>, vector<5x5xf32> -> vector<5x5xf32>
    %cst_187 = arith.constant 0.353553385 : f32
    %399 = vector.broadcast %cst_187 : f32 to vector<5x5xf32>
    %400 = arith.mulf %398, %399 : vector<5x5xf32>
    %cst_188 = arith.constant dense<0xFF800000> : vector<5xf32>
    %401 = vector.multi_reduction <maximumf>, %400, %cst_188 [1] : vector<5x5xf32> to vector<5xf32>
    %402 = vector.shape_cast %401 : vector<5xf32> to vector<5x1xf32>
    %403 = vector.broadcast %402 : vector<5x1xf32> to vector<5x5xf32>
    %404 = arith.subf %400, %403 : vector<5x5xf32>
    %405 = math.exp %404 : vector<5x5xf32>
    %cst_189 = arith.constant dense<0.000000e+00> : vector<5xf32>
    %406 = vector.multi_reduction <add>, %405, %cst_189 [1] : vector<5x5xf32> to vector<5xf32>
    %407 = vector.shape_cast %406 : vector<5xf32> to vector<5x1xf32>
    %408 = tpu.reciprocal %407 {approx = true} : vector<5x1xf32> -> vector<5x1xf32>
    %409 = vector.broadcast %408 : vector<5x1xf32> to vector<5x5xf32>
    %410 = arith.mulf %405, %409 : vector<5x5xf32>
    %cst_190 = arith.constant dense<0.000000e+00> : vector<5x8xf32>
    %411 = tpu.matmul %410, %397, %cst_190 {dimension_numbers = #tpu.dot_dimension_numbers<[1], [0], [0], [1], [0, 0, 1, 1], [], []>} : vector<5x5xf32>, vector<5x8xf32>, vector<5x8xf32> -> vector<5x8xf32>
    %c5_191 = arith.constant 5 : index
    %c16_192 = arith.constant 16 : index
    %412 = vector.load %arg25[%c5_191, %c16_192] : memref<10x32xf32, #tpu.memory_space<vmem>>, vector<5x8xf32>
    tpu.vector_store %arg25[%c5_191, %c16_192], %411 {strides = array<i32>} : memref<10x32xf32, #tpu.memory_space<vmem>>, vector<5x8xf32>,
    %413 = vector.extract_strided_slice %286 {offsets = [5, 24], sizes = [5, 8], strides = [1, 1]} : vector<10x96xf32> to vector<5x8xf32>
    %414 = vector.extract_strided_slice %286 {offsets = [5, 56], sizes = [5, 8], strides = [1, 1]} : vector<10x96xf32> to vector<5x8xf32>
    %415 = vector.extract_strided_slice %286 {offsets = [5, 88], sizes = [5, 8], strides = [1, 1]} : vector<10x96xf32> to vector<5x8xf32>
    %cst_193 = arith.constant dense<0.000000e+00> : vector<5x5xf32>
    %416 = tpu.matmul %413, %414, %cst_193 {dimension_numbers = #tpu.dot_dimension_numbers<[1], [1], [0], [0], [0, 0, 1, 0], [], []>} : vector<5x8xf32>, vector<5x8xf32>, vector<5x5xf32> -> vector<5x5xf32>
    %cst_194 = arith.constant 0.353553385 : f32
    %417 = vector.broadcast %cst_194 : f32 to vector<5x5xf32>
    %418 = arith.mulf %416, %417 : vector<5x5xf32>
    %cst_195 = arith.constant dense<0xFF800000> : vector<5xf32>
    %419 = vector.multi_reduction <maximumf>, %418, %cst_195 [1] : vector<5x5xf32> to vector<5xf32>
    %420 = vector.shape_cast %419 : vector<5xf32> to vector<5x1xf32>
    %421 = vector.broadcast %420 : vector<5x1xf32> to vector<5x5xf32>
    %422 = arith.subf %418, %421 : vector<5x5xf32>
    %423 = math.exp %422 : vector<5x5xf32>
    %cst_196 = arith.constant dense<0.000000e+00> : vector<5xf32>
    %424 = vector.multi_reduction <add>, %423, %cst_196 [1] : vector<5x5xf32> to vector<5xf32>
    %425 = vector.shape_cast %424 : vector<5xf32> to vector<5x1xf32>
    %426 = tpu.reciprocal %425 {approx = true} : vector<5x1xf32> -> vector<5x1xf32>
    %427 = vector.broadcast %426 : vector<5x1xf32> to vector<5x5xf32>
    %428 = arith.mulf %423, %427 : vector<5x5xf32>
    %cst_197 = arith.constant dense<0.000000e+00> : vector<5x8xf32>
    %429 = tpu.matmul %428, %415, %cst_197 {dimension_numbers = #tpu.dot_dimension_numbers<[1], [0], [0], [1], [0, 0, 1, 1], [], []>} : vector<5x5xf32>, vector<5x8xf32>, vector<5x8xf32> -> vector<5x8xf32>
    %c5_198 = arith.constant 5 : index
    %c24_199 = arith.constant 24 : index
    %430 = vector.load %arg25[%c5_198, %c24_199] : memref<10x32xf32, #tpu.memory_space<vmem>>, vector<5x8xf32>
    tpu.vector_store %arg25[%c5_198, %c24_199], %429 {strides = array<i32>} : memref<10x32xf32, #tpu.memory_space<vmem>>, vector<5x8xf32>,
    %c0_200 = arith.constant 0 : index
    %c0_201 = arith.constant 0 : index
    %431 = vector.load %arg25[%c0_200, %c0_201] : memref<10x32xf32, #tpu.memory_space<vmem>>, vector<10x32xf32>
    %c1_202 = arith.constant 1 : index
    %c0_203 = arith.constant 0 : index
    %c0_204 = arith.constant 0 : index
    %432 = vector.load %arg11[%c1_202, %c0_203, %c0_204] : memref<2x32x32xf32, #tpu.memory_space<vmem>>, vector<1x32x32xf32>
    %433 = vector.shape_cast %432 : vector<1x32x32xf32> to vector<32x32xf32>
    %cst_205 = arith.constant dense<0.000000e+00> : vector<10x32xf32>
    %434 = tpu.matmul %431, %433, %cst_205 {dimension_numbers = #tpu.dot_dimension_numbers<[1], [0], [0], [1], [0, 0, 1, 1], [], []>} : vector<10x32xf32>, vector<32x32xf32>, vector<10x32xf32> -> vector<10x32xf32>
    %435 = arith.addf %253, %434 : vector<10x32xf32>
    %c1_206 = arith.constant 1 : index
    %c0_207 = arith.constant 0 : index
    %c0_208 = arith.constant 0 : index
    %436 = vector.load %arg12[%c1_206, %c0_207, %c0_208] : memref<2x1x32xf32, #tpu.memory_space<vmem>>, vector<1x1x32xf32>
    %437 = vector.shape_cast %436 : vector<1x1x32xf32> to vector<1x32xf32>
    %438 = vector.broadcast %437 : vector<1x32xf32> to vector<10x32xf32>
    %439 = arith.addf %435, %438 : vector<10x32xf32>
    %c1_209 = arith.constant 1 : index
    %c0_210 = arith.constant 0 : index
    %c0_211 = arith.constant 0 : index
    %440 = vector.load %arg13[%c1_209, %c0_210, %c0_211] : memref<2x1x32xf32, #tpu.memory_space<vmem>>, vector<1x1x32xf32>
    %441 = vector.shape_cast %440 : vector<1x1x32xf32> to vector<1x32xf32>
    %c1_212 = arith.constant 1 : index
    %c0_213 = arith.constant 0 : index
    %c0_214 = arith.constant 0 : index
    %442 = vector.load %arg14[%c1_212, %c0_213, %c0_214] : memref<2x1x32xf32, #tpu.memory_space<vmem>>, vector<1x1x32xf32>
    %443 = vector.shape_cast %442 : vector<1x1x32xf32> to vector<1x32xf32>
    %cst_215 = arith.constant dense<0.000000e+00> : vector<10xf32>
    %444 = vector.multi_reduction <add>, %439, %cst_215 [1] : vector<10x32xf32> to vector<10xf32>
    %445 = vector.shape_cast %444 : vector<10xf32> to vector<10x1xf32>
    %cst_216 = arith.constant 3.200000e+01 : f32
    %446 = vector.broadcast %cst_216 : f32 to vector<10x1xf32>
    %447 = arith.divf %445, %446 : vector<10x1xf32>
    %448 = vector.broadcast %447 : vector<10x1xf32> to vector<10x32xf32>
    %449 = arith.subf %439, %448 : vector<10x32xf32>
    %450 = arith.mulf %449, %449 : vector<10x32xf32>
    %cst_217 = arith.constant dense<0.000000e+00> : vector<10xf32>
    %451 = vector.multi_reduction <add>, %450, %cst_217 [1] : vector<10x32xf32> to vector<10xf32>
    %452 = vector.shape_cast %451 : vector<10xf32> to vector<10x1xf32>
    %cst_218 = arith.constant 3.200000e+01 : f32
    %453 = vector.broadcast %cst_218 : f32 to vector<10x1xf32>
    %454 = arith.divf %452, %453 : vector<10x1xf32>
    %455 = vector.broadcast %447 : vector<10x1xf32> to vector<10x32xf32>
    %456 = arith.subf %439, %455 : vector<10x32xf32>
    %cst_219 = arith.constant 9.99999996E-13 : f32
    %457 = vector.broadcast %cst_219 : f32 to vector<10x1xf32>
    %458 = arith.addf %454, %457 : vector<10x1xf32>
    %459 = math.rsqrt %458 : vector<10x1xf32>
    %460 = vector.broadcast %459 : vector<10x1xf32> to vector<10x32xf32>
    %461 = arith.mulf %456, %460 : vector<10x32xf32>
    %462 = vector.broadcast %441 : vector<1x32xf32> to vector<10x32xf32>
    %463 = arith.mulf %461, %462 : vector<10x32xf32>
    %464 = vector.broadcast %443 : vector<1x32xf32> to vector<10x32xf32>
    %465 = arith.addf %463, %464 : vector<10x32xf32>
    %c1_220 = arith.constant 1 : index
    %c0_221 = arith.constant 0 : index
    %c0_222 = arith.constant 0 : index
    %466 = vector.load %arg15[%c1_220, %c0_221, %c0_222] : memref<2x32x64xf32, #tpu.memory_space<vmem>>, vector<1x32x64xf32>
    %467 = vector.shape_cast %466 : vector<1x32x64xf32> to vector<32x64xf32>
    %cst_223 = arith.constant dense<0.000000e+00> : vector<10x64xf32>
    %468 = tpu.matmul %465, %467, %cst_223 {dimension_numbers = #tpu.dot_dimension_numbers<[1], [0], [0], [1], [0, 0, 1, 1], [], []>} : vector<10x32xf32>, vector<32x64xf32>, vector<10x64xf32> -> vector<10x64xf32>
    %c1_224 = arith.constant 1 : index
    %c0_225 = arith.constant 0 : index
    %c0_226 = arith.constant 0 : index
    %469 = vector.load %arg16[%c1_224, %c0_225, %c0_226] : memref<2x1x64xf32, #tpu.memory_space<vmem>>, vector<1x1x64xf32>
    %470 = vector.shape_cast %469 : vector<1x1x64xf32> to vector<1x64xf32>
    %471 = vector.broadcast %470 : vector<1x64xf32> to vector<10x64xf32>
    %472 = arith.addf %468, %471 : vector<10x64xf32>
    %cst_227 = arith.constant 5.000000e-01 : f32
    %473 = vector.broadcast %cst_227 : f32 to vector<10x64xf32>
    %474 = arith.mulf %473, %472 : vector<10x64xf32>
    %cst_228 = arith.constant 0.707106769 : f32
    %475 = vector.broadcast %cst_228 : f32 to vector<10x64xf32>
    %476 = arith.mulf %472, %475 : vector<10x64xf32>
    %477 = math.erf %476 : vector<10x64xf32>
    %cst_229 = arith.constant 1.000000e+00 : f32
    %478 = vector.broadcast %cst_229 : f32 to vector<10x64xf32>
    %479 = arith.addf %478, %477 : vector<10x64xf32>
    %480 = arith.mulf %474, %479 : vector<10x64xf32>
    %c1_230 = arith.constant 1 : index
    %c0_231 = arith.constant 0 : index
    %c0_232 = arith.constant 0 : index
    %481 = vector.load %arg17[%c1_230, %c0_231, %c0_232] : memref<2x64x32xf32, #tpu.memory_space<vmem>>, vector<1x64x32xf32>
    %482 = vector.shape_cast %481 : vector<1x64x32xf32> to vector<64x32xf32>
    %cst_233 = arith.constant dense<0.000000e+00> : vector<10x32xf32>
    %483 = tpu.matmul %480, %482, %cst_233 {dimension_numbers = #tpu.dot_dimension_numbers<[1], [0], [0], [1], [0, 0, 1, 1], [], []>} : vector<10x64xf32>, vector<64x32xf32>, vector<10x32xf32> -> vector<10x32xf32>
    %484 = arith.addf %439, %483 : vector<10x32xf32>
    %c1_234 = arith.constant 1 : index
    %c0_235 = arith.constant 0 : index
    %c0_236 = arith.constant 0 : index
    %485 = vector.load %arg18[%c1_234, %c0_235, %c0_236] : memref<2x1x32xf32, #tpu.memory_space<vmem>>, vector<1x1x32xf32>
    %486 = vector.shape_cast %485 : vector<1x1x32xf32> to vector<1x32xf32>
    %487 = vector.broadcast %486 : vector<1x32xf32> to vector<10x32xf32>
    %488 = arith.addf %484, %487 : vector<10x32xf32>
    %c0_237 = arith.constant 0 : index
    %c0_238 = arith.constant 0 : index
    %489 = vector.load %arg19[%c0_237, %c0_238] : memref<1x32xf32, #tpu.memory_space<vmem>>, vector<1x32xf32>
    %c0_239 = arith.constant 0 : index
    %c0_240 = arith.constant 0 : index
    %490 = vector.load %arg20[%c0_239, %c0_240] : memref<1x32xf32, #tpu.memory_space<vmem>>, vector<1x32xf32>
    %cst_241 = arith.constant dense<0.000000e+00> : vector<10xf32>
    %491 = vector.multi_reduction <add>, %488, %cst_241 [1] : vector<10x32xf32> to vector<10xf32>
    %492 = vector.shape_cast %491 : vector<10xf32> to vector<10x1xf32>
    %cst_242 = arith.constant 3.200000e+01 : f32
    %493 = vector.broadcast %cst_242 : f32 to vector<10x1xf32>
    %494 = arith.divf %492, %493 : vector<10x1xf32>
    %495 = vector.broadcast %494 : vector<10x1xf32> to vector<10x32xf32>
    %496 = arith.subf %488, %495 : vector<10x32xf32>
    %497 = arith.mulf %496, %496 : vector<10x32xf32>
    %cst_243 = arith.constant dense<0.000000e+00> : vector<10xf32>
    %498 = vector.multi_reduction <add>, %497, %cst_243 [1] : vector<10x32xf32> to vector<10xf32>
    %499 = vector.shape_cast %498 : vector<10xf32> to vector<10x1xf32>
    %cst_244 = arith.constant 3.200000e+01 : f32
    %500 = vector.broadcast %cst_244 : f32 to vector<10x1xf32>
    %501 = arith.divf %499, %500 : vector<10x1xf32>
    %502 = vector.broadcast %494 : vector<10x1xf32> to vector<10x32xf32>
    %503 = arith.subf %488, %502 : vector<10x32xf32>
    %cst_245 = arith.constant 9.99999996E-13 : f32
    %504 = vector.broadcast %cst_245 : f32 to vector<10x1xf32>
    %505 = arith.addf %501, %504 : vector<10x1xf32>
    %506 = math.rsqrt %505 : vector<10x1xf32>
    %507 = vector.broadcast %506 : vector<10x1xf32> to vector<10x32xf32>
    %508 = arith.mulf %503, %507 : vector<10x32xf32>
    %509 = vector.broadcast %489 : vector<1x32xf32> to vector<10x32xf32>
    %510 = arith.mulf %508, %509 : vector<10x32xf32>
    %511 = vector.broadcast %490 : vector<1x32xf32> to vector<10x32xf32>
    %512 = arith.addf %510, %511 : vector<10x32xf32>
    %513 = tpu.iota {dimensions = array<i32: 1>} : vector<2x2xi32>
    %c0_246 = arith.constant 0 : index
    %c0_247 = arith.constant 0 : index
    %514 = vector.load %arg2[%c0_246, %c0_247] : memref<2x1xi32, #tpu.memory_space<vmem>>, vector<2x1xi32>
    %515 = vector.broadcast %514 : vector<2x1xi32> to vector<2x2xi32>
    %516 = arith.cmpi eq, %513, %515 : vector<2x2xi32>
    %517 = arith.extui %516 : vector<2x2xi1> to vector<2x2xi32>
    %518 = arith.sitofp %517 : vector<2x2xi32> to vector<2x2xf32>
    %519 = vector.extract_strided_slice %512 {offsets = [0, 0], sizes = [1, 32], strides = [1, 1]} : vector<10x32xf32> to vector<1x32xf32>
    %c0_248 = arith.constant 0 : index
    %c0_249 = arith.constant 0 : index
    %520 = vector.load %arg21[%c0_248, %c0_249] : memref<32x128xf32, #tpu.memory_space<vmem>>, vector<32x128xf32>
    %cst_250 = arith.constant dense<0.000000e+00> : vector<1x128xf32>
    %521 = tpu.matmul %519, %520, %cst_250 {dimension_numbers = #tpu.dot_dimension_numbers<[1], [0], [0], [1], [0, 0, 1, 1], [], []>} : vector<1x32xf32>, vector<32x128xf32>, vector<1x128xf32> -> vector<1x128xf32>
    %522 = vector.extract_strided_slice %518 {offsets = [0, 0], sizes = [1, 2], strides = [1, 1]} : vector<2x2xf32> to vector<1x2xf32>
    %c0_251 = arith.constant 0 : index
    %c0_252 = arith.constant 0 : index
    %523 = vector.load %arg22[%c0_251, %c0_252] : memref<2x128xf32, #tpu.memory_space<vmem>>, vector<2x128xf32>
    %cst_253 = arith.constant dense<0.000000e+00> : vector<1x128xf32>
    %524 = tpu.matmul %522, %523, %cst_253 {dimension_numbers = #tpu.dot_dimension_numbers<[1], [0], [0], [1], [0, 0, 1, 1], [], []>} : vector<1x2xf32>, vector<2x128xf32>, vector<1x128xf32> -> vector<1x128xf32>
    %525 = arith.addf %521, %524 : vector<1x128xf32>
    %c0_254 = arith.constant 0 : index
    %c0_255 = arith.constant 0 : index
    %526 = vector.load %arg23[%c0_254, %c0_255] : memref<1x128xf32, #tpu.memory_space<vmem>>, vector<1x128xf32>
    %527 = arith.addf %525, %526 : vector<1x128xf32>
    %c0_256 = arith.constant 0 : index
    %c0_257 = arith.constant 0 : index
    %528 = vector.load %arg24[%c0_256, %c0_257] : memref<2x128xf32, #tpu.memory_space<vmem>>, vector<1x128xf32>
    tpu.vector_store %arg24[%c0_256, %c0_257], %527 {strides = array<i32>} : memref<2x128xf32, #tpu.memory_space<vmem>>, vector<1x128xf32>,
    %529 = vector.extract_strided_slice %512 {offsets = [5, 0], sizes = [1, 32], strides = [1, 1]} : vector<10x32xf32> to vector<1x32xf32>
    %c0_258 = arith.constant 0 : index
    %c0_259 = arith.constant 0 : index
    %530 = vector.load %arg21[%c0_258, %c0_259] : memref<32x128xf32, #tpu.memory_space<vmem>>, vector<32x128xf32>
    %cst_260 = arith.constant dense<0.000000e+00> : vector<1x128xf32>
    %531 = tpu.matmul %529, %530, %cst_260 {dimension_numbers = #tpu.dot_dimension_numbers<[1], [0], [0], [1], [0, 0, 1, 1], [], []>} : vector<1x32xf32>, vector<32x128xf32>, vector<1x128xf32> -> vector<1x128xf32>
    %532 = vector.extract_strided_slice %518 {offsets = [1, 0], sizes = [1, 2], strides = [1, 1]} : vector<2x2xf32> to vector<1x2xf32>
    %c0_261 = arith.constant 0 : index
    %c0_262 = arith.constant 0 : index
    %533 = vector.load %arg22[%c0_261, %c0_262] : memref<2x128xf32, #tpu.memory_space<vmem>>, vector<2x128xf32>
    %cst_263 = arith.constant dense<0.000000e+00> : vector<1x128xf32>
    %534 = tpu.matmul %532, %533, %cst_263 {dimension_numbers = #tpu.dot_dimension_numbers<[1], [0], [0], [1], [0, 0, 1, 1], [], []>} : vector<1x2xf32>, vector<2x128xf32>, vector<1x128xf32> -> vector<1x128xf32>
    %535 = arith.addf %531, %534 : vector<1x128xf32>
    %c0_264 = arith.constant 0 : index
    %c0_265 = arith.constant 0 : index
    %536 = vector.load %arg23[%c0_264, %c0_265] : memref<1x128xf32, #tpu.memory_space<vmem>>, vector<1x128xf32>
    %537 = arith.addf %535, %536 : vector<1x128xf32>
    %c1_266 = arith.constant 1 : index
    %c0_267 = arith.constant 0 : index
    %538 = vector.load %arg24[%c1_266, %c0_267] : memref<2x128xf32, #tpu.memory_space<vmem>>, vector<1x128xf32>
    tpu.vector_store %arg24[%c1_266, %c0_267], %537 {strides = array<i32>} : memref<2x128xf32, #tpu.memory_space<vmem>>, vector<1x128xf32>,
    return
  }
  func.func @transform_0(%arg0: i32) -> (i32, i32) {
    %c0_i32 = arith.constant 0 : i32
    %c0_i32_0 = arith.constant 0 : i32
    %c0_i32_1 = arith.constant 0 : i32
    return %c0_i32, %c0_i32_0 : i32, i32
  }
  func.func @transform_1(%arg0: i32) -> (i32, i32) {
    %c0_i32 = arith.constant 0 : i32
    %c0_i32_0 = arith.constant 0 : i32
    %c0_i32_1 = arith.constant 0 : i32
    return %c0_i32, %c0_i32_0 : i32, i32
  }
  func.func @transform_2(%arg0: i32) -> (i32, i32) {
    %c0_i32 = arith.constant 0 : i32
    %c0_i32_0 = arith.constant 0 : i32
    %c0_i32_1 = arith.constant 0 : i32
    return %c0_i32, %c0_i32_0 : i32, i32
  }
  func.func @transform_3(%arg0: i32) -> (i32, i32) {
    %c0_i32 = arith.constant 0 : i32
    %c0_i32_0 = arith.constant 0 : i32
    %c0_i32_1 = arith.constant 0 : i32
    return %c0_i32, %c0_i32_0 : i32, i32
  }
  func.func @transform_4(%arg0: i32) -> (i32, i32) {
    %c0_i32 = arith.constant 0 : i32
    %c0_i32_0 = arith.constant 0 : i32
    %c0_i32_1 = arith.constant 0 : i32
    return %c0_i32, %c0_i32_0 : i32, i32
  }
  func.func @transform_5(%arg0: i32) -> (i32, i32) {
    %c0_i32 = arith.constant 0 : i32
    %c0_i32_0 = arith.constant 0 : i32
    %c0_i32_1 = arith.constant 0 : i32
    return %c0_i32, %c0_i32_0 : i32, i32
  }
  func.func @transform_6(%arg0: i32) -> (i32, i32, i32) {
    %c0_i32 = arith.constant 0 : i32
    %c0_i32_0 = arith.constant 0 : i32
    %c0_i32_1 = arith.constant 0 : i32
    %c0_i32_2 = arith.constant 0 : i32
    return %c0_i32, %c0_i32_0, %c0_i32_1 : i32, i32, i32
  }
  func.func @transform_7(%arg0: i32) -> (i32, i32, i32) {
    %c0_i32 = arith.constant 0 : i32
    %c0_i32_0 = arith.constant 0 : i32
    %c0_i32_1 = arith.constant 0 : i32
    %c0_i32_2 = arith.constant 0 : i32
    return %c0_i32, %c0_i32_0, %c0_i32_1 : i32, i32, i32
  }
  func.func @transform_8(%arg0: i32) -> (i32, i32, i32) {
    %c0_i32 = arith.constant 0 : i32
    %c0_i32_0 = arith.constant 0 : i32
    %c0_i32_1 = arith.constant 0 : i32
    %c0_i32_2 = arith.constant 0 : i32
    return %c0_i32, %c0_i32_0, %c0_i32_1 : i32, i32, i32
  }
  func.func @transform_9(%arg0: i32) -> (i32, i32, i32) {
    %c0_i32 = arith.constant 0 : i32
    %c0_i32_0 = arith.constant 0 : i32
    %c0_i32_1 = arith.constant 0 : i32
    %c0_i32_2 = arith.constant 0 : i32
    return %c0_i32, %c0_i32_0, %c0_i32_1 : i32, i32, i32
  }
  func.func @transform_10(%arg0: i32) -> (i32, i32, i32) {
    %c0_i32 = arith.constant 0 : i32
    %c0_i32_0 = arith.constant 0 : i32
    %c0_i32_1 = arith.constant 0 : i32
    %c0_i32_2 = arith.constant 0 : i32
    return %c0_i32, %c0_i32_0, %c0_i32_1 : i32, i32, i32
  }
  func.func @transform_11(%arg0: i32) -> (i32, i32, i32) {
    %c0_i32 = arith.constant 0 : i32
    %c0_i32_0 = arith.constant 0 : i32
    %c0_i32_1 = arith.constant 0 : i32
    %c0_i32_2 = arith.constant 0 : i32
    return %c0_i32, %c0_i32_0, %c0_i32_1 : i32, i32, i32
  }
  func.func @transform_12(%arg0: i32) -> (i32, i32, i32) {
    %c0_i32 = arith.constant 0 : i32
    %c0_i32_0 = arith.constant 0 : i32
    %c0_i32_1 = arith.constant 0 : i32
    %c0_i32_2 = arith.constant 0 : i32
    return %c0_i32, %c0_i32_0, %c0_i32_1 : i32, i32, i32
  }
  func.func @transform_13(%arg0: i32) -> (i32, i32, i32) {
    %c0_i32 = arith.constant 0 : i32
    %c0_i32_0 = arith.constant 0 : i32
    %c0_i32_1 = arith.constant 0 : i32
    %c0_i32_2 = arith.constant 0 : i32
    return %c0_i32, %c0_i32_0, %c0_i32_1 : i32, i32, i32
  }
  func.func @transform_14(%arg0: i32) -> (i32, i32, i32) {
    %c0_i32 = arith.constant 0 : i32
    %c0_i32_0 = arith.constant 0 : i32
    %c0_i32_1 = arith.constant 0 : i32
    %c0_i32_2 = arith.constant 0 : i32
    return %c0_i32, %c0_i32_0, %c0_i32_1 : i32, i32, i32
  }
  func.func @transform_15(%arg0: i32) -> (i32, i32, i32) {
    %c0_i32 = arith.constant 0 : i32
    %c0_i32_0 = arith.constant 0 : i32
    %c0_i32_1 = arith.constant 0 : i32
    %c0_i32_2 = arith.constant 0 : i32
    return %c0_i32, %c0_i32_0, %c0_i32_1 : i32, i32, i32
  }
  func.func @transform_16(%arg0: i32) -> (i32, i32, i32) {
    %c0_i32 = arith.constant 0 : i32
    %c0_i32_0 = arith.constant 0 : i32
    %c0_i32_1 = arith.constant 0 : i32
    %c0_i32_2 = arith.constant 0 : i32
    return %c0_i32, %c0_i32_0, %c0_i32_1 : i32, i32, i32
  }
  func.func @transform_17(%arg0: i32) -> (i32, i32, i32) {
    %c0_i32 = arith.constant 0 : i32
    %c0_i32_0 = arith.constant 0 : i32
    %c0_i32_1 = arith.constant 0 : i32
    %c0_i32_2 = arith.constant 0 : i32
    return %c0_i32, %c0_i32_0, %c0_i32_1 : i32, i32, i32
  }
  func.func @transform_18(%arg0: i32) -> (i32, i32) {
    %c0_i32 = arith.constant 0 : i32
    %c0_i32_0 = arith.constant 0 : i32
    %c0_i32_1 = arith.constant 0 : i32
    return %c0_i32, %c0_i32_0 : i32, i32
  }
  func.func @transform_19(%arg0: i32) -> (i32, i32) {
    %c0_i32 = arith.constant 0 : i32
    %c0_i32_0 = arith.constant 0 : i32
    %c0_i32_1 = arith.constant 0 : i32
    return %c0_i32, %c0_i32_0 : i32, i32
  }
  func.func @transform_20(%arg0: i32) -> (i32, i32) {
    %c0_i32 = arith.constant 0 : i32
    %c0_i32_0 = arith.constant 0 : i32
    %c0_i32_1 = arith.constant 0 : i32
    return %c0_i32, %c0_i32_0 : i32, i32
  }
  func.func @transform_21(%arg0: i32) -> (i32, i32) {
    %c0_i32 = arith.constant 0 : i32
    %c0_i32_0 = arith.constant 0 : i32
    %c0_i32_1 = arith.constant 0 : i32
    return %c0_i32, %c0_i32_0 : i32, i32
  }
  func.func @transform_22(%arg0: i32) -> (i32, i32) {
    %c0_i32 = arith.constant 0 : i32
    %c0_i32_0 = arith.constant 0 : i32
    %c0_i32_1 = arith.constant 0 : i32
    return %c0_i32, %c0_i32_0 : i32, i32
  }
  func.func @transform_23(%arg0: i32) -> (i32, i32) {
    %c0_i32 = arith.constant 0 : i32
    %c0_i32_0 = arith.constant 0 : i32
    %c0_i32_1 = arith.constant 0 : i32
    return %c0_i32, %c0_i32_0 : i32, i32
  }
}

</mosaic_0001>

<llo_original>
// kernel: grip_forward.1
$region0: #{grip_forward.1}
  #allocation0 [shape = 'u32[]', space=smem, size = 0x4, offset = 0x4, fixed_abs, tag = 'smem constant byte address 0x4 - core index']
  #allocation1 [shape = 'u32[144,128]{1,0:T(1,128)}', space=vmem, size = 0x12000, scoped, tag = 'internal scratch']
  #allocation2 [shape = 'f32[10,32]{1,0:T(8,128)}', space=vmem, size = 0x2000, scoped, tag = 'scratch operand']
  %s0 = inlined_call_operand.vmem [shape: f32[8,192], index: 0, kind: input, shape index: {}]
  %s1 = inlined_call_operand.vmem [shape: s32[2,1], index: 1, kind: input, shape index: {}]
  %s2 = inlined_call_operand.vmem [shape: f32[192,32], index: 2, kind: input, shape index: {}]
  %s3 = inlined_call_operand.vmem [shape: f32[1,32], index: 3, kind: input, shape index: {}]
  %s4 = inlined_call_operand.vmem [shape: f32[1,32], index: 4, kind: input, shape index: {}]
  %s5 = inlined_call_operand.vmem [shape: f32[5,32], index: 5, kind: input, shape index: {}]
  %s6 = inlined_call_operand.vmem [shape: f32[2,1,32], index: 6, kind: input, shape index: {}, may-alias: {6,12}]
  %s7 = inlined_call_operand.vmem [shape: f32[2,1,32], index: 7, kind: input, shape index: {}, may-alias: {7,13}]
  %s8 = inlined_call_operand.vmem [shape: f32[2,32,96], index: 8, kind: input, shape index: {}]
  %s9 = inlined_call_operand.vmem [shape: f32[2,1,96], index: 9, kind: input, shape index: {}]
  %s10 = inlined_call_operand.vmem [shape: f32[2,32,32], index: 10, kind: input, shape index: {}]
  %s11 = inlined_call_operand.vmem [shape: f32[2,1,32], index: 11, kind: input, shape index: {}]
  %s12 = inlined_call_operand.vmem [shape: f32[2,1,32], index: 12, kind: input, shape index: {}, may-alias: {6,12}]
  %s13 = inlined_call_operand.vmem [shape: f32[2,1,32], index: 13, kind: input, shape index: {}, may-alias: {7,13}]
  %s14 = inlined_call_operand.vmem [shape: f32[2,32,64], index: 14, kind: input, shape index: {}]
  %s15 = inlined_call_operand.vmem [shape: f32[2,1,64], index: 15, kind: input, shape index: {}]
  %s16 = inlined_call_operand.vmem [shape: f32[2,64,32], index: 16, kind: input, shape index: {}]
  %s17 = inlined_call_operand.vmem [shape: f32[2,1,32], index: 17, kind: input, shape index: {}]
  %s18 = inlined_call_operand.vmem [shape: f32[1,32], index: 18, kind: input, shape index: {}]
  %s19 = inlined_call_operand.vmem [shape: f32[1,32], index: 19, kind: input, shape index: {}]
  %s20 = inlined_call_operand.vmem [shape: f32[32,128], index: 20, kind: input, shape index: {}]
  %s21 = inlined_call_operand.vmem [shape: f32[2,128], index: 21, kind: input, shape index: {}]
  %s22 = inlined_call_operand.vmem [shape: f32[1,128], index: 22, kind: input, shape index: {}]
  %s23 = inlined_call_operand.vmem [shape: f32[2,128], index: 23, kind: output, shape index: {}]
  %s24 = sld [smem:[#allocation0]]
  $region102: #{grip_forward.1} parent=0
    _
  %s26 = ssub.s32 1, %s24
  %s27 = scalar_select 0, %s26, %s24
  // Predicated region
  $region2: #{grip_forward.1} parent=0 // pred_check
    _
  $region3: #{grip_forward.1} parent=0 // pred_check_branch
    %29 = sbr.rel (0) target = $region5
  $region4: #{grip_forward.1} parent=0 // pred_region
    _
  $region5: #{grip_forward.1} parent=0 // pred_fallthru
    _
  // Predicated region
  $region6: #{grip_forward.1} parent=0 // pred_check
    _
  $region7: #{grip_forward.1} parent=0 // pred_check_branch
    %31 = sbr.rel (0) target = $region9
  $region8: #{grip_forward.1} parent=0 // pred_region
    _
  $region9: #{grip_forward.1} parent=0 // pred_fallthru
    _
  // Predicated region
  $region10: #{grip_forward.1} parent=0 // pred_check
    _
  $region11: #{grip_forward.1} parent=0 // pred_check_branch
    %33 = sbr.rel (0) target = $region13
  $region12: #{grip_forward.1} parent=0 // pred_region
    _
  $region13: #{grip_forward.1} parent=0 // pred_fallthru
    _
  // Predicated region
  $region14: #{grip_forward.1} parent=0 // pred_check
    _
  $region15: #{grip_forward.1} parent=0 // pred_check_branch
    %35 = sbr.rel (0) target = $region17
  $region16: #{grip_forward.1} parent=0 // pred_region
    _
  $region17: #{grip_forward.1} parent=0 // pred_fallthru
    _
  // Predicated region
  $region18: #{grip_forward.1} parent=0 // pred_check
    _
  $region19: #{grip_forward.1} parent=0 // pred_check_branch
    %37 = sbr.rel (0) target = $region21
  $region20: #{grip_forward.1} parent=0 // pred_region
    _
  $region21: #{grip_forward.1} parent=0 // pred_fallthru
    _
  // Predicated region
  $region22: #{grip_forward.1} parent=0 // pred_check
    _
  $region23: #{grip_forward.1} parent=0 // pred_check_branch
    %39 = sbr.rel (0) target = $region25
  $region24: #{grip_forward.1} parent=0 // pred_region
    _
  $region25: #{grip_forward.1} parent=0 // pred_fallthru
    _
  // Predicated region
  $region26: #{grip_forward.1} parent=0 // pred_check
    _
  $region27: #{grip_forward.1} parent=0 // pred_check_branch
    %41 = sbr.rel (0) target = $region29
  $region28: #{grip_forward.1} parent=0 // pred_region
    _
  $region29: #{grip_forward.1} parent=0 // pred_fallthru
    _
  // Predicated region
  $region30: #{grip_forward.1} parent=0 // pred_check
    _
  $region31: #{grip_forward.1} parent=0 // pred_check_branch
    %43 = sbr.rel (0) target = $region33
  $region32: #{grip_forward.1} parent=0 // pred_region
    _
  $region33: #{grip_forward.1} parent=0 // pred_fallthru
    _
  // Predicated region
  $region34: #{grip_forward.1} parent=0 // pred_check
    _
  $region35: #{grip_forward.1} parent=0 // pred_check_branch
    %45 = sbr.rel (0) target = $region37
  $region36: #{grip_forward.1} parent=0 // pred_region
    _
  $region37: #{grip_forward.1} parent=0 // pred_fallthru
    _
  // Predicated region
  $region38: #{grip_forward.1} parent=0 // pred_check
    _
  $region39: #{grip_forward.1} parent=0 // pred_check_branch
    %47 = sbr.rel (0) target = $region41
  $region40: #{grip_forward.1} parent=0 // pred_region
    _
  $region41: #{grip_forward.1} parent=0 // pred_fallthru
    _
  // Predicated region
  $region42: #{grip_forward.1} parent=0 // pred_check
    _
  $region43: #{grip_forward.1} parent=0 // pred_check_branch
    %49 = sbr.rel (0) target = $region45
  $region44: #{grip_forward.1} parent=0 // pred_region
    _
  $region45: #{grip_forward.1} parent=0 // pred_fallthru
    _
  // Predicated region
  $region46: #{grip_forward.1} parent=0 // pred_check
    _
  $region47: #{grip_forward.1} parent=0 // pred_check_branch
    %51 = sbr.rel (0) target = $region49
  $region48: #{grip_forward.1} parent=0 // pred_region
    _
  $region49: #{grip_forward.1} parent=0 // pred_fallthru
    _
  // Predicated region
  $region50: #{grip_forward.1} parent=0 // pred_check
    _
  $region51: #{grip_forward.1} parent=0 // pred_check_branch
    %53 = sbr.rel (0) target = $region53
  $region52: #{grip_forward.1} parent=0 // pred_region
    _
  $region53: #{grip_forward.1} parent=0 // pred_fallthru
    _
  // Predicated region
  $region54: #{grip_forward.1} parent=0 // pred_check
    _
  $region55: #{grip_forward.1} parent=0 // pred_check_branch
    %55 = sbr.rel (0) target = $region57
  $region56: #{grip_forward.1} parent=0 // pred_region
    _
  $region57: #{grip_forward.1} parent=0 // pred_fallthru
    _
  // Predicated region
  $region58: #{grip_forward.1} parent=0 // pred_check
    _
  $region59: #{grip_forward.1} parent=0 // pred_check_branch
    %57 = sbr.rel (0) target = $region61
  $region60: #{grip_forward.1} parent=0 // pred_region
    _
  $region61: #{grip_forward.1} parent=0 // pred_fallthru
    _
  // Predicated region
  $region62: #{grip_forward.1} parent=0 // pred_check
    _
  $region63: #{grip_forward.1} parent=0 // pred_check_branch
    %59 = sbr.rel (0) target = $region65
  $region64: #{grip_forward.1} parent=0 // pred_region
    _
  $region65: #{grip_forward.1} parent=0 // pred_fallthru
    _
  // Predicated region
  $region66: #{grip_forward.1} parent=0 // pred_check
    _
  $region67: #{grip_forward.1} parent=0 // pred_check_branch
    %61 = sbr.rel (0) target = $region69
  $region68: #{grip_forward.1} parent=0 // pred_region
    _
  $region69: #{grip_forward.1} parent=0 // pred_fallthru
    _
  // Predicated region
  $region70: #{grip_forward.1} parent=0 // pred_check
    _
  $region71: #{grip_forward.1} parent=0 // pred_check_branch
    %63 = sbr.rel (0) target = $region73
  $region72: #{grip_forward.1} parent=0 // pred_region
    _
  $region73: #{grip_forward.1} parent=0 // pred_fallthru
    _
  // Predicated region
  $region74: #{grip_forward.1} parent=0 // pred_check
    _
  $region75: #{grip_forward.1} parent=0 // pred_check_branch
    %65 = sbr.rel (0) target = $region77
  $region76: #{grip_forward.1} parent=0 // pred_region
    _
  $region77: #{grip_forward.1} parent=0 // pred_fallthru
    _
  // Predicated region
  $region78: #{grip_forward.1} parent=0 // pred_check
    _
  $region79: #{grip_forward.1} parent=0 // pred_check_branch
    %67 = sbr.rel (0) target = $region81
  $region80: #{grip_forward.1} parent=0 // pred_region
    _
  $region81: #{grip_forward.1} parent=0 // pred_fallthru
    _
  // Predicated region
  $region82: #{grip_forward.1} parent=0 // pred_check
    _
  $region83: #{grip_forward.1} parent=0 // pred_check_branch
    %69 = sbr.rel (0) target = $region85
  $region84: #{grip_forward.1} parent=0 // pred_region
    _
  $region85: #{grip_forward.1} parent=0 // pred_fallthru
    _
  // Predicated region
  $region86: #{grip_forward.1} parent=0 // pred_check
    _
  $region87: #{grip_forward.1} parent=0 // pred_check_branch
    %71 = sbr.rel (0) target = $region89
  $region88: #{grip_forward.1} parent=0 // pred_region
    _
  $region89: #{grip_forward.1} parent=0 // pred_fallthru
    _
  // Predicated region
  $region90: #{grip_forward.1} parent=0 // pred_check
    _
  $region91: #{grip_forward.1} parent=0 // pred_check_branch
    %73 = sbr.rel (0) target = $region93
  $region92: #{grip_forward.1} parent=0 // pred_region
    _
  $region93: #{grip_forward.1} parent=0 // pred_fallthru
    _
  %v74 = vld [vmem:[%s0] sm:$0xff]
  %v75 = vld [vmem:[%s0 + $0x8] sm:$0xff]
  %v76 = vld [vmem:[%s2] sm:$0xff]
  %v77 = vld [vmem:[%s2 + $0x8] sm:$0xff]
  %v78 = vld [vmem:[%s2 + $0x10] sm:$0xff]
  %v79 = vld [vmem:[%s2 + $0x18] sm:$0xff]
  %v80 = vld [vmem:[%s2 + $0x20] sm:$0xff]
  %v81 = vld [vmem:[%s2 + $0x28] sm:$0xff]
  %v82 = vld [vmem:[%s2 + $0x30] sm:$0xff]
  %v83 = vld [vmem:[%s2 + $0x38] sm:$0xff]
  %v84 = vld [vmem:[%s2 + $0x40] sm:$0xff]
  %v85 = vld [vmem:[%s2 + $0x48] sm:$0xff]
  %v86 = vld [vmem:[%s2 + $0x50] sm:$0xff]
  %v87 = vld [vmem:[%s2 + $0x58] sm:$0xff]
  %v88 = vld [vmem:[%s2 + $0x60] sm:$0xff]
  %v89 = vld [vmem:[%s2 + $0x68] sm:$0xff]
  %v90 = vld [vmem:[%s2 + $0x70] sm:$0xff]
  %v91 = vld [vmem:[%s2 + $0x78] sm:$0xff]
  %v92 = vld [vmem:[%s2 + $0x80] sm:$0xff]
  %v93 = vld [vmem:[%s2 + $0x88] sm:$0xff]
  %v94 = vld [vmem:[%s2 + $0x90] sm:$0xff]
  %v95 = vld [vmem:[%s2 + $0x98] sm:$0xff]
  %v96 = vld [vmem:[%s2 + $0xa0] sm:$0xff]
  %v97 = vld [vmem:[%s2 + $0xa8] sm:$0xff]
  %v98 = vld [vmem:[%s2 + $0xb0] sm:$0xff]
  %v99 = vld [vmem:[%s2 + $0xb8] sm:$0xff]
  %v100 = vld [vmem:[%s3] sm:$0x1]
  %v102 = vlaneseq
  %v103 = vshrl.u32 %v102, 7
  %v104 = vsub.s32 0, %v103
  %v105 = vrot.slane %v100, %v104
  %vm107 = vcmask 523264
  %v109 = vsel %vm107, %v75, 0
  %111 = vmatprep.subr.mxu0 0.0
  %112 = vmatpush1.msra.mxu0 %v76
  %113 = vmatprep.subr.mxu0 0.0
  %114 = vmatpush1.msra.mxu0 %v77
  %115 = vmatprep.subr.mxu0 0.0
  %116 = vmatpush1.msra.mxu0 %v78
  %117 = vmatprep.subr.mxu0 0.0
  %118 = vmatpush1.msra.mxu0 %v79
  %119 = vmatprep.subr.mxu0 0.0
  %120 = vmatpush1.msra.mxu0 %v80
  %121 = vmatprep.subr.mxu0 0.0
  %122 = vmatpush1.msra.mxu0 %v81
  %123 = vmatprep.subr.mxu0 0.0
  %124 = vmatpush1.msra.mxu0 %v82
  %125 = vmatprep.subr.mxu0 0.0
  %126 = vmatpush1.msra.mxu0 %v83
  %127 = vmatprep.subr.mxu0 0.0
  %128 = vmatpush1.msra.mxu0 %v84
  %129 = vmatprep.subr.mxu0 0.0
  %130 = vmatpush1.msra.mxu0 %v85
  %131 = vmatprep.subr.mxu0 0.0
  %132 = vmatpush1.msra.mxu0 %v86
  %133 = vmatprep.subr.mxu0 0.0
  %134 = vmatpush1.msra.mxu0 %v87
  %135 = vmatprep.subr.mxu0 0.0
  %136 = vmatpush1.msra.mxu0 %v88
  %137 = vmatprep.subr.mxu0 0.0
  %138 = vmatpush1.msra.mxu0 %v89
  %139 = vmatprep.subr.mxu0 0.0
  %140 = vmatpush1.msra.mxu0 %v90
  %141 = vmatprep.subr.mxu0 0.0
  %142 = vmatpush1.msra.mxu0 %v91
  %143 = vmatprep.subr.mxu0 0.0
  %144 = vmatpush1.msra.mxu0 %v92
  %145 = vmatprep.subr.mxu0 0.0
  %146 = vmatpush1.msra.mxu0 %v93
  %147 = vmatprep.subr.mxu0 0.0
  %148 = vmatpush1.msra.mxu0 %v94
  %149 = vmatprep.subr.mxu0 0.0
  %150 = vmatpush1.msra.mxu0 %v95
  %151 = vmatprep.subr.mxu0 0.0
  %152 = vmatpush1.msra.mxu0 %v96
  %153 = vmatprep.subr.mxu0 0.0
  %154 = vmatpush1.msra.mxu0 %v97
  %155 = vmatprep.subr.mxu0 0.0
  %156 = vmatpush1.msra.mxu0 %v98
  %157 = vmatprep.subr.mxu0 0.0
  %158 = vmatpush1.msra.mxu0 %v99
  %159 = vmatprep.subr.mxu0 0.0
  %160 = vmatpush1.msra.mxu0 0.0
  %161 = vmatprep.subr.mxu0 0.0
  %162 = vmatpush1.msra.mxu0 0.0
  %163 = vmatprep.subr.mxu0 0.0
  %164 = vmatpush1.msra.mxu0 0.0
  %165 = vmatprep.subr.mxu0 0.0
  %166 = vmatpush1.msra.mxu0 0.0
  %167 = vmatprep.subr.mxu0 0.0
  %168 = vmatpush1.msra.mxu0 0.0
  %169 = vmatprep.subr.mxu0 0.0
  %170 = vmatpush1.msra.mxu0 0.0
  %171 = vmatprep.subr.mxu0 0.0
  %172 = vmatpush1.msra.mxu0 0.0
  %173 = vmatprep.subr.mxu0 0.0
  %174 = vmatpush1.msra.mxu0 0.0
  %175 = vmatprep.mubr.f32.mxu0 %v109
  %176 = vmatmul.mubr.f32.gmra.mrb[0].mxu0 %v74
  %v177 = vpop.f32.mrb[0].mxu0
  %v178 = vadd.f32 %v105, %v177
  %v179 = vpop.f32.mrb[0].mxu0
  %180 = vdwg.mxu0
  %v181 = vld [vmem:[%s4] sm:$0x1]
  %v182 = vld [vmem:[%s5] sm:$0x1]
  %v183 = vadd.f32 %v181, %v182
  %v184 = vld [vmem:[%s5 + $0x1] sm:$0xf]
  %vm185 = vcmask 253952
  %186 = vst.msk [vmem:[#allocation2] sm:$0x1] %vm185, %v183
  %v187 = vadd.f32 %v178, %v184
  %vm188 = vcmask 257024
  %189 = vst.msk [vmem:[#allocation2 + $0x1] sm:$0xf] %vm188, %v187
  %190 = vst.msk [vmem:[#allocation2 + $0x5] sm:$0x1] %vm185, %v183
  %v192 = vrot.slane %v184, 4
  %v194 = vadd.f32 %v178, %v192
  %vm195 = vcmask 261124
  %196 = vst.msk [vmem:[#allocation2 + $0x2] sm:$0xf0] %vm195, %v194
  %v197 = vld [vmem:[#allocation2] sm:$0xff]
  %v198 = vld [vmem:[#allocation2 + $0x8] sm:$0x3]
  %v199 = vld [vmem:[%s6] sm:$0x1]
  %v200 = vld [vmem:[%s7] sm:$0x1]
  %vm201 = vcmask 261120
  %v202 = vsel %vm201, %v197, 0.0
  %203 = vadd.xlane.f32.xlu0 %v202
  %v204 = vpop.xlane.xlu0 %203
  %vm205 = vcmask 254976
  %v206 = vsel %vm205, %v198, 0.0
  %207 = vadd.xlane.f32.xlu0 %v206
  %v208 = vpop.xlane.xlu0 %207
  %v209 = vrcp.pop 32.0
  %v210 = vmul.f32 %v204, %v209
  %v211 = vmul.f32 %v208, %v209
  %v212 = vsub.f32 %v197, %v210
  %v213 = vsub.f32 %v198, %v211
  %v214 = vmul.f32 %v212, %v212
  %v215 = vmul.f32 %v213, %v213
  %v216 = vsel %vm201, %v214, 0.0
  %217 = vadd.xlane.f32.xlu0 %v216
  %v218 = vpop.xlane.xlu0 %217
  %v219 = vsel %vm205, %v215, 0.0
  %220 = vadd.xlane.f32.xlu0 %v219
  %v221 = vpop.xlane.xlu0 %220
  %v222 = vmul.f32 %v218, %v209
  %v223 = vmul.f32 %v221, %v209
  %v224 = vadd.f32 %v222, 1e-12
  %v225 = vadd.f32 %v223, 1e-12
  %v226 = vrsqrt.pop %v224
  %v227 = vrsqrt.pop %v225
  %v228 = vmul.f32 %v212, %v226
  %v229 = vmul.f32 %v213, %v227
  %v231 = vlaneseq
  %v232 = vshrl.u32 %v231, 7
  %v233 = vsub.s32 0, %v232
  %v234 = vrot.slane %v199, %v233
  %v236 = vmul.f32 %v228, %v234
  %v237 = vmul.f32 %v229, %v234
  %v239 = vlaneseq
  %v240 = vshrl.u32 %v239, 7
  %v241 = vsub.s32 0, %v240
  %v242 = vrot.slane %v200, %v241
  %v244 = vadd.f32 %v236, %v242
  %v245 = vadd.f32 %v237, %v242
  %v246 = vld [vmem:[%s8] sm:$0xff]
  %v247 = vld [vmem:[%s8 + $0x8] sm:$0xff]
  %v248 = vld [vmem:[%s8 + $0x10] sm:$0xff]
  %v249 = vld [vmem:[%s8 + $0x18] sm:$0xff]
  %v250 = vld [vmem:[%s9] sm:$0x1]
  %v252 = vlaneseq
  %v253 = vshrl.u32 %v252, 7
  %v254 = vsub.s32 0, %v253
  %v255 = vrot.slane %v250, %v254
  %v258 = vsel %vm201, %v244, 0
  %v261 = vsel %vm201, %v245, 0
  %263 = vmatprep.subr.mxu0 0.0
  %264 = vmatpush1.msra.mxu0 %v246
  %265 = vmatprep.subr.mxu0 0.0
  %266 = vmatpush1.msra.mxu0 %v247
  %267 = vmatprep.subr.mxu0 0.0
  %268 = vmatpush1.msra.mxu0 %v248
  %269 = vmatprep.subr.mxu0 0.0
  %270 = vmatpush1.msra.mxu0 %v249
  %271 = vmatprep.subr.mxu0 0.0
  %272 = vmatpush1.msra.mxu0 0.0
  %273 = vmatprep.subr.mxu0 0.0
  %274 = vmatpush1.msra.mxu0 0.0
  %275 = vmatprep.subr.mxu0 0.0
  %276 = vmatpush1.msra.mxu0 0.0
  %277 = vmatprep.subr.mxu0 0.0
  %278 = vmatpush1.msra.mxu0 0.0
  %279 = vmatprep.subr.mxu0 0.0
  %280 = vmatpush1.msra.mxu0 0.0
  %281 = vmatprep.subr.mxu0 0.0
  %282 = vmatpush1.msra.mxu0 0.0
  %283 = vmatprep.subr.mxu0 0.0
  %284 = vmatpush1.msra.mxu0 0.0
  %285 = vmatprep.subr.mxu0 0.0
  %286 = vmatpush1.msra.mxu0 0.0
  %287 = vmatprep.subr.mxu0 0.0
  %288 = vmatpush1.msra.mxu0 0.0
  %289 = vmatprep.subr.mxu0 0.0
  %290 = vmatpush1.msra.mxu0 0.0
  %291 = vmatprep.subr.mxu0 0.0
  %292 = vmatpush1.msra.mxu0 0.0
  %293 = vmatprep.subr.mxu0 0.0
  %294 = vmatpush1.msra.mxu0 0.0
  %295 = vmatprep.subr.mxu0 0.0
  %296 = vmatpush1.msra.mxu0 0.0
  %297 = vmatprep.subr.mxu0 0.0
  %298 = vmatpush1.msra.mxu0 0.0
  %299 = vmatprep.subr.mxu0 0.0
  %300 = vmatpush1.msra.mxu0 0.0
  %301 = vmatprep.subr.mxu0 0.0
  %302 = vmatpush1.msra.mxu0 0.0
  %303 = vmatprep.subr.mxu0 0.0
  %304 = vmatpush1.msra.mxu0 0.0
  %305 = vmatprep.subr.mxu0 0.0
  %306 = vmatpush1.msra.mxu0 0.0
  %307 = vmatprep.subr.mxu0 0.0
  %308 = vmatpush1.msra.mxu0 0.0
  %309 = vmatprep.subr.mxu0 0.0
  %310 = vmatpush1.msra.mxu0 0.0
  %311 = vmatprep.subr.mxu0 0.0
  %312 = vmatpush1.msra.mxu0 0.0
  %313 = vmatprep.subr.mxu0 0.0
  %314 = vmatpush1.msra.mxu0 0.0
  %315 = vmatprep.subr.mxu0 0.0
  %316 = vmatpush1.msra.mxu0 0.0
  %317 = vmatprep.subr.mxu0 0.0
  %318 = vmatpush1.msra.mxu0 0.0
  %319 = vmatprep.subr.mxu0 0.0
  %320 = vmatpush1.msra.mxu0 0.0
  %321 = vmatprep.subr.mxu0 0.0
  %322 = vmatpush1.msra.mxu0 0.0
  %323 = vmatprep.subr.mxu0 0.0
  %324 = vmatpush1.msra.mxu0 0.0
  %325 = vmatprep.subr.mxu0 0.0
  %326 = vmatpush1.msra.mxu0 0.0
  %327 = vmatprep.mubr.f32.mxu0 0.0
  %328 = vmatmul.mubr.f32.gmra.mrb[0].mxu0 %v258
  %v329 = vpop.f32.mrb[0].mxu0
  %v330 = vadd.f32 %v255, %v329
  %v331 = vpop.f32.mrb[0].mxu0
  %332 = vmatprep.mubr.f32.mxu0 0.0
  %333 = vmatmul.mubr.f32.gmra.mrb[0].mxu0 %v261
  %v334 = vpop.f32.mrb[0].mxu0
  %v335 = vadd.f32 %v255, %v334
  %v336 = vpop.f32.mrb[0].mxu0
  %337 = vdwg.mxu0
  %339 = vrot.lane.b32.xlu0 %v330, 96
  %v340 = vpop.permute.xlu0 %339
  %vm341 = vcmask 64512
  %v342 = vsel %vm341, %v330, 0
  %v344 = vsel %vm341, %v340, 0
  %346 = vmatprep.subr.mxu0 0.0
  %347 = vmatpush1.xpose.msra.mxu0 %v344
  %348 = vmatprep.subr.mxu0 0.0
  %349 = vmatpush1.xpose.msra.mxu0 0.0
  %350 = vmatprep.subr.mxu0 0.0
  %351 = vmatpush1.xpose.msra.mxu0 0.0
  %352 = vmatprep.subr.mxu0 0.0
  %353 = vmatpush1.xpose.msra.mxu0 0.0
  %354 = vmatprep.subr.mxu0 0.0
  %355 = vmatpush1.xpose.msra.mxu0 0.0
  %356 = vmatprep.subr.mxu0 0.0
  %357 = vmatpush1.xpose.msra.mxu0 0.0
  %358 = vmatprep.subr.mxu0 0.0
  %359 = vmatpush1.xpose.msra.mxu0 0.0
  %360 = vmatprep.subr.mxu0 0.0
  %361 = vmatpush1.xpose.msra.mxu0 0.0
  %362 = vmatprep.subr.mxu0 0.0
  %363 = vmatpush1.xpose.msra.mxu0 0.0
  %364 = vmatprep.subr.mxu0 0.0
  %365 = vmatpush1.xpose.msra.mxu0 0.0
  %366 = vmatprep.subr.mxu0 0.0
  %367 = vmatpush1.xpose.msra.mxu0 0.0
  %368 = vmatprep.subr.mxu0 0.0
  %369 = vmatpush1.xpose.msra.mxu0 0.0
  %370 = vmatprep.subr.mxu0 0.0
  %371 = vmatpush1.xpose.msra.mxu0 0.0
  %372 = vmatprep.subr.mxu0 0.0
  %373 = vmatpush1.xpose.msra.mxu0 0.0
  %374 = vmatprep.subr.mxu0 0.0
  %375 = vmatpush1.xpose.msra.mxu0 0.0
  %376 = vmatprep.subr.mxu0 0.0
  %377 = vmatpush1.xpose.msra.mxu0 0.0
  %378 = vmatprep.subr.mxu0 0.0
  %379 = vmatpush1.xpose.msra.mxu0 0.0
  %380 = vmatprep.subr.mxu0 0.0
  %381 = vmatpush1.xpose.msra.mxu0 0.0
  %382 = vmatprep.subr.mxu0 0.0
  %383 = vmatpush1.xpose.msra.mxu0 0.0
  %384 = vmatprep.subr.mxu0 0.0
  %385 = vmatpush1.xpose.msra.mxu0 0.0
  %386 = vmatprep.subr.mxu0 0.0
  %387 = vmatpush1.xpose.msra.mxu0 0.0
  %388 = vmatprep.subr.mxu0 0.0
  %389 = vmatpush1.xpose.msra.mxu0 0.0
  %390 = vmatprep.subr.mxu0 0.0
  %391 = vmatpush1.xpose.msra.mxu0 0.0
  %392 = vmatprep.subr.mxu0 0.0
  %393 = vmatpush1.xpose.msra.mxu0 0.0
  %394 = vmatprep.subr.mxu0 0.0
  %395 = vmatpush1.xpose.msra.mxu0 0.0
  %396 = vmatprep.subr.mxu0 0.0
  %397 = vmatpush1.xpose.msra.mxu0 0.0
  %398 = vmatprep.subr.mxu0 0.0
  %399 = vmatpush1.xpose.msra.mxu0 0.0
  %400 = vmatprep.subr.mxu0 0.0
  %401 = vmatpush1.xpose.msra.mxu0 0.0
  %402 = vmatprep.subr.mxu0 0.0
  %403 = vmatpush1.xpose.msra.mxu0 0.0
  %404 = vmatprep.subr.mxu0 0.0
  %405 = vmatpush1.xpose.msra.mxu0 0.0
  %406 = vmatprep.subr.mxu0 0.0
  %407 = vmatpush1.xpose.msra.mxu0 0.0
  %408 = vmatprep.subr.mxu0 0.0
  %409 = vmatpush1.xpose.msra.mxu0 0.0
  %410 = vmatprep.mubr.f32.mxu0 0.0
  %411 = vmatmul.mubr.f32.gmra.mrb[0].mxu0 %v342
  %v412 = vpop.f32.mrb[0].mxu0
  %v413 = vadd.f32 0.0, %v412
  %v414 = vpop.f32.mrb[0].mxu0
  %415 = vdwg.mxu0
  %v416 = vmul.f32 %v413, 0.35355338
  %vm417 = vcmask 36864
  %v418 = vsel %vm417, %v416, -inf
  %419 = vmax.xlane.f32.xlu0 %v418
  %v420 = vpop.xlane.xlu0 %419
  %v421 = vsub.f32 %v416, %v420
  %v422 = vmul.f32 %v421, 1.442695
  %v423 = vpow.pop %v422
  %v424 = vsel %vm417, %v423, 0.0
  %425 = vadd.xlane.f32.xlu0 %v424
  %v426 = vpop.xlane.xlu0 %425
  %v427 = vrcp.pop %v426
  %v428 = vmul.f32 %v423, %v427
  %429 = vrot.lane.b32.xlu0 %v330, 64
  %v430 = vpop.permute.xlu0 %429
  %vm431 = vcmask 39936
  %v433 = vsel %vm431, %v428, 0
  %vm435 = vcmask 1044480
  %v436 = vsel %vm435, %v430, 0
  %438 = vmatprep.subr.mxu0 0.0
  %439 = vmatpush1.msra.mxu0 %v436
  %440 = vmatprep.subr.mxu0 0.0
  %441 = vmatpush1.msra.mxu0 0.0
  %442 = vmatprep.subr.mxu0 0.0
  %443 = vmatpush1.msra.mxu0 0.0
  %444 = vmatprep.subr.mxu0 0.0
  %445 = vmatpush1.msra.mxu0 0.0
  %446 = vmatprep.subr.mxu0 0.0
  %447 = vmatpush1.msra.mxu0 0.0
  %448 = vmatprep.subr.mxu0 0.0
  %449 = vmatpush1.msra.mxu0 0.0
  %450 = vmatprep.subr.mxu0 0.0
  %451 = vmatpush1.msra.mxu0 0.0
  %452 = vmatprep.subr.mxu0 0.0
  %453 = vmatpush1.msra.mxu0 0.0
  %454 = vmatprep.subr.mxu0 0.0
  %455 = vmatpush1.msra.mxu0 0.0
  %456 = vmatprep.subr.mxu0 0.0
  %457 = vmatpush1.msra.mxu0 0.0
  %458 = vmatprep.subr.mxu0 0.0
  %459 = vmatpush1.msra.mxu0 0.0
  %460 = vmatprep.subr.mxu0 0.0
  %461 = vmatpush1.msra.mxu0 0.0
  %462 = vmatprep.subr.mxu0 0.0
  %463 = vmatpush1.msra.mxu0 0.0
  %464 = vmatprep.subr.mxu0 0.0
  %465 = vmatpush1.msra.mxu0 0.0
  %466 = vmatprep.subr.mxu0 0.0
  %467 = vmatpush1.msra.mxu0 0.0
  %468 = vmatprep.subr.mxu0 0.0
  %469 = vmatpush1.msra.mxu0 0.0
  %470 = vmatprep.subr.mxu0 0.0
  %471 = vmatpush1.msra.mxu0 0.0
  %472 = vmatprep.subr.mxu0 0.0
  %473 = vmatpush1.msra.mxu0 0.0
  %474 = vmatprep.subr.mxu0 0.0
  %475 = vmatpush1.msra.mxu0 0.0
  %476 = vmatprep.subr.mxu0 0.0
  %477 = vmatpush1.msra.mxu0 0.0
  %478 = vmatprep.subr.mxu0 0.0
  %479 = vmatpush1.msra.mxu0 0.0
  %480 = vmatprep.subr.mxu0 0.0
  %481 = vmatpush1.msra.mxu0 0.0
  %482 = vmatprep.subr.mxu0 0.0
  %483 = vmatpush1.msra.mxu0 0.0
  %484 = vmatprep.subr.mxu0 0.0
  %485 = vmatpush1.msra.mxu0 0.0
  %486 = vmatprep.subr.mxu0 0.0
  %487 = vmatpush1.msra.mxu0 0.0
  %488 = vmatprep.subr.mxu0 0.0
  %489 = vmatpush1.msra.mxu0 0.0
  %490 = vmatprep.subr.mxu0 0.0
  %491 = vmatpush1.msra.mxu0 0.0
  %492 = vmatprep.subr.mxu0 0.0
  %493 = vmatpush1.msra.mxu0 0.0
  %494 = vmatprep.subr.mxu0 0.0
  %495 = vmatpush1.msra.mxu0 0.0
  %496 = vmatprep.subr.mxu0 0.0
  %497 = vmatpush1.msra.mxu0 0.0
  %498 = vmatprep.subr.mxu0 0.0
  %499 = vmatpush1.msra.mxu0 0.0
  %500 = vmatprep.subr.mxu0 0.0
  %501 = vmatpush1.msra.mxu0 0.0
  %502 = vmatprep.mubr.f32.mxu0 0.0
  %503 = vmatmul.mubr.f32.gmra.mrb[0].mxu0 %v433
  %v504 = vpop.f32.mrb[0].mxu0
  %v505 = vadd.f32 0.0, %v504
  %v506 = vpop.f32.mrb[0].mxu0
  %507 = vdwg.mxu0
  %vm508 = vcmask 61440
  %509 = vst.msk [vmem:[#allocation2] sm:$0x1f] %vm508, %v505
  %510 = vrot.lane.b32.xlu0 %v330, 120
  %v511 = vpop.permute.xlu0 %510
  %512 = vrot.lane.b32.xlu0 %v330, 88
  %v513 = vpop.permute.xlu0 %512
  %v514 = vsel %vm341, %v511, 0
  %v516 = vsel %vm341, %v513, 0
  %518 = vmatprep.subr.mxu0 0.0
  %519 = vmatpush1.xpose.msra.mxu0 %v516
  %520 = vmatprep.subr.mxu0 0.0
  %521 = vmatpush1.xpose.msra.mxu0 0.0
  %522 = vmatprep.subr.mxu0 0.0
  %523 = vmatpush1.xpose.msra.mxu0 0.0
  %524 = vmatprep.subr.mxu0 0.0
  %525 = vmatpush1.xpose.msra.mxu0 0.0
  %526 = vmatprep.subr.mxu0 0.0
  %527 = vmatpush1.xpose.msra.mxu0 0.0
  %528 = vmatprep.subr.mxu0 0.0
  %529 = vmatpush1.xpose.msra.mxu0 0.0
  %530 = vmatprep.subr.mxu0 0.0
  %531 = vmatpush1.xpose.msra.mxu0 0.0
  %532 = vmatprep.subr.mxu0 0.0
  %533 = vmatpush1.xpose.msra.mxu0 0.0
  %534 = vmatprep.subr.mxu0 0.0
  %535 = vmatpush1.xpose.msra.mxu0 0.0
  %536 = vmatprep.subr.mxu0 0.0
  %537 = vmatpush1.xpose.msra.mxu0 0.0
  %538 = vmatprep.subr.mxu0 0.0
  %539 = vmatpush1.xpose.msra.mxu0 0.0
  %540 = vmatprep.subr.mxu0 0.0
  %541 = vmatpush1.xpose.msra.mxu0 0.0
  %542 = vmatprep.subr.mxu0 0.0
  %543 = vmatpush1.xpose.msra.mxu0 0.0
  %544 = vmatprep.subr.mxu0 0.0
  %545 = vmatpush1.xpose.msra.mxu0 0.0
  %546 = vmatprep.subr.mxu0 0.0
  %547 = vmatpush1.xpose.msra.mxu0 0.0
  %548 = vmatprep.subr.mxu0 0.0
  %549 = vmatpush1.xpose.msra.mxu0 0.0
  %550 = vmatprep.subr.mxu0 0.0
  %551 = vmatpush1.xpose.msra.mxu0 0.0
  %552 = vmatprep.subr.mxu0 0.0
  %553 = vmatpush1.xpose.msra.mxu0 0.0
  %554 = vmatprep.subr.mxu0 0.0
  %555 = vmatpush1.xpose.msra.mxu0 0.0
  %556 = vmatprep.subr.mxu0 0.0
  %557 = vmatpush1.xpose.msra.mxu0 0.0
  %558 = vmatprep.subr.mxu0 0.0
  %559 = vmatpush1.xpose.msra.mxu0 0.0
  %560 = vmatprep.subr.mxu0 0.0
  %561 = vmatpush1.xpose.msra.mxu0 0.0
  %562 = vmatprep.subr.mxu0 0.0
  %563 = vmatpush1.xpose.msra.mxu0 0.0
  %564 = vmatprep.subr.mxu0 0.0
  %565 = vmatpush1.xpose.msra.mxu0 0.0
  %566 = vmatprep.subr.mxu0 0.0
  %567 = vmatpush1.xpose.msra.mxu0 0.0
  %568 = vmatprep.subr.mxu0 0.0
  %569 = vmatpush1.xpose.msra.mxu0 0.0
  %570 = vmatprep.subr.mxu0 0.0
  %571 = vmatpush1.xpose.msra.mxu0 0.0
  %572 = vmatprep.subr.mxu0 0.0
  %573 = vmatpush1.xpose.msra.mxu0 0.0
  %574 = vmatprep.subr.mxu0 0.0
  %575 = vmatpush1.xpose.msra.mxu0 0.0
  %576 = vmatprep.subr.mxu0 0.0
  %577 = vmatpush1.xpose.msra.mxu0 0.0
  %578 = vmatprep.subr.mxu0 0.0
  %579 = vmatpush1.xpose.msra.mxu0 0.0
  %580 = vmatprep.subr.mxu0 0.0
  %581 = vmatpush1.xpose.msra.mxu0 0.0
  %582 = vmatprep.mubr.f32.mxu0 0.0
  %583 = vmatmul.mubr.f32.gmra.mrb[0].mxu0 %v514
  %v584 = vpop.f32.mrb[0].mxu0
  %v585 = vadd.f32 0.0, %v584
  %v586 = vpop.f32.mrb[0].mxu0
  %587 = vdwg.mxu0
  %v588 = vmul.f32 %v585, 0.35355338
  %v589 = vsel %vm417, %v588, -inf
  %590 = vmax.xlane.f32.xlu0 %v589
  %v591 = vpop.xlane.xlu0 %590
  %v592 = vsub.f32 %v588, %v591
  %v593 = vmul.f32 %v592, 1.442695
  %v594 = vpow.pop %v593
  %v595 = vsel %vm417, %v594, 0.0
  %596 = vadd.xlane.f32.xlu0 %v595
  %v597 = vpop.xlane.xlu0 %596
  %v598 = vrcp.pop %v597
  %v599 = vmul.f32 %v594, %v598
  %600 = vrot.lane.b32.xlu0 %v330, 56
  %v601 = vpop.permute.xlu0 %600
  %v603 = vsel %vm431, %v599, 0
  %v605 = vsel %vm435, %v601, 0
  %607 = vmatprep.subr.mxu0 0.0
  %608 = vmatpush1.msra.mxu0 %v605
  %609 = vmatprep.subr.mxu0 0.0
  %610 = vmatpush1.msra.mxu0 0.0
  %611 = vmatprep.subr.mxu0 0.0
  %612 = vmatpush1.msra.mxu0 0.0
  %613 = vmatprep.subr.mxu0 0.0
  %614 = vmatpush1.msra.mxu0 0.0
  %615 = vmatprep.subr.mxu0 0.0
  %616 = vmatpush1.msra.mxu0 0.0
  %617 = vmatprep.subr.mxu0 0.0
  %618 = vmatpush1.msra.mxu0 0.0
  %619 = vmatprep.subr.mxu0 0.0
  %620 = vmatpush1.msra.mxu0 0.0
  %621 = vmatprep.subr.mxu0 0.0
  %622 = vmatpush1.msra.mxu0 0.0
  %623 = vmatprep.subr.mxu0 0.0
  %624 = vmatpush1.msra.mxu0 0.0
  %625 = vmatprep.subr.mxu0 0.0
  %626 = vmatpush1.msra.mxu0 0.0
  %627 = vmatprep.subr.mxu0 0.0
  %628 = vmatpush1.msra.mxu0 0.0
  %629 = vmatprep.subr.mxu0 0.0
  %630 = vmatpush1.msra.mxu0 0.0
  %631 = vmatprep.subr.mxu0 0.0
  %632 = vmatpush1.msra.mxu0 0.0
  %633 = vmatprep.subr.mxu0 0.0
  %634 = vmatpush1.msra.mxu0 0.0
  %635 = vmatprep.subr.mxu0 0.0
  %636 = vmatpush1.msra.mxu0 0.0
  %637 = vmatprep.subr.mxu0 0.0
  %638 = vmatpush1.msra.mxu0 0.0
  %639 = vmatprep.subr.mxu0 0.0
  %640 = vmatpush1.msra.mxu0 0.0
  %641 = vmatprep.subr.mxu0 0.0
  %642 = vmatpush1.msra.mxu0 0.0
  %643 = vmatprep.subr.mxu0 0.0
  %644 = vmatpush1.msra.mxu0 0.0
  %645 = vmatprep.subr.mxu0 0.0
  %646 = vmatpush1.msra.mxu0 0.0
  %647 = vmatprep.subr.mxu0 0.0
  %648 = vmatpush1.msra.mxu0 0.0
  %649 = vmatprep.subr.mxu0 0.0
  %650 = vmatpush1.msra.mxu0 0.0
  %651 = vmatprep.subr.mxu0 0.0
  %652 = vmatpush1.msra.mxu0 0.0
  %653 = vmatprep.subr.mxu0 0.0
  %654 = vmatpush1.msra.mxu0 0.0
  %655 = vmatprep.subr.mxu0 0.0
  %656 = vmatpush1.msra.mxu0 0.0
  %657 = vmatprep.subr.mxu0 0.0
  %658 = vmatpush1.msra.mxu0 0.0
  %659 = vmatprep.subr.mxu0 0.0
  %660 = vmatpush1.msra.mxu0 0.0
  %661 = vmatprep.subr.mxu0 0.0
  %662 = vmatpush1.msra.mxu0 0.0
  %663 = vmatprep.subr.mxu0 0.0
  %664 = vmatpush1.msra.mxu0 0.0
  %665 = vmatprep.subr.mxu0 0.0
  %666 = vmatpush1.msra.mxu0 0.0
  %667 = vmatprep.subr.mxu0 0.0
  %668 = vmatpush1.msra.mxu0 0.0
  %669 = vmatprep.subr.mxu0 0.0
  %670 = vmatpush1.msra.mxu0 0.0
  %671 = vmatprep.mubr.f32.mxu0 0.0
  %672 = vmatmul.mubr.f32.gmra.mrb[0].mxu0 %v603
  %v673 = vpop.f32.mrb[0].mxu0
  %v674 = vadd.f32 0.0, %v673
  %v675 = vpop.f32.mrb[0].mxu0
  %676 = vdwg.mxu0
  %678 = vrot.lane.b32.xlu0 %v674, 8
  %v679 = vpop.permute.xlu0 %678
  %vm681 = vcmask 127040
  %682 = vst.msk [vmem:[#allocation2] sm:$0x1f] %vm681, %v679
  %683 = vrot.lane.b32.xlu0 %v330, 112
  %v684 = vpop.permute.xlu0 %683
  %685 = vrot.lane.b32.xlu0 %v330, 80
  %v686 = vpop.permute.xlu0 %685
  %v687 = vsel %vm341, %v684, 0
  %v689 = vsel %vm341, %v686, 0
  %691 = vmatprep.subr.mxu0 0.0
  %692 = vmatpush1.xpose.msra.mxu0 %v689
  %693 = vmatprep.subr.mxu0 0.0
  %694 = vmatpush1.xpose.msra.mxu0 0.0
  %695 = vmatprep.subr.mxu0 0.0
  %696 = vmatpush1.xpose.msra.mxu0 0.0
  %697 = vmatprep.subr.mxu0 0.0
  %698 = vmatpush1.xpose.msra.mxu0 0.0
  %699 = vmatprep.subr.mxu0 0.0
  %700 = vmatpush1.xpose.msra.mxu0 0.0
  %701 = vmatprep.subr.mxu0 0.0
  %702 = vmatpush1.xpose.msra.mxu0 0.0
  %703 = vmatprep.subr.mxu0 0.0
  %704 = vmatpush1.xpose.msra.mxu0 0.0
  %705 = vmatprep.subr.mxu0 0.0
  %706 = vmatpush1.xpose.msra.mxu0 0.0
  %707 = vmatprep.subr.mxu0 0.0
  %708 = vmatpush1.xpose.msra.mxu0 0.0
  %709 = vmatprep.subr.mxu0 0.0
  %710 = vmatpush1.xpose.msra.mxu0 0.0
  %711 = vmatprep.subr.mxu0 0.0
  %712 = vmatpush1.xpose.msra.mxu0 0.0
  %713 = vmatprep.subr.mxu0 0.0
  %714 = vmatpush1.xpose.msra.mxu0 0.0
  %715 = vmatprep.subr.mxu0 0.0
  %716 = vmatpush1.xpose.msra.mxu0 0.0
  %717 = vmatprep.subr.mxu0 0.0
  %718 = vmatpush1.xpose.msra.mxu0 0.0
  %719 = vmatprep.subr.mxu0 0.0
  %720 = vmatpush1.xpose.msra.mxu0 0.0
  %721 = vmatprep.subr.mxu0 0.0
  %722 = vmatpush1.xpose.msra.mxu0 0.0
  %723 = vmatprep.subr.mxu0 0.0
  %724 = vmatpush1.xpose.msra.mxu0 0.0
  %725 = vmatprep.subr.mxu0 0.0
  %726 = vmatpush1.xpose.msra.mxu0 0.0
  %727 = vmatprep.subr.mxu0 0.0
  %728 = vmatpush1.xpose.msra.mxu0 0.0
  %729 = vmatprep.subr.mxu0 0.0
  %730 = vmatpush1.xpose.msra.mxu0 0.0
  %731 = vmatprep.subr.mxu0 0.0
  %732 = vmatpush1.xpose.msra.mxu0 0.0
  %733 = vmatprep.subr.mxu0 0.0
  %734 = vmatpush1.xpose.msra.mxu0 0.0
  %735 = vmatprep.subr.mxu0 0.0
  %736 = vmatpush1.xpose.msra.mxu0 0.0
  %737 = vmatprep.subr.mxu0 0.0
  %738 = vmatpush1.xpose.msra.mxu0 0.0
  %739 = vmatprep.subr.mxu0 0.0
  %740 = vmatpush1.xpose.msra.mxu0 0.0
  %741 = vmatprep.subr.mxu0 0.0
  %742 = vmatpush1.xpose.msra.mxu0 0.0
  %743 = vmatprep.subr.mxu0 0.0
  %744 = vmatpush1.xpose.msra.mxu0 0.0
  %745 = vmatprep.subr.mxu0 0.0
  %746 = vmatpush1.xpose.msra.mxu0 0.0
  %747 = vmatprep.subr.mxu0 0.0
  %748 = vmatpush1.xpose.msra.mxu0 0.0
  %749 = vmatprep.subr.mxu0 0.0
  %750 = vmatpush1.xpose.msra.mxu0 0.0
  %751 = vmatprep.subr.mxu0 0.0
  %752 = vmatpush1.xpose.msra.mxu0 0.0
  %753 = vmatprep.subr.mxu0 0.0
  %754 = vmatpush1.xpose.msra.mxu0 0.0
  %755 = vmatprep.mubr.f32.mxu0 0.0
  %756 = vmatmul.mubr.f32.gmra.mrb[0].mxu0 %v687
  %v757 = vpop.f32.mrb[0].mxu0
  %v758 = vadd.f32 0.0, %v757
  %v759 = vpop.f32.mrb[0].mxu0
  %760 = vdwg.mxu0
  %v761 = vmul.f32 %v758, 0.35355338
  %v762 = vsel %vm417, %v761, -inf
  %763 = vmax.xlane.f32.xlu0 %v762
  %v764 = vpop.xlane.xlu0 %763
  %v765 = vsub.f32 %v761, %v764
  %v766 = vmul.f32 %v765, 1.442695
  %v767 = vpow.pop %v766
  %v768 = vsel %vm417, %v767, 0.0
  %769 = vadd.xlane.f32.xlu0 %v768
  %v770 = vpop.xlane.xlu0 %769
  %v771 = vrcp.pop %v770
  %v772 = vmul.f32 %v767, %v771
  %773 = vrot.lane.b32.xlu0 %v330, 48
  %v774 = vpop.permute.xlu0 %773
  %v776 = vsel %vm431, %v772, 0
  %v778 = vsel %vm435, %v774, 0
  %780 = vmatprep.subr.mxu0 0.0
  %781 = vmatpush1.msra.mxu0 %v778
  %782 = vmatprep.subr.mxu0 0.0
  %783 = vmatpush1.msra.mxu0 0.0
  %784 = vmatprep.subr.mxu0 0.0
  %785 = vmatpush1.msra.mxu0 0.0
  %786 = vmatprep.subr.mxu0 0.0
  %787 = vmatpush1.msra.mxu0 0.0
  %788 = vmatprep.subr.mxu0 0.0
  %789 = vmatpush1.msra.mxu0 0.0
  %790 = vmatprep.subr.mxu0 0.0
  %791 = vmatpush1.msra.mxu0 0.0
  %792 = vmatprep.subr.mxu0 0.0
  %793 = vmatpush1.msra.mxu0 0.0
  %794 = vmatprep.subr.mxu0 0.0
  %795 = vmatpush1.msra.mxu0 0.0
  %796 = vmatprep.subr.mxu0 0.0
  %797 = vmatpush1.msra.mxu0 0.0
  %798 = vmatprep.subr.mxu0 0.0
  %799 = vmatpush1.msra.mxu0 0.0
  %800 = vmatprep.subr.mxu0 0.0
  %801 = vmatpush1.msra.mxu0 0.0
  %802 = vmatprep.subr.mxu0 0.0
  %803 = vmatpush1.msra.mxu0 0.0
  %804 = vmatprep.subr.mxu0 0.0
  %805 = vmatpush1.msra.mxu0 0.0
  %806 = vmatprep.subr.mxu0 0.0
  %807 = vmatpush1.msra.mxu0 0.0
  %808 = vmatprep.subr.mxu0 0.0
  %809 = vmatpush1.msra.mxu0 0.0
  %810 = vmatprep.subr.mxu0 0.0
  %811 = vmatpush1.msra.mxu0 0.0
  %812 = vmatprep.subr.mxu0 0.0
  %813 = vmatpush1.msra.mxu0 0.0
  %814 = vmatprep.subr.mxu0 0.0
  %815 = vmatpush1.msra.mxu0 0.0
  %816 = vmatprep.subr.mxu0 0.0
  %817 = vmatpush1.msra.mxu0 0.0
  %818 = vmatprep.subr.mxu0 0.0
  %819 = vmatpush1.msra.mxu0 0.0
  %820 = vmatprep.subr.mxu0 0.0
  %821 = vmatpush1.msra.mxu0 0.0
  %822 = vmatprep.subr.mxu0 0.0
  %823 = vmatpush1.msra.mxu0 0.0
  %824 = vmatprep.subr.mxu0 0.0
  %825 = vmatpush1.msra.mxu0 0.0
  %826 = vmatprep.subr.mxu0 0.0
  %827 = vmatpush1.msra.mxu0 0.0
  %828 = vmatprep.subr.mxu0 0.0
  %829 = vmatpush1.msra.mxu0 0.0
  %830 = vmatprep.subr.mxu0 0.0
  %831 = vmatpush1.msra.mxu0 0.0
  %832 = vmatprep.subr.mxu0 0.0
  %833 = vmatpush1.msra.mxu0 0.0
  %834 = vmatprep.subr.mxu0 0.0
  %835 = vmatpush1.msra.mxu0 0.0
  %836 = vmatprep.subr.mxu0 0.0
  %837 = vmatpush1.msra.mxu0 0.0
  %838 = vmatprep.subr.mxu0 0.0
  %839 = vmatpush1.msra.mxu0 0.0
  %840 = vmatprep.subr.mxu0 0.0
  %841 = vmatpush1.msra.mxu0 0.0
  %842 = vmatprep.subr.mxu0 0.0
  %843 = vmatpush1.msra.mxu0 0.0
  %844 = vmatprep.mubr.f32.mxu0 0.0
  %845 = vmatmul.mubr.f32.gmra.mrb[0].mxu0 %v776
  %v846 = vpop.f32.mrb[0].mxu0
  %v847 = vadd.f32 0.0, %v846
  %v848 = vpop.f32.mrb[0].mxu0
  %849 = vdwg.mxu0
  %851 = vrot.lane.b32.xlu0 %v847, 16
  %v852 = vpop.permute.xlu0 %851
  %vm854 = vcmask 192640
  %855 = vst.msk [vmem:[#allocation2] sm:$0x1f] %vm854, %v852
  %856 = vrot.lane.b32.xlu0 %v330, 104
  %v857 = vpop.permute.xlu0 %856
  %858 = vrot.lane.b32.xlu0 %v330, 72
  %v859 = vpop.permute.xlu0 %858
  %v860 = vsel %vm341, %v857, 0
  %v862 = vsel %vm341, %v859, 0
  %864 = vmatprep.subr.mxu0 0.0
  %865 = vmatpush1.xpose.msra.mxu0 %v862
  %866 = vmatprep.subr.mxu0 0.0
  %867 = vmatpush1.xpose.msra.mxu0 0.0
  %868 = vmatprep.subr.mxu0 0.0
  %869 = vmatpush1.xpose.msra.mxu0 0.0
  %870 = vmatprep.subr.mxu0 0.0
  %871 = vmatpush1.xpose.msra.mxu0 0.0
  %872 = vmatprep.subr.mxu0 0.0
  %873 = vmatpush1.xpose.msra.mxu0 0.0
  %874 = vmatprep.subr.mxu0 0.0
  %875 = vmatpush1.xpose.msra.mxu0 0.0
  %876 = vmatprep.subr.mxu0 0.0
  %877 = vmatpush1.xpose.msra.mxu0 0.0
  %878 = vmatprep.subr.mxu0 0.0
  %879 = vmatpush1.xpose.msra.mxu0 0.0
  %880 = vmatprep.subr.mxu0 0.0
  %881 = vmatpush1.xpose.msra.mxu0 0.0
  %882 = vmatprep.subr.mxu0 0.0
  %883 = vmatpush1.xpose.msra.mxu0 0.0
  %884 = vmatprep.subr.mxu0 0.0
  %885 = vmatpush1.xpose.msra.mxu0 0.0
  %886 = vmatprep.subr.mxu0 0.0
  %887 = vmatpush1.xpose.msra.mxu0 0.0
  %888 = vmatprep.subr.mxu0 0.0
  %889 = vmatpush1.xpose.msra.mxu0 0.0
  %890 = vmatprep.subr.mxu0 0.0
  %891 = vmatpush1.xpose.msra.mxu0 0.0
  %892 = vmatprep.subr.mxu0 0.0
  %893 = vmatpush1.xpose.msra.mxu0 0.0
  %894 = vmatprep.subr.mxu0 0.0
  %895 = vmatpush1.xpose.msra.mxu0 0.0
  %896 = vmatprep.subr.mxu0 0.0
  %897 = vmatpush1.xpose.msra.mxu0 0.0
  %898 = vmatprep.subr.mxu0 0.0
  %899 = vmatpush1.xpose.msra.mxu0 0.0
  %900 = vmatprep.subr.mxu0 0.0
  %901 = vmatpush1.xpose.msra.mxu0 0.0
  %902 = vmatprep.subr.mxu0 0.0
  %903 = vmatpush1.xpose.msra.mxu0 0.0
  %904 = vmatprep.subr.mxu0 0.0
  %905 = vmatpush1.xpose.msra.mxu0 0.0
  %906 = vmatprep.subr.mxu0 0.0
  %907 = vmatpush1.xpose.msra.mxu0 0.0
  %908 = vmatprep.subr.mxu0 0.0
  %909 = vmatpush1.xpose.msra.mxu0 0.0
  %910 = vmatprep.subr.mxu0 0.0
  %911 = vmatpush1.xpose.msra.mxu0 0.0
  %912 = vmatprep.subr.mxu0 0.0
  %913 = vmatpush1.xpose.msra.mxu0 0.0
  %914 = vmatprep.subr.mxu0 0.0
  %915 = vmatpush1.xpose.msra.mxu0 0.0
  %916 = vmatprep.subr.mxu0 0.0
  %917 = vmatpush1.xpose.msra.mxu0 0.0
  %918 = vmatprep.subr.mxu0 0.0
  %919 = vmatpush1.xpose.msra.mxu0 0.0
  %920 = vmatprep.subr.mxu0 0.0
  %921 = vmatpush1.xpose.msra.mxu0 0.0
  %922 = vmatprep.subr.mxu0 0.0
  %923 = vmatpush1.xpose.msra.mxu0 0.0
  %924 = vmatprep.subr.mxu0 0.0
  %925 = vmatpush1.xpose.msra.mxu0 0.0
  %926 = vmatprep.subr.mxu0 0.0
  %927 = vmatpush1.xpose.msra.mxu0 0.0
  %928 = vmatprep.mubr.f32.mxu0 0.0
  %929 = vmatmul.mubr.f32.gmra.mrb[0].mxu0 %v860
  %v930 = vpop.f32.mrb[0].mxu0
  %v931 = vadd.f32 0.0, %v930
  %v932 = vpop.f32.mrb[0].mxu0
  %933 = vdwg.mxu0
  %v934 = vmul.f32 %v931, 0.35355338
  %v935 = vsel %vm417, %v934, -inf
  %936 = vmax.xlane.f32.xlu0 %v935
  %v937 = vpop.xlane.xlu0 %936
  %v938 = vsub.f32 %v934, %v937
  %v939 = vmul.f32 %v938, 1.442695
  %v940 = vpow.pop %v939
  %v941 = vsel %vm417, %v940, 0.0
  %942 = vadd.xlane.f32.xlu0 %v941
  %v943 = vpop.xlane.xlu0 %942
  %v944 = vrcp.pop %v943
  %v945 = vmul.f32 %v940, %v944
  %946 = vrot.lane.b32.xlu0 %v330, 40
  %v947 = vpop.permute.xlu0 %946
  %v949 = vsel %vm431, %v945, 0
  %v951 = vsel %vm435, %v947, 0
  %953 = vmatprep.subr.mxu0 0.0
  %954 = vmatpush1.msra.mxu0 %v951
  %955 = vmatprep.subr.mxu0 0.0
  %956 = vmatpush1.msra.mxu0 0.0
  %957 = vmatprep.subr.mxu0 0.0
  %958 = vmatpush1.msra.mxu0 0.0
  %959 = vmatprep.subr.mxu0 0.0
  %960 = vmatpush1.msra.mxu0 0.0
  %961 = vmatprep.subr.mxu0 0.0
  %962 = vmatpush1.msra.mxu0 0.0
  %963 = vmatprep.subr.mxu0 0.0
  %964 = vmatpush1.msra.mxu0 0.0
  %965 = vmatprep.subr.mxu0 0.0
  %966 = vmatpush1.msra.mxu0 0.0
  %967 = vmatprep.subr.mxu0 0.0
  %968 = vmatpush1.msra.mxu0 0.0
  %969 = vmatprep.subr.mxu0 0.0
  %970 = vmatpush1.msra.mxu0 0.0
  %971 = vmatprep.subr.mxu0 0.0
  %972 = vmatpush1.msra.mxu0 0.0
  %973 = vmatprep.subr.mxu0 0.0
  %974 = vmatpush1.msra.mxu0 0.0
  %975 = vmatprep.subr.mxu0 0.0
  %976 = vmatpush1.msra.mxu0 0.0
  %977 = vmatprep.subr.mxu0 0.0
  %978 = vmatpush1.msra.mxu0 0.0
  %979 = vmatprep.subr.mxu0 0.0
  %980 = vmatpush1.msra.mxu0 0.0
  %981 = vmatprep.subr.mxu0 0.0
  %982 = vmatpush1.msra.mxu0 0.0
  %983 = vmatprep.subr.mxu0 0.0
  %984 = vmatpush1.msra.mxu0 0.0
  %985 = vmatprep.subr.mxu0 0.0
  %986 = vmatpush1.msra.mxu0 0.0
  %987 = vmatprep.subr.mxu0 0.0
  %988 = vmatpush1.msra.mxu0 0.0
  %989 = vmatprep.subr.mxu0 0.0
  %990 = vmatpush1.msra.mxu0 0.0
  %991 = vmatprep.subr.mxu0 0.0
  %992 = vmatpush1.msra.mxu0 0.0
  %993 = vmatprep.subr.mxu0 0.0
  %994 = vmatpush1.msra.mxu0 0.0
  %995 = vmatprep.subr.mxu0 0.0
  %996 = vmatpush1.msra.mxu0 0.0
  %997 = vmatprep.subr.mxu0 0.0
  %998 = vmatpush1.msra.mxu0 0.0
  %999 = vmatprep.subr.mxu0 0.0
  %1000 = vmatpush1.msra.mxu0 0.0
  %1001 = vmatprep.subr.mxu0 0.0
  %1002 = vmatpush1.msra.mxu0 0.0
  %1003 = vmatprep.subr.mxu0 0.0
  %1004 = vmatpush1.msra.mxu0 0.0
  %1005 = vmatprep.subr.mxu0 0.0
  %1006 = vmatpush1.msra.mxu0 0.0
  %1007 = vmatprep.subr.mxu0 0.0
  %1008 = vmatpush1.msra.mxu0 0.0
  %1009 = vmatprep.subr.mxu0 0.0
  %1010 = vmatpush1.msra.mxu0 0.0
  %1011 = vmatprep.subr.mxu0 0.0
  %1012 = vmatpush1.msra.mxu0 0.0
  %1013 = vmatprep.subr.mxu0 0.0
  %1014 = vmatpush1.msra.mxu0 0.0
  %1015 = vmatprep.subr.mxu0 0.0
  %1016 = vmatpush1.msra.mxu0 0.0
  %1017 = vmatprep.mubr.f32.mxu0 0.0
  %1018 = vmatmul.mubr.f32.gmra.mrb[0].mxu0 %v949
  %v1019 = vpop.f32.mrb[0].mxu0
  %v1020 = vadd.f32 0.0, %v1019
  %v1021 = vpop.f32.mrb[0].mxu0
  %1022 = vdwg.mxu0
  %1024 = vrot.lane.b32.xlu0 %v1020, 24
  %v1025 = vpop.permute.xlu0 %1024
  %vm1027 = vcmask 258240
  %1028 = vst.msk [vmem:[#allocation2] sm:$0x1f] %vm1027, %v1025
  %vm1030 = vcmask 1042432
  %v1031 = vrot.slane %v330, 5
  %v1032 = vrot.slane %v335, 5
  %v1033 = vsel %vm1030, %v1031, %v1032
  %1034 = vrot.lane.b32.xlu0 %v1033, 96
  %v1035 = vpop.permute.xlu0 %1034
  %v1036 = vsel %vm341, %v1033, 0
  %v1038 = vsel %vm341, %v1035, 0
  %1040 = vmatprep.subr.mxu0 0.0
  %1041 = vmatpush1.xpose.msra.mxu0 %v1038
  %1042 = vmatprep.subr.mxu0 0.0
  %1043 = vmatpush1.xpose.msra.mxu0 0.0
  %1044 = vmatprep.subr.mxu0 0.0
  %1045 = vmatpush1.xpose.msra.mxu0 0.0
  %1046 = vmatprep.subr.mxu0 0.0
  %1047 = vmatpush1.xpose.msra.mxu0 0.0
  %1048 = vmatprep.subr.mxu0 0.0
  %1049 = vmatpush1.xpose.msra.mxu0 0.0
  %1050 = vmatprep.subr.mxu0 0.0
  %1051 = vmatpush1.xpose.msra.mxu0 0.0
  %1052 = vmatprep.subr.mxu0 0.0
  %1053 = vmatpush1.xpose.msra.mxu0 0.0
  %1054 = vmatprep.subr.mxu0 0.0
  %1055 = vmatpush1.xpose.msra.mxu0 0.0
  %1056 = vmatprep.subr.mxu0 0.0
  %1057 = vmatpush1.xpose.msra.mxu0 0.0
  %1058 = vmatprep.subr.mxu0 0.0
  %1059 = vmatpush1.xpose.msra.mxu0 0.0
  %1060 = vmatprep.subr.mxu0 0.0
  %1061 = vmatpush1.xpose.msra.mxu0 0.0
  %1062 = vmatprep.subr.mxu0 0.0
  %1063 = vmatpush1.xpose.msra.mxu0 0.0
  %1064 = vmatprep.subr.mxu0 0.0
  %1065 = vmatpush1.xpose.msra.mxu0 0.0
  %1066 = vmatprep.subr.mxu0 0.0
  %1067 = vmatpush1.xpose.msra.mxu0 0.0
  %1068 = vmatprep.subr.mxu0 0.0
  %1069 = vmatpush1.xpose.msra.mxu0 0.0
  %1070 = vmatprep.subr.mxu0 0.0
  %1071 = vmatpush1.xpose.msra.mxu0 0.0
  %1072 = vmatprep.subr.mxu0 0.0
  %1073 = vmatpush1.xpose.msra.mxu0 0.0
  %1074 = vmatprep.subr.mxu0 0.0
  %1075 = vmatpush1.xpose.msra.mxu0 0.0
  %1076 = vmatprep.subr.mxu0 0.0
  %1077 = vmatpush1.xpose.msra.mxu0 0.0
  %1078 = vmatprep.subr.mxu0 0.0
  %1079 = vmatpush1.xpose.msra.mxu0 0.0
  %1080 = vmatprep.subr.mxu0 0.0
  %1081 = vmatpush1.xpose.msra.mxu0 0.0
  %1082 = vmatprep.subr.mxu0 0.0
  %1083 = vmatpush1.xpose.msra.mxu0 0.0
  %1084 = vmatprep.subr.mxu0 0.0
  %1085 = vmatpush1.xpose.msra.mxu0 0.0
  %1086 = vmatprep.subr.mxu0 0.0
  %1087 = vmatpush1.xpose.msra.mxu0 0.0
  %1088 = vmatprep.subr.mxu0 0.0
  %1089 = vmatpush1.xpose.msra.mxu0 0.0
  %1090 = vmatprep.subr.mxu0 0.0
  %1091 = vmatpush1.xpose.msra.mxu0 0.0
  %1092 = vmatprep.subr.mxu0 0.0
  %1093 = vmatpush1.xpose.msra.mxu0 0.0
  %1094 = vmatprep.subr.mxu0 0.0
  %1095 = vmatpush1.xpose.msra.mxu0 0.0
  %1096 = vmatprep.subr.mxu0 0.0
  %1097 = vmatpush1.xpose.msra.mxu0 0.0
  %1098 = vmatprep.subr.mxu0 0.0
  %1099 = vmatpush1.xpose.msra.mxu0 0.0
  %1100 = vmatprep.subr.mxu0 0.0
  %1101 = vmatpush1.xpose.msra.mxu0 0.0
  %1102 = vmatprep.subr.mxu0 0.0
  %1103 = vmatpush1.xpose.msra.mxu0 0.0
  %1104 = vmatprep.mubr.f32.mxu0 0.0
  %1105 = vmatmul.mubr.f32.gmra.mrb[0].mxu0 %v1036
  %v1106 = vpop.f32.mrb[0].mxu0
  %v1107 = vadd.f32 0.0, %v1106
  %v1108 = vpop.f32.mrb[0].mxu0
  %1109 = vdwg.mxu0
  %v1110 = vmul.f32 %v1107, 0.35355338
  %v1111 = vsel %vm417, %v1110, -inf
  %1112 = vmax.xlane.f32.xlu0 %v1111
  %v1113 = vpop.xlane.xlu0 %1112
  %v1114 = vsub.f32 %v1110, %v1113
  %v1115 = vmul.f32 %v1114, 1.442695
  %v1116 = vpow.pop %v1115
  %v1117 = vsel %vm417, %v1116, 0.0
  %1118 = vadd.xlane.f32.xlu0 %v1117
  %v1119 = vpop.xlane.xlu0 %1118
  %v1120 = vrcp.pop %v1119
  %v1121 = vmul.f32 %v1116, %v1120
  %1122 = vrot.lane.b32.xlu0 %v1033, 64
  %v1123 = vpop.permute.xlu0 %1122
  %v1125 = vsel %vm431, %v1121, 0
  %v1127 = vsel %vm435, %v1123, 0
  %1129 = vmatprep.subr.mxu0 0.0
  %1130 = vmatpush1.msra.mxu0 %v1127
  %1131 = vmatprep.subr.mxu0 0.0
  %1132 = vmatpush1.msra.mxu0 0.0
  %1133 = vmatprep.subr.mxu0 0.0
  %1134 = vmatpush1.msra.mxu0 0.0
  %1135 = vmatprep.subr.mxu0 0.0
  %1136 = vmatpush1.msra.mxu0 0.0
  %1137 = vmatprep.subr.mxu0 0.0
  %1138 = vmatpush1.msra.mxu0 0.0
  %1139 = vmatprep.subr.mxu0 0.0
  %1140 = vmatpush1.msra.mxu0 0.0
  %1141 = vmatprep.subr.mxu0 0.0
  %1142 = vmatpush1.msra.mxu0 0.0
  %1143 = vmatprep.subr.mxu0 0.0
  %1144 = vmatpush1.msra.mxu0 0.0
  %1145 = vmatprep.subr.mxu0 0.0
  %1146 = vmatpush1.msra.mxu0 0.0
  %1147 = vmatprep.subr.mxu0 0.0
  %1148 = vmatpush1.msra.mxu0 0.0
  %1149 = vmatprep.subr.mxu0 0.0
  %1150 = vmatpush1.msra.mxu0 0.0
  %1151 = vmatprep.subr.mxu0 0.0
  %1152 = vmatpush1.msra.mxu0 0.0
  %1153 = vmatprep.subr.mxu0 0.0
  %1154 = vmatpush1.msra.mxu0 0.0
  %1155 = vmatprep.subr.mxu0 0.0
  %1156 = vmatpush1.msra.mxu0 0.0
  %1157 = vmatprep.subr.mxu0 0.0
  %1158 = vmatpush1.msra.mxu0 0.0
  %1159 = vmatprep.subr.mxu0 0.0
  %1160 = vmatpush1.msra.mxu0 0.0
  %1161 = vmatprep.subr.mxu0 0.0
  %1162 = vmatpush1.msra.mxu0 0.0
  %1163 = vmatprep.subr.mxu0 0.0
  %1164 = vmatpush1.msra.mxu0 0.0
  %1165 = vmatprep.subr.mxu0 0.0
  %1166 = vmatpush1.msra.mxu0 0.0
  %1167 = vmatprep.subr.mxu0 0.0
  %1168 = vmatpush1.msra.mxu0 0.0
  %1169 = vmatprep.subr.mxu0 0.0
  %1170 = vmatpush1.msra.mxu0 0.0
  %1171 = vmatprep.subr.mxu0 0.0
  %1172 = vmatpush1.msra.mxu0 0.0
  %1173 = vmatprep.subr.mxu0 0.0
  %1174 = vmatpush1.msra.mxu0 0.0
  %1175 = vmatprep.subr.mxu0 0.0
  %1176 = vmatpush1.msra.mxu0 0.0
  %1177 = vmatprep.subr.mxu0 0.0
  %1178 = vmatpush1.msra.mxu0 0.0
  %1179 = vmatprep.subr.mxu0 0.0
  %1180 = vmatpush1.msra.mxu0 0.0
  %1181 = vmatprep.subr.mxu0 0.0
  %1182 = vmatpush1.msra.mxu0 0.0
  %1183 = vmatprep.subr.mxu0 0.0
  %1184 = vmatpush1.msra.mxu0 0.0
  %1185 = vmatprep.subr.mxu0 0.0
  %1186 = vmatpush1.msra.mxu0 0.0
  %1187 = vmatprep.subr.mxu0 0.0
  %1188 = vmatpush1.msra.mxu0 0.0
  %1189 = vmatprep.subr.mxu0 0.0
  %1190 = vmatpush1.msra.mxu0 0.0
  %1191 = vmatprep.subr.mxu0 0.0
  %1192 = vmatpush1.msra.mxu0 0.0
  %1193 = vmatprep.mubr.f32.mxu0 0.0
  %1194 = vmatmul.mubr.f32.gmra.mrb[0].mxu0 %v1125
  %v1195 = vpop.f32.mrb[0].mxu0
  %v1196 = vadd.f32 0.0, %v1195
  %v1197 = vpop.f32.mrb[0].mxu0
  %1198 = vdwg.mxu0
  %1199 = vst.msk [vmem:[#allocation2 + $0x5] sm:$0x1f] %vm508, %v1196
  %1200 = vrot.lane.b32.xlu0 %v1033, 120
  %v1201 = vpop.permute.xlu0 %1200
  %1202 = vrot.lane.b32.xlu0 %v1033, 88
  %v1203 = vpop.permute.xlu0 %1202
  %v1204 = vsel %vm341, %v1201, 0
  %v1206 = vsel %vm341, %v1203, 0
  %1208 = vmatprep.subr.mxu0 0.0
  %1209 = vmatpush1.xpose.msra.mxu0 %v1206
  %1210 = vmatprep.subr.mxu0 0.0
  %1211 = vmatpush1.xpose.msra.mxu0 0.0
  %1212 = vmatprep.subr.mxu0 0.0
  %1213 = vmatpush1.xpose.msra.mxu0 0.0
  %1214 = vmatprep.subr.mxu0 0.0
  %1215 = vmatpush1.xpose.msra.mxu0 0.0
  %1216 = vmatprep.subr.mxu0 0.0
  %1217 = vmatpush1.xpose.msra.mxu0 0.0
  %1218 = vmatprep.subr.mxu0 0.0
  %1219 = vmatpush1.xpose.msra.mxu0 0.0
  %1220 = vmatprep.subr.mxu0 0.0
  %1221 = vmatpush1.xpose.msra.mxu0 0.0
  %1222 = vmatprep.subr.mxu0 0.0
  %1223 = vmatpush1.xpose.msra.mxu0 0.0
  %1224 = vmatprep.subr.mxu0 0.0
  %1225 = vmatpush1.xpose.msra.mxu0 0.0
  %1226 = vmatprep.subr.mxu0 0.0
  %1227 = vmatpush1.xpose.msra.mxu0 0.0
  %1228 = vmatprep.subr.mxu0 0.0
  %1229 = vmatpush1.xpose.msra.mxu0 0.0
  %1230 = vmatprep.subr.mxu0 0.0
  %1231 = vmatpush1.xpose.msra.mxu0 0.0
  %1232 = vmatprep.subr.mxu0 0.0
  %1233 = vmatpush1.xpose.msra.mxu0 0.0
  %1234 = vmatprep.subr.mxu0 0.0
  %1235 = vmatpush1.xpose.msra.mxu0 0.0
  %1236 = vmatprep.subr.mxu0 0.0
  %1237 = vmatpush1.xpose.msra.mxu0 0.0
  %1238 = vmatprep.subr.mxu0 0.0
  %1239 = vmatpush1.xpose.msra.mxu0 0.0
  %1240 = vmatprep.subr.mxu0 0.0
  %1241 = vmatpush1.xpose.msra.mxu0 0.0
  %1242 = vmatprep.subr.mxu0 0.0
  %1243 = vmatpush1.xpose.msra.mxu0 0.0
  %1244 = vmatprep.subr.mxu0 0.0
  %1245 = vmatpush1.xpose.msra.mxu0 0.0
  %1246 = vmatprep.subr.mxu0 0.0
  %1247 = vmatpush1.xpose.msra.mxu0 0.0
  %1248 = vmatprep.subr.mxu0 0.0
  %1249 = vmatpush1.xpose.msra.mxu0 0.0
  %1250 = vmatprep.subr.mxu0 0.0
  %1251 = vmatpush1.xpose.msra.mxu0 0.0
  %1252 = vmatprep.subr.mxu0 0.0
  %1253 = vmatpush1.xpose.msra.mxu0 0.0
  %1254 = vmatprep.subr.mxu0 0.0
  %1255 = vmatpush1.xpose.msra.mxu0 0.0
  %1256 = vmatprep.subr.mxu0 0.0
  %1257 = vmatpush1.xpose.msra.mxu0 0.0
  %1258 = vmatprep.subr.mxu0 0.0
  %1259 = vmatpush1.xpose.msra.mxu0 0.0
  %1260 = vmatprep.subr.mxu0 0.0
  %1261 = vmatpush1.xpose.msra.mxu0 0.0
  %1262 = vmatprep.subr.mxu0 0.0
  %1263 = vmatpush1.xpose.msra.mxu0 0.0
  %1264 = vmatprep.subr.mxu0 0.0
  %1265 = vmatpush1.xpose.msra.mxu0 0.0
  %1266 = vmatprep.subr.mxu0 0.0
  %1267 = vmatpush1.xpose.msra.mxu0 0.0
  %1268 = vmatprep.subr.mxu0 0.0
  %1269 = vmatpush1.xpose.msra.mxu0 0.0
  %1270 = vmatprep.subr.mxu0 0.0
  %1271 = vmatpush1.xpose.msra.mxu0 0.0
  %1272 = vmatprep.mubr.f32.mxu0 0.0
  %1273 = vmatmul.mubr.f32.gmra.mrb[0].mxu0 %v1204
  %v1274 = vpop.f32.mrb[0].mxu0
  %v1275 = vadd.f32 0.0, %v1274
  %v1276 = vpop.f32.mrb[0].mxu0
  %1277 = vdwg.mxu0
  %v1278 = vmul.f32 %v1275, 0.35355338
  %v1279 = vsel %vm417, %v1278, -inf
  %1280 = vmax.xlane.f32.xlu0 %v1279
  %v1281 = vpop.xlane.xlu0 %1280
  %v1282 = vsub.f32 %v1278, %v1281
  %v1283 = vmul.f32 %v1282, 1.442695
  %v1284 = vpow.pop %v1283
  %v1285 = vsel %vm417, %v1284, 0.0
  %1286 = vadd.xlane.f32.xlu0 %v1285
  %v1287 = vpop.xlane.xlu0 %1286
  %v1288 = vrcp.pop %v1287
  %v1289 = vmul.f32 %v1284, %v1288
  %1290 = vrot.lane.b32.xlu0 %v1033, 56
  %v1291 = vpop.permute.xlu0 %1290
  %v1293 = vsel %vm431, %v1289, 0
  %v1295 = vsel %vm435, %v1291, 0
  %1297 = vmatprep.subr.mxu0 0.0
  %1298 = vmatpush1.msra.mxu0 %v1295
  %1299 = vmatprep.subr.mxu0 0.0
  %1300 = vmatpush1.msra.mxu0 0.0
  %1301 = vmatprep.subr.mxu0 0.0
  %1302 = vmatpush1.msra.mxu0 0.0
  %1303 = vmatprep.subr.mxu0 0.0
  %1304 = vmatpush1.msra.mxu0 0.0
  %1305 = vmatprep.subr.mxu0 0.0
  %1306 = vmatpush1.msra.mxu0 0.0
  %1307 = vmatprep.subr.mxu0 0.0
  %1308 = vmatpush1.msra.mxu0 0.0
  %1309 = vmatprep.subr.mxu0 0.0
  %1310 = vmatpush1.msra.mxu0 0.0
  %1311 = vmatprep.subr.mxu0 0.0
  %1312 = vmatpush1.msra.mxu0 0.0
  %1313 = vmatprep.subr.mxu0 0.0
  %1314 = vmatpush1.msra.mxu0 0.0
  %1315 = vmatprep.subr.mxu0 0.0
  %1316 = vmatpush1.msra.mxu0 0.0
  %1317 = vmatprep.subr.mxu0 0.0
  %1318 = vmatpush1.msra.mxu0 0.0
  %1319 = vmatprep.subr.mxu0 0.0
  %1320 = vmatpush1.msra.mxu0 0.0
  %1321 = vmatprep.subr.mxu0 0.0
  %1322 = vmatpush1.msra.mxu0 0.0
  %1323 = vmatprep.subr.mxu0 0.0
  %1324 = vmatpush1.msra.mxu0 0.0
  %1325 = vmatprep.subr.mxu0 0.0
  %1326 = vmatpush1.msra.mxu0 0.0
  %1327 = vmatprep.subr.mxu0 0.0
  %1328 = vmatpush1.msra.mxu0 0.0
  %1329 = vmatprep.subr.mxu0 0.0
  %1330 = vmatpush1.msra.mxu0 0.0
  %1331 = vmatprep.subr.mxu0 0.0
  %1332 = vmatpush1.msra.mxu0 0.0
  %1333 = vmatprep.subr.mxu0 0.0
  %1334 = vmatpush1.msra.mxu0 0.0
  %1335 = vmatprep.subr.mxu0 0.0
  %1336 = vmatpush1.msra.mxu0 0.0
  %1337 = vmatprep.subr.mxu0 0.0
  %1338 = vmatpush1.msra.mxu0 0.0
  %1339 = vmatprep.subr.mxu0 0.0
  %1340 = vmatpush1.msra.mxu0 0.0
  %1341 = vmatprep.subr.mxu0 0.0
  %1342 = vmatpush1.msra.mxu0 0.0
  %1343 = vmatprep.subr.mxu0 0.0
  %1344 = vmatpush1.msra.mxu0 0.0
  %1345 = vmatprep.subr.mxu0 0.0
  %1346 = vmatpush1.msra.mxu0 0.0
  %1347 = vmatprep.subr.mxu0 0.0
  %1348 = vmatpush1.msra.mxu0 0.0
  %1349 = vmatprep.subr.mxu0 0.0
  %1350 = vmatpush1.msra.mxu0 0.0
  %1351 = vmatprep.subr.mxu0 0.0
  %1352 = vmatpush1.msra.mxu0 0.0
  %1353 = vmatprep.subr.mxu0 0.0
  %1354 = vmatpush1.msra.mxu0 0.0
  %1355 = vmatprep.subr.mxu0 0.0
  %1356 = vmatpush1.msra.mxu0 0.0
  %1357 = vmatprep.subr.mxu0 0.0
  %1358 = vmatpush1.msra.mxu0 0.0
  %1359 = vmatprep.subr.mxu0 0.0
  %1360 = vmatpush1.msra.mxu0 0.0
  %1361 = vmatprep.mubr.f32.mxu0 0.0
  %1362 = vmatmul.mubr.f32.gmra.mrb[0].mxu0 %v1293
  %v1363 = vpop.f32.mrb[0].mxu0
  %v1364 = vadd.f32 0.0, %v1363
  %v1365 = vpop.f32.mrb[0].mxu0
  %1366 = vdwg.mxu0
  %1368 = vrot.lane.b32.xlu0 %v1364, 8
  %v1369 = vpop.permute.xlu0 %1368
  %1371 = vst.msk [vmem:[#allocation2 + $0x5] sm:$0x1f] %vm681, %v1369
  %1372 = vrot.lane.b32.xlu0 %v1033, 112
  %v1373 = vpop.permute.xlu0 %1372
  %1374 = vrot.lane.b32.xlu0 %v1033, 80
  %v1375 = vpop.permute.xlu0 %1374
  %v1376 = vsel %vm341, %v1373, 0
  %v1378 = vsel %vm341, %v1375, 0
  %1380 = vmatprep.subr.mxu0 0.0
  %1381 = vmatpush1.xpose.msra.mxu0 %v1378
  %1382 = vmatprep.subr.mxu0 0.0
  %1383 = vmatpush1.xpose.msra.mxu0 0.0
  %1384 = vmatprep.subr.mxu0 0.0
  %1385 = vmatpush1.xpose.msra.mxu0 0.0
  %1386 = vmatprep.subr.mxu0 0.0
  %1387 = vmatpush1.xpose.msra.mxu0 0.0
  %1388 = vmatprep.subr.mxu0 0.0
  %1389 = vmatpush1.xpose.msra.mxu0 0.0
  %1390 = vmatprep.subr.mxu0 0.0
  %1391 = vmatpush1.xpose.msra.mxu0 0.0
  %1392 = vmatprep.subr.mxu0 0.0
  %1393 = vmatpush1.xpose.msra.mxu0 0.0
  %1394 = vmatprep.subr.mxu0 0.0
  %1395 = vmatpush1.xpose.msra.mxu0 0.0
  %1396 = vmatprep.subr.mxu0 0.0
  %1397 = vmatpush1.xpose.msra.mxu0 0.0
  %1398 = vmatprep.subr.mxu0 0.0
  %1399 = vmatpush1.xpose.msra.mxu0 0.0
  %1400 = vmatprep.subr.mxu0 0.0
  %1401 = vmatpush1.xpose.msra.mxu0 0.0
  %1402 = vmatprep.subr.mxu0 0.0
  %1403 = vmatpush1.xpose.msra.mxu0 0.0
  %1404 = vmatprep.subr.mxu0 0.0
  %1405 = vmatpush1.xpose.msra.mxu0 0.0
  %1406 = vmatprep.subr.mxu0 0.0
  %1407 = vmatpush1.xpose.msra.mxu0 0.0
  %1408 = vmatprep.subr.mxu0 0.0
  %1409 = vmatpush1.xpose.msra.mxu0 0.0
  %1410 = vmatprep.subr.mxu0 0.0
  %1411 = vmatpush1.xpose.msra.mxu0 0.0
  %1412 = vmatprep.subr.mxu0 0.0
  %1413 = vmatpush1.xpose.msra.mxu0 0.0
  %1414 = vmatprep.subr.mxu0 0.0
  %1415 = vmatpush1.xpose.msra.mxu0 0.0
  %1416 = vmatprep.subr.mxu0 0.0
  %1417 = vmatpush1.xpose.msra.mxu0 0.0
  %1418 = vmatprep.subr.mxu0 0.0
  %1419 = vmatpush1.xpose.msra.mxu0 0.0
  %1420 = vmatprep.subr.mxu0 0.0
  %1421 = vmatpush1.xpose.msra.mxu0 0.0
  %1422 = vmatprep.subr.mxu0 0.0
  %1423 = vmatpush1.xpose.msra.mxu0 0.0
  %1424 = vmatprep.subr.mxu0 0.0
  %1425 = vmatpush1.xpose.msra.mxu0 0.0
  %1426 = vmatprep.subr.mxu0 0.0
  %1427 = vmatpush1.xpose.msra.mxu0 0.0
  %1428 = vmatprep.subr.mxu0 0.0
  %1429 = vmatpush1.xpose.msra.mxu0 0.0
  %1430 = vmatprep.subr.mxu0 0.0
  %1431 = vmatpush1.xpose.msra.mxu0 0.0
  %1432 = vmatprep.subr.mxu0 0.0
  %1433 = vmatpush1.xpose.msra.mxu0 0.0
  %1434 = vmatprep.subr.mxu0 0.0
  %1435 = vmatpush1.xpose.msra.mxu0 0.0
  %1436 = vmatprep.subr.mxu0 0.0
  %1437 = vmatpush1.xpose.msra.mxu0 0.0
  %1438 = vmatprep.subr.mxu0 0.0
  %1439 = vmatpush1.xpose.msra.mxu0 0.0
  %1440 = vmatprep.subr.mxu0 0.0
  %1441 = vmatpush1.xpose.msra.mxu0 0.0
  %1442 = vmatprep.subr.mxu0 0.0
  %1443 = vmatpush1.xpose.msra.mxu0 0.0
  %1444 = vmatprep.mubr.f32.mxu0 0.0
  %1445 = vmatmul.mubr.f32.gmra.mrb[0].mxu0 %v1376
  %v1446 = vpop.f32.mrb[0].mxu0
  %v1447 = vadd.f32 0.0, %v1446
  %v1448 = vpop.f32.mrb[0].mxu0
  %1449 = vdwg.mxu0
  %v1450 = vmul.f32 %v1447, 0.35355338
  %v1451 = vsel %vm417, %v1450, -inf
  %1452 = vmax.xlane.f32.xlu0 %v1451
  %v1453 = vpop.xlane.xlu0 %1452
  %v1454 = vsub.f32 %v1450, %v1453
  %v1455 = vmul.f32 %v1454, 1.442695
  %v1456 = vpow.pop %v1455
  %v1457 = vsel %vm417, %v1456, 0.0
  %1458 = vadd.xlane.f32.xlu0 %v1457
  %v1459 = vpop.xlane.xlu0 %1458
  %v1460 = vrcp.pop %v1459
  %v1461 = vmul.f32 %v1456, %v1460
  %1462 = vrot.lane.b32.xlu0 %v1033, 48
  %v1463 = vpop.permute.xlu0 %1462
  %v1465 = vsel %vm431, %v1461, 0
  %v1467 = vsel %vm435, %v1463, 0
  %1469 = vmatprep.subr.mxu0 0.0
  %1470 = vmatpush1.msra.mxu0 %v1467
  %1471 = vmatprep.subr.mxu0 0.0
  %1472 = vmatpush1.msra.mxu0 0.0
  %1473 = vmatprep.subr.mxu0 0.0
  %1474 = vmatpush1.msra.mxu0 0.0
  %1475 = vmatprep.subr.mxu0 0.0
  %1476 = vmatpush1.msra.mxu0 0.0
  %1477 = vmatprep.subr.mxu0 0.0
  %1478 = vmatpush1.msra.mxu0 0.0
  %1479 = vmatprep.subr.mxu0 0.0
  %1480 = vmatpush1.msra.mxu0 0.0
  %1481 = vmatprep.subr.mxu0 0.0
  %1482 = vmatpush1.msra.mxu0 0.0
  %1483 = vmatprep.subr.mxu0 0.0
  %1484 = vmatpush1.msra.mxu0 0.0
  %1485 = vmatprep.subr.mxu0 0.0
  %1486 = vmatpush1.msra.mxu0 0.0
  %1487 = vmatprep.subr.mxu0 0.0
  %1488 = vmatpush1.msra.mxu0 0.0
  %1489 = vmatprep.subr.mxu0 0.0
  %1490 = vmatpush1.msra.mxu0 0.0
  %1491 = vmatprep.subr.mxu0 0.0
  %1492 = vmatpush1.msra.mxu0 0.0
  %1493 = vmatprep.subr.mxu0 0.0
  %1494 = vmatpush1.msra.mxu0 0.0
  %1495 = vmatprep.subr.mxu0 0.0
  %1496 = vmatpush1.msra.mxu0 0.0
  %1497 = vmatprep.subr.mxu0 0.0
  %1498 = vmatpush1.msra.mxu0 0.0
  %1499 = vmatprep.subr.mxu0 0.0
  %1500 = vmatpush1.msra.mxu0 0.0
  %1501 = vmatprep.subr.mxu0 0.0
  %1502 = vmatpush1.msra.mxu0 0.0
  %1503 = vmatprep.subr.mxu0 0.0
  %1504 = vmatpush1.msra.mxu0 0.0
  %1505 = vmatprep.subr.mxu0 0.0
  %1506 = vmatpush1.msra.mxu0 0.0
  %1507 = vmatprep.subr.mxu0 0.0
  %1508 = vmatpush1.msra.mxu0 0.0
  %1509 = vmatprep.subr.mxu0 0.0
  %1510 = vmatpush1.msra.mxu0 0.0
  %1511 = vmatprep.subr.mxu0 0.0
  %1512 = vmatpush1.msra.mxu0 0.0
  %1513 = vmatprep.subr.mxu0 0.0
  %1514 = vmatpush1.msra.mxu0 0.0
  %1515 = vmatprep.subr.mxu0 0.0
  %1516 = vmatpush1.msra.mxu0 0.0
  %1517 = vmatprep.subr.mxu0 0.0
  %1518 = vmatpush1.msra.mxu0 0.0
  %1519 = vmatprep.subr.mxu0 0.0
  %1520 = vmatpush1.msra.mxu0 0.0
  %1521 = vmatprep.subr.mxu0 0.0
  %1522 = vmatpush1.msra.mxu0 0.0
  %1523 = vmatprep.subr.mxu0 0.0
  %1524 = vmatpush1.msra.mxu0 0.0
  %1525 = vmatprep.subr.mxu0 0.0
  %1526 = vmatpush1.msra.mxu0 0.0
  %1527 = vmatprep.subr.mxu0 0.0
  %1528 = vmatpush1.msra.mxu0 0.0
  %1529 = vmatprep.subr.mxu0 0.0
  %1530 = vmatpush1.msra.mxu0 0.0
  %1531 = vmatprep.subr.mxu0 0.0
  %1532 = vmatpush1.msra.mxu0 0.0
  %1533 = vmatprep.mubr.f32.mxu0 0.0
  %1534 = vmatmul.mubr.f32.gmra.mrb[0].mxu0 %v1465
  %v1535 = vpop.f32.mrb[0].mxu0
  %v1536 = vadd.f32 0.0, %v1535
  %v1537 = vpop.f32.mrb[0].mxu0
  %1538 = vdwg.mxu0
  %1540 = vrot.lane.b32.xlu0 %v1536, 16
  %v1541 = vpop.permute.xlu0 %1540
  %1543 = vst.msk [vmem:[#allocation2 + $0x5] sm:$0x1f] %vm854, %v1541
  %1544 = vrot.lane.b32.xlu0 %v1033, 104
  %v1545 = vpop.permute.xlu0 %1544
  %1546 = vrot.lane.b32.xlu0 %v1033, 72
  %v1547 = vpop.permute.xlu0 %1546
  %v1548 = vsel %vm341, %v1545, 0
  %v1550 = vsel %vm341, %v1547, 0
  %1552 = vmatprep.subr.mxu0 0.0
  %1553 = vmatpush1.xpose.msra.mxu0 %v1550
  %1554 = vmatprep.subr.mxu0 0.0
  %1555 = vmatpush1.xpose.msra.mxu0 0.0
  %1556 = vmatprep.subr.mxu0 0.0
  %1557 = vmatpush1.xpose.msra.mxu0 0.0
  %1558 = vmatprep.subr.mxu0 0.0
  %1559 = vmatpush1.xpose.msra.mxu0 0.0
  %1560 = vmatprep.subr.mxu0 0.0
  %1561 = vmatpush1.xpose.msra.mxu0 0.0
  %1562 = vmatprep.subr.mxu0 0.0
  %1563 = vmatpush1.xpose.msra.mxu0 0.0
  %1564 = vmatprep.subr.mxu0 0.0
  %1565 = vmatpush1.xpose.msra.mxu0 0.0
  %1566 = vmatprep.subr.mxu0 0.0
  %1567 = vmatpush1.xpose.msra.mxu0 0.0
  %1568 = vmatprep.subr.mxu0 0.0
  %1569 = vmatpush1.xpose.msra.mxu0 0.0
  %1570 = vmatprep.subr.mxu0 0.0
  %1571 = vmatpush1.xpose.msra.mxu0 0.0
  %1572 = vmatprep.subr.mxu0 0.0
  %1573 = vmatpush1.xpose.msra.mxu0 0.0
  %1574 = vmatprep.subr.mxu0 0.0
  %1575 = vmatpush1.xpose.msra.mxu0 0.0
  %1576 = vmatprep.subr.mxu0 0.0
  %1577 = vmatpush1.xpose.msra.mxu0 0.0
  %1578 = vmatprep.subr.mxu0 0.0
  %1579 = vmatpush1.xpose.msra.mxu0 0.0
  %1580 = vmatprep.subr.mxu0 0.0
  %1581 = vmatpush1.xpose.msra.mxu0 0.0
  %1582 = vmatprep.subr.mxu0 0.0
  %1583 = vmatpush1.xpose.msra.mxu0 0.0
  %1584 = vmatprep.subr.mxu0 0.0
  %1585 = vmatpush1.xpose.msra.mxu0 0.0
  %1586 = vmatprep.subr.mxu0 0.0
  %1587 = vmatpush1.xpose.msra.mxu0 0.0
  %1588 = vmatprep.subr.mxu0 0.0
  %1589 = vmatpush1.xpose.msra.mxu0 0.0
  %1590 = vmatprep.subr.mxu0 0.0
  %1591 = vmatpush1.xpose.msra.mxu0 0.0
  %1592 = vmatprep.subr.mxu0 0.0
  %1593 = vmatpush1.xpose.msra.mxu0 0.0
  %1594 = vmatprep.subr.mxu0 0.0
  %1595 = vmatpush1.xpose.msra.mxu0 0.0
  %1596 = vmatprep.subr.mxu0 0.0
  %1597 = vmatpush1.xpose.msra.mxu0 0.0
  %1598 = vmatprep.subr.mxu0 0.0
  %1599 = vmatpush1.xpose.msra.mxu0 0.0
  %1600 = vmatprep.subr.mxu0 0.0
  %1601 = vmatpush1.xpose.msra.mxu0 0.0
  %1602 = vmatprep.subr.mxu0 0.0
  %1603 = vmatpush1.xpose.msra.mxu0 0.0
  %1604 = vmatprep.subr.mxu0 0.0
  %1605 = vmatpush1.xpose.msra.mxu0 0.0
  %1606 = vmatprep.subr.mxu0 0.0
  %1607 = vmatpush1.xpose.msra.mxu0 0.0
  %1608 = vmatprep.subr.mxu0 0.0
  %1609 = vmatpush1.xpose.msra.mxu0 0.0
  %1610 = vmatprep.subr.mxu0 0.0
  %1611 = vmatpush1.xpose.msra.mxu0 0.0
  %1612 = vmatprep.subr.mxu0 0.0
  %1613 = vmatpush1.xpose.msra.mxu0 0.0
  %1614 = vmatprep.subr.mxu0 0.0
  %1615 = vmatpush1.xpose.msra.mxu0 0.0
  %1616 = vmatprep.mubr.f32.mxu0 0.0
  %1617 = vmatmul.mubr.f32.gmra.mrb[0].mxu0 %v1548
  %v1618 = vpop.f32.mrb[0].mxu0
  %v1619 = vadd.f32 0.0, %v1618
  %v1620 = vpop.f32.mrb[0].mxu0
  %1621 = vdwg.mxu0
  %v1622 = vmul.f32 %v1619, 0.35355338
  %v1623 = vsel %vm417, %v1622, -inf
  %1624 = vmax.xlane.f32.xlu0 %v1623
  %v1625 = vpop.xlane.xlu0 %1624
  %v1626 = vsub.f32 %v1622, %v1625
  %v1627 = vmul.f32 %v1626, 1.442695
  %v1628 = vpow.pop %v1627
  %v1629 = vsel %vm417, %v1628, 0.0
  %1630 = vadd.xlane.f32.xlu0 %v1629
  %v1631 = vpop.xlane.xlu0 %1630
  %v1632 = vrcp.pop %v1631
  %v1633 = vmul.f32 %v1628, %v1632
  %1634 = vrot.lane.b32.xlu0 %v1033, 40
  %v1635 = vpop.permute.xlu0 %1634
  %v1637 = vsel %vm431, %v1633, 0
  %v1639 = vsel %vm435, %v1635, 0
  %1641 = vmatprep.subr.mxu0 0.0
  %1642 = vmatpush1.msra.mxu0 %v1639
  %1643 = vmatprep.subr.mxu0 0.0
  %1644 = vmatpush1.msra.mxu0 0.0
  %1645 = vmatprep.subr.mxu0 0.0
  %1646 = vmatpush1.msra.mxu0 0.0
  %1647 = vmatprep.subr.mxu0 0.0
  %1648 = vmatpush1.msra.mxu0 0.0
  %1649 = vmatprep.subr.mxu0 0.0
  %1650 = vmatpush1.msra.mxu0 0.0
  %1651 = vmatprep.subr.mxu0 0.0
  %1652 = vmatpush1.msra.mxu0 0.0
  %1653 = vmatprep.subr.mxu0 0.0
  %1654 = vmatpush1.msra.mxu0 0.0
  %1655 = vmatprep.subr.mxu0 0.0
  %1656 = vmatpush1.msra.mxu0 0.0
  %1657 = vmatprep.subr.mxu0 0.0
  %1658 = vmatpush1.msra.mxu0 0.0
  %1659 = vmatprep.subr.mxu0 0.0
  %1660 = vmatpush1.msra.mxu0 0.0
  %1661 = vmatprep.subr.mxu0 0.0
  %1662 = vmatpush1.msra.mxu0 0.0
  %1663 = vmatprep.subr.mxu0 0.0
  %1664 = vmatpush1.msra.mxu0 0.0
  %1665 = vmatprep.subr.mxu0 0.0
  %1666 = vmatpush1.msra.mxu0 0.0
  %1667 = vmatprep.subr.mxu0 0.0
  %1668 = vmatpush1.msra.mxu0 0.0
  %1669 = vmatprep.subr.mxu0 0.0
  %1670 = vmatpush1.msra.mxu0 0.0
  %1671 = vmatprep.subr.mxu0 0.0
  %1672 = vmatpush1.msra.mxu0 0.0
  %1673 = vmatprep.subr.mxu0 0.0
  %1674 = vmatpush1.msra.mxu0 0.0
  %1675 = vmatprep.subr.mxu0 0.0
  %1676 = vmatpush1.msra.mxu0 0.0
  %1677 = vmatprep.subr.mxu0 0.0
  %1678 = vmatpush1.msra.mxu0 0.0
  %1679 = vmatprep.subr.mxu0 0.0
  %1680 = vmatpush1.msra.mxu0 0.0
  %1681 = vmatprep.subr.mxu0 0.0
  %1682 = vmatpush1.msra.mxu0 0.0
  %1683 = vmatprep.subr.mxu0 0.0
  %1684 = vmatpush1.msra.mxu0 0.0
  %1685 = vmatprep.subr.mxu0 0.0
  %1686 = vmatpush1.msra.mxu0 0.0
  %1687 = vmatprep.subr.mxu0 0.0
  %1688 = vmatpush1.msra.mxu0 0.0
  %1689 = vmatprep.subr.mxu0 0.0
  %1690 = vmatpush1.msra.mxu0 0.0
  %1691 = vmatprep.subr.mxu0 0.0
  %1692 = vmatpush1.msra.mxu0 0.0
  %1693 = vmatprep.subr.mxu0 0.0
  %1694 = vmatpush1.msra.mxu0 0.0
  %1695 = vmatprep.subr.mxu0 0.0
  %1696 = vmatpush1.msra.mxu0 0.0
  %1697 = vmatprep.subr.mxu0 0.0
  %1698 = vmatpush1.msra.mxu0 0.0
  %1699 = vmatprep.subr.mxu0 0.0
  %1700 = vmatpush1.msra.mxu0 0.0
  %1701 = vmatprep.subr.mxu0 0.0
  %1702 = vmatpush1.msra.mxu0 0.0
  %1703 = vmatprep.subr.mxu0 0.0
  %1704 = vmatpush1.msra.mxu0 0.0
  %1705 = vmatprep.mubr.f32.mxu0 0.0
  %1706 = vmatmul.mubr.f32.gmra.mrb[0].mxu0 %v1637
  %v1707 = vpop.f32.mrb[0].mxu0
  %v1708 = vadd.f32 0.0, %v1707
  %v1709 = vpop.f32.mrb[0].mxu0
  %1710 = vdwg.mxu0
  %1712 = vrot.lane.b32.xlu0 %v1708, 24
  %v1713 = vpop.permute.xlu0 %1712
  %1715 = vst.msk [vmem:[#allocation2 + $0x5] sm:$0x1f] %vm1027, %v1713
  %v1716 = vld [vmem:[#allocation2] sm:$0xff]
  %v1717 = vld [vmem:[#allocation2 + $0x8] sm:$0x3]
  %v1718 = vld [vmem:[%s10] sm:$0xff]
  %v1719 = vld [vmem:[%s10 + $0x8] sm:$0xff]
  %v1720 = vld [vmem:[%s10 + $0x10] sm:$0xff]
  %v1721 = vld [vmem:[%s10 + $0x18] sm:$0xff]
  %v1723 = vsel %vm201, %v1716, 0
  %v1726 = vsel %vm201, %v1717, 0
  %1728 = vmatprep.subr.mxu0 0.0
  %1729 = vmatpush1.msra.mxu0 %v1718
  %1730 = vmatprep.subr.mxu0 0.0
  %1731 = vmatpush1.msra.mxu0 %v1719
  %1732 = vmatprep.subr.mxu0 0.0
  %1733 = vmatpush1.msra.mxu0 %v1720
  %1734 = vmatprep.subr.mxu0 0.0
  %1735 = vmatpush1.msra.mxu0 %v1721
  %1736 = vmatprep.subr.mxu0 0.0
  %1737 = vmatpush1.msra.mxu0 0.0
  %1738 = vmatprep.subr.mxu0 0.0
  %1739 = vmatpush1.msra.mxu0 0.0
  %1740 = vmatprep.subr.mxu0 0.0
  %1741 = vmatpush1.msra.mxu0 0.0
  %1742 = vmatprep.subr.mxu0 0.0
  %1743 = vmatpush1.msra.mxu0 0.0
  %1744 = vmatprep.subr.mxu0 0.0
  %1745 = vmatpush1.msra.mxu0 0.0
  %1746 = vmatprep.subr.mxu0 0.0
  %1747 = vmatpush1.msra.mxu0 0.0
  %1748 = vmatprep.subr.mxu0 0.0
  %1749 = vmatpush1.msra.mxu0 0.0
  %1750 = vmatprep.subr.mxu0 0.0
  %1751 = vmatpush1.msra.mxu0 0.0
  %1752 = vmatprep.subr.mxu0 0.0
  %1753 = vmatpush1.msra.mxu0 0.0
  %1754 = vmatprep.subr.mxu0 0.0
  %1755 = vmatpush1.msra.mxu0 0.0
  %1756 = vmatprep.subr.mxu0 0.0
  %1757 = vmatpush1.msra.mxu0 0.0
  %1758 = vmatprep.subr.mxu0 0.0
  %1759 = vmatpush1.msra.mxu0 0.0
  %1760 = vmatprep.subr.mxu0 0.0
  %1761 = vmatpush1.msra.mxu0 0.0
  %1762 = vmatprep.subr.mxu0 0.0
  %1763 = vmatpush1.msra.mxu0 0.0
  %1764 = vmatprep.subr.mxu0 0.0
  %1765 = vmatpush1.msra.mxu0 0.0
  %1766 = vmatprep.subr.mxu0 0.0
  %1767 = vmatpush1.msra.mxu0 0.0
  %1768 = vmatprep.subr.mxu0 0.0
  %1769 = vmatpush1.msra.mxu0 0.0
  %1770 = vmatprep.subr.mxu0 0.0
  %1771 = vmatpush1.msra.mxu0 0.0
  %1772 = vmatprep.subr.mxu0 0.0
  %1773 = vmatpush1.msra.mxu0 0.0
  %1774 = vmatprep.subr.mxu0 0.0
  %1775 = vmatpush1.msra.mxu0 0.0
  %1776 = vmatprep.subr.mxu0 0.0
  %1777 = vmatpush1.msra.mxu0 0.0
  %1778 = vmatprep.subr.mxu0 0.0
  %1779 = vmatpush1.msra.mxu0 0.0
  %1780 = vmatprep.subr.mxu0 0.0
  %1781 = vmatpush1.msra.mxu0 0.0
  %1782 = vmatprep.subr.mxu0 0.0
  %1783 = vmatpush1.msra.mxu0 0.0
  %1784 = vmatprep.subr.mxu0 0.0
  %1785 = vmatpush1.msra.mxu0 0.0
  %1786 = vmatprep.subr.mxu0 0.0
  %1787 = vmatpush1.msra.mxu0 0.0
  %1788 = vmatprep.subr.mxu0 0.0
  %1789 = vmatpush1.msra.mxu0 0.0
  %1790 = vmatprep.subr.mxu0 0.0
  %1791 = vmatpush1.msra.mxu0 0.0
  %1792 = vmatprep.mubr.f32.mxu0 0.0
  %1793 = vmatmul.mubr.f32.gmra.mrb[0].mxu0 %v1723
  %v1794 = vpop.f32.mrb[0].mxu0
  %v1795 = vadd.f32 0.0, %v1794
  %v1796 = vpop.f32.mrb[0].mxu0
  %1797 = vmatprep.mubr.f32.mxu0 0.0
  %1798 = vmatmul.mubr.f32.gmra.mrb[0].mxu0 %v1726
  %v1799 = vpop.f32.mrb[0].mxu0
  %v1800 = vadd.f32 0.0, %v1799
  %v1801 = vpop.f32.mrb[0].mxu0
  %1802 = vdwg.mxu0
  %v1803 = vadd.f32 %v197, %v1795
  %v1804 = vadd.f32 %v198, %v1800
  %v1805 = vld [vmem:[%s11] sm:$0x1]
  %v1807 = vlaneseq
  %v1808 = vshrl.u32 %v1807, 7
  %v1809 = vsub.s32 0, %v1808
  %v1810 = vrot.slane %v1805, %v1809
  %v1812 = vadd.f32 %v1803, %v1810
  %v1813 = vadd.f32 %v1804, %v1810
  %v1814 = vld [vmem:[%s12] sm:$0x1]
  %v1815 = vld [vmem:[%s13] sm:$0x1]
  %v1816 = vsel %vm201, %v1812, 0.0
  %1817 = vadd.xlane.f32.xlu0 %v1816
  %v1818 = vpop.xlane.xlu0 %1817
  %v1819 = vsel %vm205, %v1813, 0.0
  %1820 = vadd.xlane.f32.xlu0 %v1819
  %v1821 = vpop.xlane.xlu0 %1820
  %v1822 = vmul.f32 %v1818, %v209
  %v1823 = vmul.f32 %v1821, %v209
  %v1824 = vsub.f32 %v1812, %v1822
  %v1825 = vsub.f32 %v1813, %v1823
  %v1826 = vmul.f32 %v1824, %v1824
  %v1827 = vmul.f32 %v1825, %v1825
  %v1828 = vsel %vm201, %v1826, 0.0
  %1829 = vadd.xlane.f32.xlu0 %v1828
  %v1830 = vpop.xlane.xlu0 %1829
  %v1831 = vsel %vm205, %v1827, 0.0
  %1832 = vadd.xlane.f32.xlu0 %v1831
  %v1833 = vpop.xlane.xlu0 %1832
  %v1834 = vmul.f32 %v1830, %v209
  %v1835 = vmul.f32 %v1833, %v209
  %v1836 = vadd.f32 %v1834, 1e-12
  %v1837 = vadd.f32 %v1835, 1e-12
  %v1838 = vrsqrt.pop %v1836
  %v1839 = vrsqrt.pop %v1837
  %v1840 = vmul.f32 %v1824, %v1838
  %v1841 = vmul.f32 %v1825, %v1839
  %v1843 = vlaneseq
  %v1844 = vshrl.u32 %v1843, 7
  %v1845 = vsub.s32 0, %v1844
  %v1846 = vrot.slane %v1814, %v1845
  %v1848 = vmul.f32 %v1840, %v1846
  %v1849 = vmul.f32 %v1841, %v1846
  %v1851 = vlaneseq
  %v1852 = vshrl.u32 %v1851, 7
  %v1853 = vsub.s32 0, %v1852
  %v1854 = vrot.slane %v1815, %v1853
  %v1856 = vadd.f32 %v1848, %v1854
  %v1857 = vadd.f32 %v1849, %v1854
  %v1858 = vld [vmem:[%s14] sm:$0xff]
  %v1859 = vld [vmem:[%s14 + $0x8] sm:$0xff]
  %v1860 = vld [vmem:[%s14 + $0x10] sm:$0xff]
  %v1861 = vld [vmem:[%s14 + $0x18] sm:$0xff]
  %v1862 = vld [vmem:[%s15] sm:$0x1]
  %v1864 = vlaneseq
  %v1865 = vshrl.u32 %v1864, 7
  %v1866 = vsub.s32 0, %v1865
  %v1867 = vrot.slane %v1862, %v1866
  %v1870 = vsel %vm201, %v1856, 0
  %v1873 = vsel %vm201, %v1857, 0
  %1875 = vmatprep.subr.mxu0 0.0
  %1876 = vmatpush1.msra.mxu0 %v1858
  %1877 = vmatprep.subr.mxu0 0.0
  %1878 = vmatpush1.msra.mxu0 %v1859
  %1879 = vmatprep.subr.mxu0 0.0
  %1880 = vmatpush1.msra.mxu0 %v1860
  %1881 = vmatprep.subr.mxu0 0.0
  %1882 = vmatpush1.msra.mxu0 %v1861
  %1883 = vmatprep.subr.mxu0 0.0
  %1884 = vmatpush1.msra.mxu0 0.0
  %1885 = vmatprep.subr.mxu0 0.0
  %1886 = vmatpush1.msra.mxu0 0.0
  %1887 = vmatprep.subr.mxu0 0.0
  %1888 = vmatpush1.msra.mxu0 0.0
  %1889 = vmatprep.subr.mxu0 0.0
  %1890 = vmatpush1.msra.mxu0 0.0
  %1891 = vmatprep.subr.mxu0 0.0
  %1892 = vmatpush1.msra.mxu0 0.0
  %1893 = vmatprep.subr.mxu0 0.0
  %1894 = vmatpush1.msra.mxu0 0.0
  %1895 = vmatprep.subr.mxu0 0.0
  %1896 = vmatpush1.msra.mxu0 0.0
  %1897 = vmatprep.subr.mxu0 0.0
  %1898 = vmatpush1.msra.mxu0 0.0
  %1899 = vmatprep.subr.mxu0 0.0
  %1900 = vmatpush1.msra.mxu0 0.0
  %1901 = vmatprep.subr.mxu0 0.0
  %1902 = vmatpush1.msra.mxu0 0.0
  %1903 = vmatprep.subr.mxu0 0.0
  %1904 = vmatpush1.msra.mxu0 0.0
  %1905 = vmatprep.subr.mxu0 0.0
  %1906 = vmatpush1.msra.mxu0 0.0
  %1907 = vmatprep.subr.mxu0 0.0
  %1908 = vmatpush1.msra.mxu0 0.0
  %1909 = vmatprep.subr.mxu0 0.0
  %1910 = vmatpush1.msra.mxu0 0.0
  %1911 = vmatprep.subr.mxu0 0.0
  %1912 = vmatpush1.msra.mxu0 0.0
  %1913 = vmatprep.subr.mxu0 0.0
  %1914 = vmatpush1.msra.mxu0 0.0
  %1915 = vmatprep.subr.mxu0 0.0
  %1916 = vmatpush1.msra.mxu0 0.0
  %1917 = vmatprep.subr.mxu0 0.0
  %1918 = vmatpush1.msra.mxu0 0.0
  %1919 = vmatprep.subr.mxu0 0.0
  %1920 = vmatpush1.msra.mxu0 0.0
  %1921 = vmatprep.subr.mxu0 0.0
  %1922 = vmatpush1.msra.mxu0 0.0
  %1923 = vmatprep.subr.mxu0 0.0
  %1924 = vmatpush1.msra.mxu0 0.0
  %1925 = vmatprep.subr.mxu0 0.0
  %1926 = vmatpush1.msra.mxu0 0.0
  %1927 = vmatprep.subr.mxu0 0.0
  %1928 = vmatpush1.msra.mxu0 0.0
  %1929 = vmatprep.subr.mxu0 0.0
  %1930 = vmatpush1.msra.mxu0 0.0
  %1931 = vmatprep.subr.mxu0 0.0
  %1932 = vmatpush1.msra.mxu0 0.0
  %1933 = vmatprep.subr.mxu0 0.0
  %1934 = vmatpush1.msra.mxu0 0.0
  %1935 = vmatprep.subr.mxu0 0.0
  %1936 = vmatpush1.msra.mxu0 0.0
  %1937 = vmatprep.subr.mxu0 0.0
  %1938 = vmatpush1.msra.mxu0 0.0
  %1939 = vmatprep.mubr.f32.mxu0 0.0
  %1940 = vmatmul.mubr.f32.gmra.mrb[0].mxu0 %v1870
  %v1941 = vpop.f32.mrb[0].mxu0
  %v1942 = vadd.f32 %v1867, %v1941
  %v1943 = vpop.f32.mrb[0].mxu0
  %1944 = vmatprep.mubr.f32.mxu0 0.0
  %1945 = vmatmul.mubr.f32.gmra.mrb[0].mxu0 %v1873
  %v1946 = vpop.f32.mrb[0].mxu0
  %v1947 = vadd.f32 %v1867, %v1946
  %v1948 = vpop.f32.mrb[0].mxu0
  %1949 = vdwg.mxu0
  %v1950 = vmul.f32 %v1942, 0.5
  %v1951 = vmul.f32 %v1947, 0.5
  %v1952 = vmul.f32 %v1942, 0.70710677
  %v1953 = vmul.f32 %v1947, 0.70710677
  %v1954 = verf.f32.pop %v1952
  %v1955 = verf.f32.pop %v1953
  %v1956 = vadd.f32 %v1954, 1.0
  %v1957 = vadd.f32 %v1955, 1.0
  %v1958 = vmul.f32 %v1950, %v1956
  %v1959 = vmul.f32 %v1951, %v1957
  %v1960 = vld [vmem:[%s16] sm:$0xff]
  %v1961 = vld [vmem:[%s16 + $0x8] sm:$0xff]
  %v1962 = vld [vmem:[%s16 + $0x10] sm:$0xff]
  %v1963 = vld [vmem:[%s16 + $0x18] sm:$0xff]
  %v1964 = vld [vmem:[%s16 + $0x20] sm:$0xff]
  %v1965 = vld [vmem:[%s16 + $0x28] sm:$0xff]
  %v1966 = vld [vmem:[%s16 + $0x30] sm:$0xff]
  %v1967 = vld [vmem:[%s16 + $0x38] sm:$0xff]
  %v1969 = vsel %vm107, %v1958, 0
  %v1972 = vsel %vm107, %v1959, 0
  %1974 = vmatprep.subr.mxu0 0.0
  %1975 = vmatpush1.msra.mxu0 %v1960
  %1976 = vmatprep.subr.mxu0 0.0
  %1977 = vmatpush1.msra.mxu0 %v1961
  %1978 = vmatprep.subr.mxu0 0.0
  %1979 = vmatpush1.msra.mxu0 %v1962
  %1980 = vmatprep.subr.mxu0 0.0
  %1981 = vmatpush1.msra.mxu0 %v1963
  %1982 = vmatprep.subr.mxu0 0.0
  %1983 = vmatpush1.msra.mxu0 %v1964
  %1984 = vmatprep.subr.mxu0 0.0
  %1985 = vmatpush1.msra.mxu0 %v1965
  %1986 = vmatprep.subr.mxu0 0.0
  %1987 = vmatpush1.msra.mxu0 %v1966
  %1988 = vmatprep.subr.mxu0 0.0
  %1989 = vmatpush1.msra.mxu0 %v1967
  %1990 = vmatprep.subr.mxu0 0.0
  %1991 = vmatpush1.msra.mxu0 0.0
  %1992 = vmatprep.subr.mxu0 0.0
  %1993 = vmatpush1.msra.mxu0 0.0
  %1994 = vmatprep.subr.mxu0 0.0
  %1995 = vmatpush1.msra.mxu0 0.0
  %1996 = vmatprep.subr.mxu0 0.0
  %1997 = vmatpush1.msra.mxu0 0.0
  %1998 = vmatprep.subr.mxu0 0.0
  %1999 = vmatpush1.msra.mxu0 0.0
  %2000 = vmatprep.subr.mxu0 0.0
  %2001 = vmatpush1.msra.mxu0 0.0
  %2002 = vmatprep.subr.mxu0 0.0
  %2003 = vmatpush1.msra.mxu0 0.0
  %2004 = vmatprep.subr.mxu0 0.0
  %2005 = vmatpush1.msra.mxu0 0.0
  %2006 = vmatprep.subr.mxu0 0.0
  %2007 = vmatpush1.msra.mxu0 0.0
  %2008 = vmatprep.subr.mxu0 0.0
  %2009 = vmatpush1.msra.mxu0 0.0
  %2010 = vmatprep.subr.mxu0 0.0
  %2011 = vmatpush1.msra.mxu0 0.0
  %2012 = vmatprep.subr.mxu0 0.0
  %2013 = vmatpush1.msra.mxu0 0.0
  %2014 = vmatprep.subr.mxu0 0.0
  %2015 = vmatpush1.msra.mxu0 0.0
  %2016 = vmatprep.subr.mxu0 0.0
  %2017 = vmatpush1.msra.mxu0 0.0
  %2018 = vmatprep.subr.mxu0 0.0
  %2019 = vmatpush1.msra.mxu0 0.0
  %2020 = vmatprep.subr.mxu0 0.0
  %2021 = vmatpush1.msra.mxu0 0.0
  %2022 = vmatprep.subr.mxu0 0.0
  %2023 = vmatpush1.msra.mxu0 0.0
  %2024 = vmatprep.subr.mxu0 0.0
  %2025 = vmatpush1.msra.mxu0 0.0
  %2026 = vmatprep.subr.mxu0 0.0
  %2027 = vmatpush1.msra.mxu0 0.0
  %2028 = vmatprep.subr.mxu0 0.0
  %2029 = vmatpush1.msra.mxu0 0.0
  %2030 = vmatprep.subr.mxu0 0.0
  %2031 = vmatpush1.msra.mxu0 0.0
  %2032 = vmatprep.subr.mxu0 0.0
  %2033 = vmatpush1.msra.mxu0 0.0
  %2034 = vmatprep.subr.mxu0 0.0
  %2035 = vmatpush1.msra.mxu0 0.0
  %2036 = vmatprep.subr.mxu0 0.0
  %2037 = vmatpush1.msra.mxu0 0.0
  %2038 = vmatprep.mubr.f32.mxu0 0.0
  %2039 = vmatmul.mubr.f32.gmra.mrb[0].mxu0 %v1969
  %v2040 = vpop.f32.mrb[0].mxu0
  %v2041 = vadd.f32 0.0, %v2040
  %v2042 = vpop.f32.mrb[0].mxu0
  %2043 = vmatprep.mubr.f32.mxu0 0.0
  %2044 = vmatmul.mubr.f32.gmra.mrb[0].mxu0 %v1972
  %v2045 = vpop.f32.mrb[0].mxu0
  %v2046 = vadd.f32 0.0, %v2045
  %v2047 = vpop.f32.mrb[0].mxu0
  %2048 = vdwg.mxu0
  %v2049 = vadd.f32 %v1812, %v2041
  %v2050 = vadd.f32 %v1813, %v2046
  %v2051 = vld [vmem:[%s17] sm:$0x1]
  %v2053 = vlaneseq
  %v2054 = vshrl.u32 %v2053, 7
  %v2055 = vsub.s32 0, %v2054
  %v2056 = vrot.slane %v2051, %v2055
  %v2058 = vadd.f32 %v2049, %v2056
  %v2059 = vadd.f32 %v2050, %v2056
  %s2060 = scalar_lea.vmem %s6, 1
  %v2061 = vld [vmem:[%s2060] sm:$0x1]
  %s2062 = scalar_lea.vmem %s7, 1
  %v2063 = vld [vmem:[%s2062] sm:$0x1]
  %v2064 = vsel %vm201, %v2058, 0.0
  %2065 = vadd.xlane.f32.xlu0 %v2064
  %v2066 = vpop.xlane.xlu0 %2065
  %v2067 = vsel %vm205, %v2059, 0.0
  %2068 = vadd.xlane.f32.xlu0 %v2067
  %v2069 = vpop.xlane.xlu0 %2068
  %v2070 = vmul.f32 %v2066, %v209
  %v2071 = vmul.f32 %v2069, %v209
  %v2072 = vsub.f32 %v2058, %v2070
  %v2073 = vsub.f32 %v2059, %v2071
  %v2074 = vmul.f32 %v2072, %v2072
  %v2075 = vmul.f32 %v2073, %v2073
  %v2076 = vsel %vm201, %v2074, 0.0
  %2077 = vadd.xlane.f32.xlu0 %v2076
  %v2078 = vpop.xlane.xlu0 %2077
  %v2079 = vsel %vm205, %v2075, 0.0
  %2080 = vadd.xlane.f32.xlu0 %v2079
  %v2081 = vpop.xlane.xlu0 %2080
  %v2082 = vmul.f32 %v2078, %v209
  %v2083 = vmul.f32 %v2081, %v209
  %v2084 = vadd.f32 %v2082, 1e-12
  %v2085 = vadd.f32 %v2083, 1e-12
  %v2086 = vrsqrt.pop %v2084
  %v2087 = vrsqrt.pop %v2085
  %v2088 = vmul.f32 %v2072, %v2086
  %v2089 = vmul.f32 %v2073, %v2087
  %v2091 = vlaneseq
  %v2092 = vshrl.u32 %v2091, 7
  %v2093 = vsub.s32 0, %v2092
  %v2094 = vrot.slane %v2061, %v2093
  %v2096 = vmul.f32 %v2088, %v2094
  %v2097 = vmul.f32 %v2089, %v2094
  %v2099 = vlaneseq
  %v2100 = vshrl.u32 %v2099, 7
  %v2101 = vsub.s32 0, %v2100
  %v2102 = vrot.slane %v2063, %v2101
  %v2104 = vadd.f32 %v2096, %v2102
  %v2105 = vadd.f32 %v2097, %v2102
  %s2106 = scalar_lea.vmem %s8, 32
  %v2107 = vld [vmem:[%s2106] sm:$0xff]
  %v2108 = vld [vmem:[%s2106 + $0x8] sm:$0xff]
  %v2109 = vld [vmem:[%s2106 + $0x10] sm:$0xff]
  %v2110 = vld [vmem:[%s2106 + $0x18] sm:$0xff]
  %s2111 = scalar_lea.vmem %s9, 1
  %v2112 = vld [vmem:[%s2111] sm:$0x1]
  %v2114 = vlaneseq
  %v2115 = vshrl.u32 %v2114, 7
  %v2116 = vsub.s32 0, %v2115
  %v2117 = vrot.slane %v2112, %v2116
  %v2120 = vsel %vm201, %v2104, 0
  %v2123 = vsel %vm201, %v2105, 0
  %2125 = vmatprep.subr.mxu0 0.0
  %2126 = vmatpush1.msra.mxu0 %v2107
  %2127 = vmatprep.subr.mxu0 0.0
  %2128 = vmatpush1.msra.mxu0 %v2108
  %2129 = vmatprep.subr.mxu0 0.0
  %2130 = vmatpush1.msra.mxu0 %v2109
  %2131 = vmatprep.subr.mxu0 0.0
  %2132 = vmatpush1.msra.mxu0 %v2110
  %2133 = vmatprep.subr.mxu0 0.0
  %2134 = vmatpush1.msra.mxu0 0.0
  %2135 = vmatprep.subr.mxu0 0.0
  %2136 = vmatpush1.msra.mxu0 0.0
  %2137 = vmatprep.subr.mxu0 0.0
  %2138 = vmatpush1.msra.mxu0 0.0
  %2139 = vmatprep.subr.mxu0 0.0
  %2140 = vmatpush1.msra.mxu0 0.0
  %2141 = vmatprep.subr.mxu0 0.0
  %2142 = vmatpush1.msra.mxu0 0.0
  %2143 = vmatprep.subr.mxu0 0.0
  %2144 = vmatpush1.msra.mxu0 0.0
  %2145 = vmatprep.subr.mxu0 0.0
  %2146 = vmatpush1.msra.mxu0 0.0
  %2147 = vmatprep.subr.mxu0 0.0
  %2148 = vmatpush1.msra.mxu0 0.0
  %2149 = vmatprep.subr.mxu0 0.0
  %2150 = vmatpush1.msra.mxu0 0.0
  %2151 = vmatprep.subr.mxu0 0.0
  %2152 = vmatpush1.msra.mxu0 0.0
  %2153 = vmatprep.subr.mxu0 0.0
  %2154 = vmatpush1.msra.mxu0 0.0
  %2155 = vmatprep.subr.mxu0 0.0
  %2156 = vmatpush1.msra.mxu0 0.0
  %2157 = vmatprep.subr.mxu0 0.0
  %2158 = vmatpush1.msra.mxu0 0.0
  %2159 = vmatprep.subr.mxu0 0.0
  %2160 = vmatpush1.msra.mxu0 0.0
  %2161 = vmatprep.subr.mxu0 0.0
  %2162 = vmatpush1.msra.mxu0 0.0
  %2163 = vmatprep.subr.mxu0 0.0
  %2164 = vmatpush1.msra.mxu0 0.0
  %2165 = vmatprep.subr.mxu0 0.0
  %2166 = vmatpush1.msra.mxu0 0.0
  %2167 = vmatprep.subr.mxu0 0.0
  %2168 = vmatpush1.msra.mxu0 0.0
  %2169 = vmatprep.subr.mxu0 0.0
  %2170 = vmatpush1.msra.mxu0 0.0
  %2171 = vmatprep.subr.mxu0 0.0
  %2172 = vmatpush1.msra.mxu0 0.0
  %2173 = vmatprep.subr.mxu0 0.0
  %2174 = vmatpush1.msra.mxu0 0.0
  %2175 = vmatprep.subr.mxu0 0.0
  %2176 = vmatpush1.msra.mxu0 0.0
  %2177 = vmatprep.subr.mxu0 0.0
  %2178 = vmatpush1.msra.mxu0 0.0
  %2179 = vmatprep.subr.mxu0 0.0
  %2180 = vmatpush1.msra.mxu0 0.0
  %2181 = vmatprep.subr.mxu0 0.0
  %2182 = vmatpush1.msra.mxu0 0.0
  %2183 = vmatprep.subr.mxu0 0.0
  %2184 = vmatpush1.msra.mxu0 0.0
  %2185 = vmatprep.subr.mxu0 0.0
  %2186 = vmatpush1.msra.mxu0 0.0
  %2187 = vmatprep.subr.mxu0 0.0
  %2188 = vmatpush1.msra.mxu0 0.0
  %2189 = vmatprep.mubr.f32.mxu0 0.0
  %2190 = vmatmul.mubr.f32.gmra.mrb[0].mxu0 %v2120
  %v2191 = vpop.f32.mrb[0].mxu0
  %v2192 = vadd.f32 %v2117, %v2191
  %v2193 = vpop.f32.mrb[0].mxu0
  %2194 = vmatprep.mubr.f32.mxu0 0.0
  %2195 = vmatmul.mubr.f32.gmra.mrb[0].mxu0 %v2123
  %v2196 = vpop.f32.mrb[0].mxu0
  %v2197 = vadd.f32 %v2117, %v2196
  %v2198 = vpop.f32.mrb[0].mxu0
  %2199 = vdwg.mxu0
  %2201 = vrot.lane.b32.xlu0 %v2192, 96
  %v2202 = vpop.permute.xlu0 %2201
  %v2203 = vsel %vm341, %v2192, 0
  %v2205 = vsel %vm341, %v2202, 0
  %2207 = vmatprep.subr.mxu0 0.0
  %2208 = vmatpush1.xpose.msra.mxu0 %v2205
  %2209 = vmatprep.subr.mxu0 0.0
  %2210 = vmatpush1.xpose.msra.mxu0 0.0
  %2211 = vmatprep.subr.mxu0 0.0
  %2212 = vmatpush1.xpose.msra.mxu0 0.0
  %2213 = vmatprep.subr.mxu0 0.0
  %2214 = vmatpush1.xpose.msra.mxu0 0.0
  %2215 = vmatprep.subr.mxu0 0.0
  %2216 = vmatpush1.xpose.msra.mxu0 0.0
  %2217 = vmatprep.subr.mxu0 0.0
  %2218 = vmatpush1.xpose.msra.mxu0 0.0
  %2219 = vmatprep.subr.mxu0 0.0
  %2220 = vmatpush1.xpose.msra.mxu0 0.0
  %2221 = vmatprep.subr.mxu0 0.0
  %2222 = vmatpush1.xpose.msra.mxu0 0.0
  %2223 = vmatprep.subr.mxu0 0.0
  %2224 = vmatpush1.xpose.msra.mxu0 0.0
  %2225 = vmatprep.subr.mxu0 0.0
  %2226 = vmatpush1.xpose.msra.mxu0 0.0
  %2227 = vmatprep.subr.mxu0 0.0
  %2228 = vmatpush1.xpose.msra.mxu0 0.0
  %2229 = vmatprep.subr.mxu0 0.0
  %2230 = vmatpush1.xpose.msra.mxu0 0.0
  %2231 = vmatprep.subr.mxu0 0.0
  %2232 = vmatpush1.xpose.msra.mxu0 0.0
  %2233 = vmatprep.subr.mxu0 0.0
  %2234 = vmatpush1.xpose.msra.mxu0 0.0
  %2235 = vmatprep.subr.mxu0 0.0
  %2236 = vmatpush1.xpose.msra.mxu0 0.0
  %2237 = vmatprep.subr.mxu0 0.0
  %2238 = vmatpush1.xpose.msra.mxu0 0.0
  %2239 = vmatprep.subr.mxu0 0.0
  %2240 = vmatpush1.xpose.msra.mxu0 0.0
  %2241 = vmatprep.subr.mxu0 0.0
  %2242 = vmatpush1.xpose.msra.mxu0 0.0
  %2243 = vmatprep.subr.mxu0 0.0
  %2244 = vmatpush1.xpose.msra.mxu0 0.0
  %2245 = vmatprep.subr.mxu0 0.0
  %2246 = vmatpush1.xpose.msra.mxu0 0.0
  %2247 = vmatprep.subr.mxu0 0.0
  %2248 = vmatpush1.xpose.msra.mxu0 0.0
  %2249 = vmatprep.subr.mxu0 0.0
  %2250 = vmatpush1.xpose.msra.mxu0 0.0
  %2251 = vmatprep.subr.mxu0 0.0
  %2252 = vmatpush1.xpose.msra.mxu0 0.0
  %2253 = vmatprep.subr.mxu0 0.0
  %2254 = vmatpush1.xpose.msra.mxu0 0.0
  %2255 = vmatprep.subr.mxu0 0.0
  %2256 = vmatpush1.xpose.msra.mxu0 0.0
  %2257 = vmatprep.subr.mxu0 0.0
  %2258 = vmatpush1.xpose.msra.mxu0 0.0
  %2259 = vmatprep.subr.mxu0 0.0
  %2260 = vmatpush1.xpose.msra.mxu0 0.0
  %2261 = vmatprep.subr.mxu0 0.0
  %2262 = vmatpush1.xpose.msra.mxu0 0.0
  %2263 = vmatprep.subr.mxu0 0.0
  %2264 = vmatpush1.xpose.msra.mxu0 0.0
  %2265 = vmatprep.subr.mxu0 0.0
  %2266 = vmatpush1.xpose.msra.mxu0 0.0
  %2267 = vmatprep.subr.mxu0 0.0
  %2268 = vmatpush1.xpose.msra.mxu0 0.0
  %2269 = vmatprep.subr.mxu0 0.0
  %2270 = vmatpush1.xpose.msra.mxu0 0.0
  %2271 = vmatprep.mubr.f32.mxu0 0.0
  %2272 = vmatmul.mubr.f32.gmra.mrb[0].mxu0 %v2203
  %v2273 = vpop.f32.mrb[0].mxu0
  %v2274 = vadd.f32 0.0, %v2273
  %v2275 = vpop.f32.mrb[0].mxu0
  %2276 = vdwg.mxu0
  %v2277 = vmul.f32 %v2274, 0.35355338
  %v2278 = vsel %vm417, %v2277, -inf
  %2279 = vmax.xlane.f32.xlu0 %v2278
  %v2280 = vpop.xlane.xlu0 %2279
  %v2281 = vsub.f32 %v2277, %v2280
  %v2282 = vmul.f32 %v2281, 1.442695
  %v2283 = vpow.pop %v2282
  %v2284 = vsel %vm417, %v2283, 0.0
  %2285 = vadd.xlane.f32.xlu0 %v2284
  %v2286 = vpop.xlane.xlu0 %2285
  %v2287 = vrcp.pop %v2286
  %v2288 = vmul.f32 %v2283, %v2287
  %2289 = vrot.lane.b32.xlu0 %v2192, 64
  %v2290 = vpop.permute.xlu0 %2289
  %v2292 = vsel %vm431, %v2288, 0
  %v2294 = vsel %vm435, %v2290, 0
  %2296 = vmatprep.subr.mxu0 0.0
  %2297 = vmatpush1.msra.mxu0 %v2294
  %2298 = vmatprep.subr.mxu0 0.0
  %2299 = vmatpush1.msra.mxu0 0.0
  %2300 = vmatprep.subr.mxu0 0.0
  %2301 = vmatpush1.msra.mxu0 0.0
  %2302 = vmatprep.subr.mxu0 0.0
  %2303 = vmatpush1.msra.mxu0 0.0
  %2304 = vmatprep.subr.mxu0 0.0
  %2305 = vmatpush1.msra.mxu0 0.0
  %2306 = vmatprep.subr.mxu0 0.0
  %2307 = vmatpush1.msra.mxu0 0.0
  %2308 = vmatprep.subr.mxu0 0.0
  %2309 = vmatpush1.msra.mxu0 0.0
  %2310 = vmatprep.subr.mxu0 0.0
  %2311 = vmatpush1.msra.mxu0 0.0
  %2312 = vmatprep.subr.mxu0 0.0
  %2313 = vmatpush1.msra.mxu0 0.0
  %2314 = vmatprep.subr.mxu0 0.0
  %2315 = vmatpush1.msra.mxu0 0.0
  %2316 = vmatprep.subr.mxu0 0.0
  %2317 = vmatpush1.msra.mxu0 0.0
  %2318 = vmatprep.subr.mxu0 0.0
  %2319 = vmatpush1.msra.mxu0 0.0
  %2320 = vmatprep.subr.mxu0 0.0
  %2321 = vmatpush1.msra.mxu0 0.0
  %2322 = vmatprep.subr.mxu0 0.0
  %2323 = vmatpush1.msra.mxu0 0.0
  %2324 = vmatprep.subr.mxu0 0.0
  %2325 = vmatpush1.msra.mxu0 0.0
  %2326 = vmatprep.subr.mxu0 0.0
  %2327 = vmatpush1.msra.mxu0 0.0
  %2328 = vmatprep.subr.mxu0 0.0
  %2329 = vmatpush1.msra.mxu0 0.0
  %2330 = vmatprep.subr.mxu0 0.0
  %2331 = vmatpush1.msra.mxu0 0.0
  %2332 = vmatprep.subr.mxu0 0.0
  %2333 = vmatpush1.msra.mxu0 0.0
  %2334 = vmatprep.subr.mxu0 0.0
  %2335 = vmatpush1.msra.mxu0 0.0
  %2336 = vmatprep.subr.mxu0 0.0
  %2337 = vmatpush1.msra.mxu0 0.0
  %2338 = vmatprep.subr.mxu0 0.0
  %2339 = vmatpush1.msra.mxu0 0.0
  %2340 = vmatprep.subr.mxu0 0.0
  %2341 = vmatpush1.msra.mxu0 0.0
  %2342 = vmatprep.subr.mxu0 0.0
  %2343 = vmatpush1.msra.mxu0 0.0
  %2344 = vmatprep.subr.mxu0 0.0
  %2345 = vmatpush1.msra.mxu0 0.0
  %2346 = vmatprep.subr.mxu0 0.0
  %2347 = vmatpush1.msra.mxu0 0.0
  %2348 = vmatprep.subr.mxu0 0.0
  %2349 = vmatpush1.msra.mxu0 0.0
  %2350 = vmatprep.subr.mxu0 0.0
  %2351 = vmatpush1.msra.mxu0 0.0
  %2352 = vmatprep.subr.mxu0 0.0
  %2353 = vmatpush1.msra.mxu0 0.0
  %2354 = vmatprep.subr.mxu0 0.0
  %2355 = vmatpush1.msra.mxu0 0.0
  %2356 = vmatprep.subr.mxu0 0.0
  %2357 = vmatpush1.msra.mxu0 0.0
  %2358 = vmatprep.subr.mxu0 0.0
  %2359 = vmatpush1.msra.mxu0 0.0
  %2360 = vmatprep.mubr.f32.mxu0 0.0
  %2361 = vmatmul.mubr.f32.gmra.mrb[0].mxu0 %v2292
  %v2362 = vpop.f32.mrb[0].mxu0
  %v2363 = vadd.f32 0.0, %v2362
  %v2364 = vpop.f32.mrb[0].mxu0
  %2365 = vdwg.mxu0
  %2366 = vst.msk [vmem:[#allocation2] sm:$0x1f] %vm508, %v2363
  %2367 = vrot.lane.b32.xlu0 %v2192, 120
  %v2368 = vpop.permute.xlu0 %2367
  %2369 = vrot.lane.b32.xlu0 %v2192, 88
  %v2370 = vpop.permute.xlu0 %2369
  %v2371 = vsel %vm341, %v2368, 0
  %v2373 = vsel %vm341, %v2370, 0
  %2375 = vmatprep.subr.mxu0 0.0
  %2376 = vmatpush1.xpose.msra.mxu0 %v2373
  %2377 = vmatprep.subr.mxu0 0.0
  %2378 = vmatpush1.xpose.msra.mxu0 0.0
  %2379 = vmatprep.subr.mxu0 0.0
  %2380 = vmatpush1.xpose.msra.mxu0 0.0
  %2381 = vmatprep.subr.mxu0 0.0
  %2382 = vmatpush1.xpose.msra.mxu0 0.0
  %2383 = vmatprep.subr.mxu0 0.0
  %2384 = vmatpush1.xpose.msra.mxu0 0.0
  %2385 = vmatprep.subr.mxu0 0.0
  %2386 = vmatpush1.xpose.msra.mxu0 0.0
  %2387 = vmatprep.subr.mxu0 0.0
  %2388 = vmatpush1.xpose.msra.mxu0 0.0
  %2389 = vmatprep.subr.mxu0 0.0
  %2390 = vmatpush1.xpose.msra.mxu0 0.0
  %2391 = vmatprep.subr.mxu0 0.0
  %2392 = vmatpush1.xpose.msra.mxu0 0.0
  %2393 = vmatprep.subr.mxu0 0.0
  %2394 = vmatpush1.xpose.msra.mxu0 0.0
  %2395 = vmatprep.subr.mxu0 0.0
  %2396 = vmatpush1.xpose.msra.mxu0 0.0
  %2397 = vmatprep.subr.mxu0 0.0
  %2398 = vmatpush1.xpose.msra.mxu0 0.0
  %2399 = vmatprep.subr.mxu0 0.0
  %2400 = vmatpush1.xpose.msra.mxu0 0.0
  %2401 = vmatprep.subr.mxu0 0.0
  %2402 = vmatpush1.xpose.msra.mxu0 0.0
  %2403 = vmatprep.subr.mxu0 0.0
  %2404 = vmatpush1.xpose.msra.mxu0 0.0
  %2405 = vmatprep.subr.mxu0 0.0
  %2406 = vmatpush1.xpose.msra.mxu0 0.0
  %2407 = vmatprep.subr.mxu0 0.0
  %2408 = vmatpush1.xpose.msra.mxu0 0.0
  %2409 = vmatprep.subr.mxu0 0.0
  %2410 = vmatpush1.xpose.msra.mxu0 0.0
  %2411 = vmatprep.subr.mxu0 0.0
  %2412 = vmatpush1.xpose.msra.mxu0 0.0
  %2413 = vmatprep.subr.mxu0 0.0
  %2414 = vmatpush1.xpose.msra.mxu0 0.0
  %2415 = vmatprep.subr.mxu0 0.0
  %2416 = vmatpush1.xpose.msra.mxu0 0.0
  %2417 = vmatprep.subr.mxu0 0.0
  %2418 = vmatpush1.xpose.msra.mxu0 0.0
  %2419 = vmatprep.subr.mxu0 0.0
  %2420 = vmatpush1.xpose.msra.mxu0 0.0
  %2421 = vmatprep.subr.mxu0 0.0
  %2422 = vmatpush1.xpose.msra.mxu0 0.0
  %2423 = vmatprep.subr.mxu0 0.0
  %2424 = vmatpush1.xpose.msra.mxu0 0.0
  %2425 = vmatprep.subr.mxu0 0.0
  %2426 = vmatpush1.xpose.msra.mxu0 0.0
  %2427 = vmatprep.subr.mxu0 0.0
  %2428 = vmatpush1.xpose.msra.mxu0 0.0
  %2429 = vmatprep.subr.mxu0 0.0
  %2430 = vmatpush1.xpose.msra.mxu0 0.0
  %2431 = vmatprep.subr.mxu0 0.0
  %2432 = vmatpush1.xpose.msra.mxu0 0.0
  %2433 = vmatprep.subr.mxu0 0.0
  %2434 = vmatpush1.xpose.msra.mxu0 0.0
  %2435 = vmatprep.subr.mxu0 0.0
  %2436 = vmatpush1.xpose.msra.mxu0 0.0
  %2437 = vmatprep.subr.mxu0 0.0
  %2438 = vmatpush1.xpose.msra.mxu0 0.0
  %2439 = vmatprep.mubr.f32.mxu0 0.0
  %2440 = vmatmul.mubr.f32.gmra.mrb[0].mxu0 %v2371
  %v2441 = vpop.f32.mrb[0].mxu0
  %v2442 = vadd.f32 0.0, %v2441
  %v2443 = vpop.f32.mrb[0].mxu0
  %2444 = vdwg.mxu0
  %v2445 = vmul.f32 %v2442, 0.35355338
  %v2446 = vsel %vm417, %v2445, -inf
  %2447 = vmax.xlane.f32.xlu0 %v2446
  %v2448 = vpop.xlane.xlu0 %2447
  %v2449 = vsub.f32 %v2445, %v2448
  %v2450 = vmul.f32 %v2449, 1.442695
  %v2451 = vpow.pop %v2450
  %v2452 = vsel %vm417, %v2451, 0.0
  %2453 = vadd.xlane.f32.xlu0 %v2452
  %v2454 = vpop.xlane.xlu0 %2453
  %v2455 = vrcp.pop %v2454
  %v2456 = vmul.f32 %v2451, %v2455
  %2457 = vrot.lane.b32.xlu0 %v2192, 56
  %v2458 = vpop.permute.xlu0 %2457
  %v2460 = vsel %vm431, %v2456, 0
  %v2462 = vsel %vm435, %v2458, 0
  %2464 = vmatprep.subr.mxu0 0.0
  %2465 = vmatpush1.msra.mxu0 %v2462
  %2466 = vmatprep.subr.mxu0 0.0
  %2467 = vmatpush1.msra.mxu0 0.0
  %2468 = vmatprep.subr.mxu0 0.0
  %2469 = vmatpush1.msra.mxu0 0.0
  %2470 = vmatprep.subr.mxu0 0.0
  %2471 = vmatpush1.msra.mxu0 0.0
  %2472 = vmatprep.subr.mxu0 0.0
  %2473 = vmatpush1.msra.mxu0 0.0
  %2474 = vmatprep.subr.mxu0 0.0
  %2475 = vmatpush1.msra.mxu0 0.0
  %2476 = vmatprep.subr.mxu0 0.0
  %2477 = vmatpush1.msra.mxu0 0.0
  %2478 = vmatprep.subr.mxu0 0.0
  %2479 = vmatpush1.msra.mxu0 0.0
  %2480 = vmatprep.subr.mxu0 0.0
  %2481 = vmatpush1.msra.mxu0 0.0
  %2482 = vmatprep.subr.mxu0 0.0
  %2483 = vmatpush1.msra.mxu0 0.0
  %2484 = vmatprep.subr.mxu0 0.0
  %2485 = vmatpush1.msra.mxu0 0.0
  %2486 = vmatprep.subr.mxu0 0.0
  %2487 = vmatpush1.msra.mxu0 0.0
  %2488 = vmatprep.subr.mxu0 0.0
  %2489 = vmatpush1.msra.mxu0 0.0
  %2490 = vmatprep.subr.mxu0 0.0
  %2491 = vmatpush1.msra.mxu0 0.0
  %2492 = vmatprep.subr.mxu0 0.0
  %2493 = vmatpush1.msra.mxu0 0.0
  %2494 = vmatprep.subr.mxu0 0.0
  %2495 = vmatpush1.msra.mxu0 0.0
  %2496 = vmatprep.subr.mxu0 0.0
  %2497 = vmatpush1.msra.mxu0 0.0
  %2498 = vmatprep.subr.mxu0 0.0
  %2499 = vmatpush1.msra.mxu0 0.0
  %2500 = vmatprep.subr.mxu0 0.0
  %2501 = vmatpush1.msra.mxu0 0.0
  %2502 = vmatprep.subr.mxu0 0.0
  %2503 = vmatpush1.msra.mxu0 0.0
  %2504 = vmatprep.subr.mxu0 0.0
  %2505 = vmatpush1.msra.mxu0 0.0
  %2506 = vmatprep.subr.mxu0 0.0
  %2507 = vmatpush1.msra.mxu0 0.0
  %2508 = vmatprep.subr.mxu0 0.0
  %2509 = vmatpush1.msra.mxu0 0.0
  %2510 = vmatprep.subr.mxu0 0.0
  %2511 = vmatpush1.msra.mxu0 0.0
  %2512 = vmatprep.subr.mxu0 0.0
  %2513 = vmatpush1.msra.mxu0 0.0
  %2514 = vmatprep.subr.mxu0 0.0
  %2515 = vmatpush1.msra.mxu0 0.0
  %2516 = vmatprep.subr.mxu0 0.0
  %2517 = vmatpush1.msra.mxu0 0.0
  %2518 = vmatprep.subr.mxu0 0.0
  %2519 = vmatpush1.msra.mxu0 0.0
  %2520 = vmatprep.subr.mxu0 0.0
  %2521 = vmatpush1.msra.mxu0 0.0
  %2522 = vmatprep.subr.mxu0 0.0
  %2523 = vmatpush1.msra.mxu0 0.0
  %2524 = vmatprep.subr.mxu0 0.0
  %2525 = vmatpush1.msra.mxu0 0.0
  %2526 = vmatprep.subr.mxu0 0.0
  %2527 = vmatpush1.msra.mxu0 0.0
  %2528 = vmatprep.mubr.f32.mxu0 0.0
  %2529 = vmatmul.mubr.f32.gmra.mrb[0].mxu0 %v2460
  %v2530 = vpop.f32.mrb[0].mxu0
  %v2531 = vadd.f32 0.0, %v2530
  %v2532 = vpop.f32.mrb[0].mxu0
  %2533 = vdwg.mxu0
  %2535 = vrot.lane.b32.xlu0 %v2531, 8
  %v2536 = vpop.permute.xlu0 %2535
  %2538 = vst.msk [vmem:[#allocation2] sm:$0x1f] %vm681, %v2536
  %2539 = vrot.lane.b32.xlu0 %v2192, 112
  %v2540 = vpop.permute.xlu0 %2539
  %2541 = vrot.lane.b32.xlu0 %v2192, 80
  %v2542 = vpop.permute.xlu0 %2541
  %v2543 = vsel %vm341, %v2540, 0
  %v2545 = vsel %vm341, %v2542, 0
  %2547 = vmatprep.subr.mxu0 0.0
  %2548 = vmatpush1.xpose.msra.mxu0 %v2545
  %2549 = vmatprep.subr.mxu0 0.0
  %2550 = vmatpush1.xpose.msra.mxu0 0.0
  %2551 = vmatprep.subr.mxu0 0.0
  %2552 = vmatpush1.xpose.msra.mxu0 0.0
  %2553 = vmatprep.subr.mxu0 0.0
  %2554 = vmatpush1.xpose.msra.mxu0 0.0
  %2555 = vmatprep.subr.mxu0 0.0
  %2556 = vmatpush1.xpose.msra.mxu0 0.0
  %2557 = vmatprep.subr.mxu0 0.0
  %2558 = vmatpush1.xpose.msra.mxu0 0.0
  %2559 = vmatprep.subr.mxu0 0.0
  %2560 = vmatpush1.xpose.msra.mxu0 0.0
  %2561 = vmatprep.subr.mxu0 0.0
  %2562 = vmatpush1.xpose.msra.mxu0 0.0
  %2563 = vmatprep.subr.mxu0 0.0
  %2564 = vmatpush1.xpose.msra.mxu0 0.0
  %2565 = vmatprep.subr.mxu0 0.0
  %2566 = vmatpush1.xpose.msra.mxu0 0.0
  %2567 = vmatprep.subr.mxu0 0.0
  %2568 = vmatpush1.xpose.msra.mxu0 0.0
  %2569 = vmatprep.subr.mxu0 0.0
  %2570 = vmatpush1.xpose.msra.mxu0 0.0
  %2571 = vmatprep.subr.mxu0 0.0
  %2572 = vmatpush1.xpose.msra.mxu0 0.0
  %2573 = vmatprep.subr.mxu0 0.0
  %2574 = vmatpush1.xpose.msra.mxu0 0.0
  %2575 = vmatprep.subr.mxu0 0.0
  %2576 = vmatpush1.xpose.msra.mxu0 0.0
  %2577 = vmatprep.subr.mxu0 0.0
  %2578 = vmatpush1.xpose.msra.mxu0 0.0
  %2579 = vmatprep.subr.mxu0 0.0
  %2580 = vmatpush1.xpose.msra.mxu0 0.0
  %2581 = vmatprep.subr.mxu0 0.0
  %2582 = vmatpush1.xpose.msra.mxu0 0.0
  %2583 = vmatprep.subr.mxu0 0.0
  %2584 = vmatpush1.xpose.msra.mxu0 0.0
  %2585 = vmatprep.subr.mxu0 0.0
  %2586 = vmatpush1.xpose.msra.mxu0 0.0
  %2587 = vmatprep.subr.mxu0 0.0
  %2588 = vmatpush1.xpose.msra.mxu0 0.0
  %2589 = vmatprep.subr.mxu0 0.0
  %2590 = vmatpush1.xpose.msra.mxu0 0.0
  %2591 = vmatprep.subr.mxu0 0.0
  %2592 = vmatpush1.xpose.msra.mxu0 0.0
  %2593 = vmatprep.subr.mxu0 0.0
  %2594 = vmatpush1.xpose.msra.mxu0 0.0
  %2595 = vmatprep.subr.mxu0 0.0
  %2596 = vmatpush1.xpose.msra.mxu0 0.0
  %2597 = vmatprep.subr.mxu0 0.0
  %2598 = vmatpush1.xpose.msra.mxu0 0.0
  %2599 = vmatprep.subr.mxu0 0.0
  %2600 = vmatpush1.xpose.msra.mxu0 0.0
  %2601 = vmatprep.subr.mxu0 0.0
  %2602 = vmatpush1.xpose.msra.mxu0 0.0
  %2603 = vmatprep.subr.mxu0 0.0
  %2604 = vmatpush1.xpose.msra.mxu0 0.0
  %2605 = vmatprep.subr.mxu0 0.0
  %2606 = vmatpush1.xpose.msra.mxu0 0.0
  %2607 = vmatprep.subr.mxu0 0.0
  %2608 = vmatpush1.xpose.msra.mxu0 0.0
  %2609 = vmatprep.subr.mxu0 0.0
  %2610 = vmatpush1.xpose.msra.mxu0 0.0
  %2611 = vmatprep.mubr.f32.mxu0 0.0
  %2612 = vmatmul.mubr.f32.gmra.mrb[0].mxu0 %v2543
  %v2613 = vpop.f32.mrb[0].mxu0
  %v2614 = vadd.f32 0.0, %v2613
  %v2615 = vpop.f32.mrb[0].mxu0
  %2616 = vdwg.mxu0
  %v2617 = vmul.f32 %v2614, 0.35355338
  %v2618 = vsel %vm417, %v2617, -inf
  %2619 = vmax.xlane.f32.xlu0 %v2618
  %v2620 = vpop.xlane.xlu0 %2619
  %v2621 = vsub.f32 %v2617, %v2620
  %v2622 = vmul.f32 %v2621, 1.442695
  %v2623 = vpow.pop %v2622
  %v2624 = vsel %vm417, %v2623, 0.0
  %2625 = vadd.xlane.f32.xlu0 %v2624
  %v2626 = vpop.xlane.xlu0 %2625
  %v2627 = vrcp.pop %v2626
  %v2628 = vmul.f32 %v2623, %v2627
  %2629 = vrot.lane.b32.xlu0 %v2192, 48
  %v2630 = vpop.permute.xlu0 %2629
  %v2632 = vsel %vm431, %v2628, 0
  %v2634 = vsel %vm435, %v2630, 0
  %2636 = vmatprep.subr.mxu0 0.0
  %2637 = vmatpush1.msra.mxu0 %v2634
  %2638 = vmatprep.subr.mxu0 0.0
  %2639 = vmatpush1.msra.mxu0 0.0
  %2640 = vmatprep.subr.mxu0 0.0
  %2641 = vmatpush1.msra.mxu0 0.0
  %2642 = vmatprep.subr.mxu0 0.0
  %2643 = vmatpush1.msra.mxu0 0.0
  %2644 = vmatprep.subr.mxu0 0.0
  %2645 = vmatpush1.msra.mxu0 0.0
  %2646 = vmatprep.subr.mxu0 0.0
  %2647 = vmatpush1.msra.mxu0 0.0
  %2648 = vmatprep.subr.mxu0 0.0
  %2649 = vmatpush1.msra.mxu0 0.0
  %2650 = vmatprep.subr.mxu0 0.0
  %2651 = vmatpush1.msra.mxu0 0.0
  %2652 = vmatprep.subr.mxu0 0.0
  %2653 = vmatpush1.msra.mxu0 0.0
  %2654 = vmatprep.subr.mxu0 0.0
  %2655 = vmatpush1.msra.mxu0 0.0
  %2656 = vmatprep.subr.mxu0 0.0
  %2657 = vmatpush1.msra.mxu0 0.0
  %2658 = vmatprep.subr.mxu0 0.0
  %2659 = vmatpush1.msra.mxu0 0.0
  %2660 = vmatprep.subr.mxu0 0.0
  %2661 = vmatpush1.msra.mxu0 0.0
  %2662 = vmatprep.subr.mxu0 0.0
  %2663 = vmatpush1.msra.mxu0 0.0
  %2664 = vmatprep.subr.mxu0 0.0
  %2665 = vmatpush1.msra.mxu0 0.0
  %2666 = vmatprep.subr.mxu0 0.0
  %2667 = vmatpush1.msra.mxu0 0.0
  %2668 = vmatprep.subr.mxu0 0.0
  %2669 = vmatpush1.msra.mxu0 0.0
  %2670 = vmatprep.subr.mxu0 0.0
  %2671 = vmatpush1.msra.mxu0 0.0
  %2672 = vmatprep.subr.mxu0 0.0
  %2673 = vmatpush1.msra.mxu0 0.0
  %2674 = vmatprep.subr.mxu0 0.0
  %2675 = vmatpush1.msra.mxu0 0.0
  %2676 = vmatprep.subr.mxu0 0.0
  %2677 = vmatpush1.msra.mxu0 0.0
  %2678 = vmatprep.subr.mxu0 0.0
  %2679 = vmatpush1.msra.mxu0 0.0
  %2680 = vmatprep.subr.mxu0 0.0
  %2681 = vmatpush1.msra.mxu0 0.0
  %2682 = vmatprep.subr.mxu0 0.0
  %2683 = vmatpush1.msra.mxu0 0.0
  %2684 = vmatprep.subr.mxu0 0.0
  %2685 = vmatpush1.msra.mxu0 0.0
  %2686 = vmatprep.subr.mxu0 0.0
  %2687 = vmatpush1.msra.mxu0 0.0
  %2688 = vmatprep.subr.mxu0 0.0
  %2689 = vmatpush1.msra.mxu0 0.0
  %2690 = vmatprep.subr.mxu0 0.0
  %2691 = vmatpush1.msra.mxu0 0.0
  %2692 = vmatprep.subr.mxu0 0.0
  %2693 = vmatpush1.msra.mxu0 0.0
  %2694 = vmatprep.subr.mxu0 0.0
  %2695 = vmatpush1.msra.mxu0 0.0
  %2696 = vmatprep.subr.mxu0 0.0
  %2697 = vmatpush1.msra.mxu0 0.0
  %2698 = vmatprep.subr.mxu0 0.0
  %2699 = vmatpush1.msra.mxu0 0.0
  %2700 = vmatprep.mubr.f32.mxu0 0.0
  %2701 = vmatmul.mubr.f32.gmra.mrb[0].mxu0 %v2632
  %v2702 = vpop.f32.mrb[0].mxu0
  %v2703 = vadd.f32 0.0, %v2702
  %v2704 = vpop.f32.mrb[0].mxu0
  %2705 = vdwg.mxu0
  %2707 = vrot.lane.b32.xlu0 %v2703, 16
  %v2708 = vpop.permute.xlu0 %2707
  %2710 = vst.msk [vmem:[#allocation2] sm:$0x1f] %vm854, %v2708
  %2711 = vrot.lane.b32.xlu0 %v2192, 104
  %v2712 = vpop.permute.xlu0 %2711
  %2713 = vrot.lane.b32.xlu0 %v2192, 72
  %v2714 = vpop.permute.xlu0 %2713
  %v2715 = vsel %vm341, %v2712, 0
  %v2717 = vsel %vm341, %v2714, 0
  %2719 = vmatprep.subr.mxu0 0.0
  %2720 = vmatpush1.xpose.msra.mxu0 %v2717
  %2721 = vmatprep.subr.mxu0 0.0
  %2722 = vmatpush1.xpose.msra.mxu0 0.0
  %2723 = vmatprep.subr.mxu0 0.0
  %2724 = vmatpush1.xpose.msra.mxu0 0.0
  %2725 = vmatprep.subr.mxu0 0.0
  %2726 = vmatpush1.xpose.msra.mxu0 0.0
  %2727 = vmatprep.subr.mxu0 0.0
  %2728 = vmatpush1.xpose.msra.mxu0 0.0
  %2729 = vmatprep.subr.mxu0 0.0
  %2730 = vmatpush1.xpose.msra.mxu0 0.0
  %2731 = vmatprep.subr.mxu0 0.0
  %2732 = vmatpush1.xpose.msra.mxu0 0.0
  %2733 = vmatprep.subr.mxu0 0.0
  %2734 = vmatpush1.xpose.msra.mxu0 0.0
  %2735 = vmatprep.subr.mxu0 0.0
  %2736 = vmatpush1.xpose.msra.mxu0 0.0
  %2737 = vmatprep.subr.mxu0 0.0
  %2738 = vmatpush1.xpose.msra.mxu0 0.0
  %2739 = vmatprep.subr.mxu0 0.0
  %2740 = vmatpush1.xpose.msra.mxu0 0.0
  %2741 = vmatprep.subr.mxu0 0.0
  %2742 = vmatpush1.xpose.msra.mxu0 0.0
  %2743 = vmatprep.subr.mxu0 0.0
  %2744 = vmatpush1.xpose.msra.mxu0 0.0
  %2745 = vmatprep.subr.mxu0 0.0
  %2746 = vmatpush1.xpose.msra.mxu0 0.0
  %2747 = vmatprep.subr.mxu0 0.0
  %2748 = vmatpush1.xpose.msra.mxu0 0.0
  %2749 = vmatprep.subr.mxu0 0.0
  %2750 = vmatpush1.xpose.msra.mxu0 0.0
  %2751 = vmatprep.subr.mxu0 0.0
  %2752 = vmatpush1.xpose.msra.mxu0 0.0
  %2753 = vmatprep.subr.mxu0 0.0
  %2754 = vmatpush1.xpose.msra.mxu0 0.0
  %2755 = vmatprep.subr.mxu0 0.0
  %2756 = vmatpush1.xpose.msra.mxu0 0.0
  %2757 = vmatprep.subr.mxu0 0.0
  %2758 = vmatpush1.xpose.msra.mxu0 0.0
  %2759 = vmatprep.subr.mxu0 0.0
  %2760 = vmatpush1.xpose.msra.mxu0 0.0
  %2761 = vmatprep.subr.mxu0 0.0
  %2762 = vmatpush1.xpose.msra.mxu0 0.0
  %2763 = vmatprep.subr.mxu0 0.0
  %2764 = vmatpush1.xpose.msra.mxu0 0.0
  %2765 = vmatprep.subr.mxu0 0.0
  %2766 = vmatpush1.xpose.msra.mxu0 0.0
  %2767 = vmatprep.subr.mxu0 0.0
  %2768 = vmatpush1.xpose.msra.mxu0 0.0
  %2769 = vmatprep.subr.mxu0 0.0
  %2770 = vmatpush1.xpose.msra.mxu0 0.0
  %2771 = vmatprep.subr.mxu0 0.0
  %2772 = vmatpush1.xpose.msra.mxu0 0.0
  %2773 = vmatprep.subr.mxu0 0.0
  %2774 = vmatpush1.xpose.msra.mxu0 0.0
  %2775 = vmatprep.subr.mxu0 0.0
  %2776 = vmatpush1.xpose.msra.mxu0 0.0
  %2777 = vmatprep.subr.mxu0 0.0
  %2778 = vmatpush1.xpose.msra.mxu0 0.0
  %2779 = vmatprep.subr.mxu0 0.0
  %2780 = vmatpush1.xpose.msra.mxu0 0.0
  %2781 = vmatprep.subr.mxu0 0.0
  %2782 = vmatpush1.xpose.msra.mxu0 0.0
  %2783 = vmatprep.mubr.f32.mxu0 0.0
  %2784 = vmatmul.mubr.f32.gmra.mrb[0].mxu0 %v2715
  %v2785 = vpop.f32.mrb[0].mxu0
  %v2786 = vadd.f32 0.0, %v2785
  %v2787 = vpop.f32.mrb[0].mxu0
  %2788 = vdwg.mxu0
  %v2789 = vmul.f32 %v2786, 0.35355338
  %v2790 = vsel %vm417, %v2789, -inf
  %2791 = vmax.xlane.f32.xlu0 %v2790
  %v2792 = vpop.xlane.xlu0 %2791
  %v2793 = vsub.f32 %v2789, %v2792
  %v2794 = vmul.f32 %v2793, 1.442695
  %v2795 = vpow.pop %v2794
  %v2796 = vsel %vm417, %v2795, 0.0
  %2797 = vadd.xlane.f32.xlu0 %v2796
  %v2798 = vpop.xlane.xlu0 %2797
  %v2799 = vrcp.pop %v2798
  %v2800 = vmul.f32 %v2795, %v2799
  %2801 = vrot.lane.b32.xlu0 %v2192, 40
  %v2802 = vpop.permute.xlu0 %2801
  %v2804 = vsel %vm431, %v2800, 0
  %v2806 = vsel %vm435, %v2802, 0
  %2808 = vmatprep.subr.mxu0 0.0
  %2809 = vmatpush1.msra.mxu0 %v2806
  %2810 = vmatprep.subr.mxu0 0.0
  %2811 = vmatpush1.msra.mxu0 0.0
  %2812 = vmatprep.subr.mxu0 0.0
  %2813 = vmatpush1.msra.mxu0 0.0
  %2814 = vmatprep.subr.mxu0 0.0
  %2815 = vmatpush1.msra.mxu0 0.0
  %2816 = vmatprep.subr.mxu0 0.0
  %2817 = vmatpush1.msra.mxu0 0.0
  %2818 = vmatprep.subr.mxu0 0.0
  %2819 = vmatpush1.msra.mxu0 0.0
  %2820 = vmatprep.subr.mxu0 0.0
  %2821 = vmatpush1.msra.mxu0 0.0
  %2822 = vmatprep.subr.mxu0 0.0
  %2823 = vmatpush1.msra.mxu0 0.0
  %2824 = vmatprep.subr.mxu0 0.0
  %2825 = vmatpush1.msra.mxu0 0.0
  %2826 = vmatprep.subr.mxu0 0.0
  %2827 = vmatpush1.msra.mxu0 0.0
  %2828 = vmatprep.subr.mxu0 0.0
  %2829 = vmatpush1.msra.mxu0 0.0
  %2830 = vmatprep.subr.mxu0 0.0
  %2831 = vmatpush1.msra.mxu0 0.0
  %2832 = vmatprep.subr.mxu0 0.0
  %2833 = vmatpush1.msra.mxu0 0.0
  %2834 = vmatprep.subr.mxu0 0.0
  %2835 = vmatpush1.msra.mxu0 0.0
  %2836 = vmatprep.subr.mxu0 0.0
  %2837 = vmatpush1.msra.mxu0 0.0
  %2838 = vmatprep.subr.mxu0 0.0
  %2839 = vmatpush1.msra.mxu0 0.0
  %2840 = vmatprep.subr.mxu0 0.0
  %2841 = vmatpush1.msra.mxu0 0.0
  %2842 = vmatprep.subr.mxu0 0.0
  %2843 = vmatpush1.msra.mxu0 0.0
  %2844 = vmatprep.subr.mxu0 0.0
  %2845 = vmatpush1.msra.mxu0 0.0
  %2846 = vmatprep.subr.mxu0 0.0
  %2847 = vmatpush1.msra.mxu0 0.0
  %2848 = vmatprep.subr.mxu0 0.0
  %2849 = vmatpush1.msra.mxu0 0.0
  %2850 = vmatprep.subr.mxu0 0.0
  %2851 = vmatpush1.msra.mxu0 0.0
  %2852 = vmatprep.subr.mxu0 0.0
  %2853 = vmatpush1.msra.mxu0 0.0
  %2854 = vmatprep.subr.mxu0 0.0
  %2855 = vmatpush1.msra.mxu0 0.0
  %2856 = vmatprep.subr.mxu0 0.0
  %2857 = vmatpush1.msra.mxu0 0.0
  %2858 = vmatprep.subr.mxu0 0.0
  %2859 = vmatpush1.msra.mxu0 0.0
  %2860 = vmatprep.subr.mxu0 0.0
  %2861 = vmatpush1.msra.mxu0 0.0
  %2862 = vmatprep.subr.mxu0 0.0
  %2863 = vmatpush1.msra.mxu0 0.0
  %2864 = vmatprep.subr.mxu0 0.0
  %2865 = vmatpush1.msra.mxu0 0.0
  %2866 = vmatprep.subr.mxu0 0.0
  %2867 = vmatpush1.msra.mxu0 0.0
  %2868 = vmatprep.subr.mxu0 0.0
  %2869 = vmatpush1.msra.mxu0 0.0
  %2870 = vmatprep.subr.mxu0 0.0
  %2871 = vmatpush1.msra.mxu0 0.0
  %2872 = vmatprep.mubr.f32.mxu0 0.0
  %2873 = vmatmul.mubr.f32.gmra.mrb[0].mxu0 %v2804
  %v2874 = vpop.f32.mrb[0].mxu0
  %v2875 = vadd.f32 0.0, %v2874
  %v2876 = vpop.f32.mrb[0].mxu0
  %2877 = vdwg.mxu0
  %2879 = vrot.lane.b32.xlu0 %v2875, 24
  %v2880 = vpop.permute.xlu0 %2879
  %2882 = vst.msk [vmem:[#allocation2] sm:$0x1f] %vm1027, %v2880
  %v2884 = vrot.slane %v2192, 5
  %v2885 = vrot.slane %v2197, 5
  %v2886 = vsel %vm1030, %v2884, %v2885
  %2887 = vrot.lane.b32.xlu0 %v2886, 96
  %v2888 = vpop.permute.xlu0 %2887
  %v2889 = vsel %vm341, %v2886, 0
  %v2891 = vsel %vm341, %v2888, 0
  %2893 = vmatprep.subr.mxu0 0.0
  %2894 = vmatpush1.xpose.msra.mxu0 %v2891
  %2895 = vmatprep.subr.mxu0 0.0
  %2896 = vmatpush1.xpose.msra.mxu0 0.0
  %2897 = vmatprep.subr.mxu0 0.0
  %2898 = vmatpush1.xpose.msra.mxu0 0.0
  %2899 = vmatprep.subr.mxu0 0.0
  %2900 = vmatpush1.xpose.msra.mxu0 0.0
  %2901 = vmatprep.subr.mxu0 0.0
  %2902 = vmatpush1.xpose.msra.mxu0 0.0
  %2903 = vmatprep.subr.mxu0 0.0
  %2904 = vmatpush1.xpose.msra.mxu0 0.0
  %2905 = vmatprep.subr.mxu0 0.0
  %2906 = vmatpush1.xpose.msra.mxu0 0.0
  %2907 = vmatprep.subr.mxu0 0.0
  %2908 = vmatpush1.xpose.msra.mxu0 0.0
  %2909 = vmatprep.subr.mxu0 0.0
  %2910 = vmatpush1.xpose.msra.mxu0 0.0
  %2911 = vmatprep.subr.mxu0 0.0
  %2912 = vmatpush1.xpose.msra.mxu0 0.0
  %2913 = vmatprep.subr.mxu0 0.0
  %2914 = vmatpush1.xpose.msra.mxu0 0.0
  %2915 = vmatprep.subr.mxu0 0.0
  %2916 = vmatpush1.xpose.msra.mxu0 0.0
  %2917 = vmatprep.subr.mxu0 0.0
  %2918 = vmatpush1.xpose.msra.mxu0 0.0
  %2919 = vmatprep.subr.mxu0 0.0
  %2920 = vmatpush1.xpose.msra.mxu0 0.0
  %2921 = vmatprep.subr.mxu0 0.0
  %2922 = vmatpush1.xpose.msra.mxu0 0.0
  %2923 = vmatprep.subr.mxu0 0.0
  %2924 = vmatpush1.xpose.msra.mxu0 0.0
  %2925 = vmatprep.subr.mxu0 0.0
  %2926 = vmatpush1.xpose.msra.mxu0 0.0
  %2927 = vmatprep.subr.mxu0 0.0
  %2928 = vmatpush1.xpose.msra.mxu0 0.0
  %2929 = vmatprep.subr.mxu0 0.0
  %2930 = vmatpush1.xpose.msra.mxu0 0.0
  %2931 = vmatprep.subr.mxu0 0.0
  %2932 = vmatpush1.xpose.msra.mxu0 0.0
  %2933 = vmatprep.subr.mxu0 0.0
  %2934 = vmatpush1.xpose.msra.mxu0 0.0
  %2935 = vmatprep.subr.mxu0 0.0
  %2936 = vmatpush1.xpose.msra.mxu0 0.0
  %2937 = vmatprep.subr.mxu0 0.0
  %2938 = vmatpush1.xpose.msra.mxu0 0.0
  %2939 = vmatprep.subr.mxu0 0.0
  %2940 = vmatpush1.xpose.msra.mxu0 0.0
  %2941 = vmatprep.subr.mxu0 0.0
  %2942 = vmatpush1.xpose.msra.mxu0 0.0
  %2943 = vmatprep.subr.mxu0 0.0
  %2944 = vmatpush1.xpose.msra.mxu0 0.0
  %2945 = vmatprep.subr.mxu0 0.0
  %2946 = vmatpush1.xpose.msra.mxu0 0.0
  %2947 = vmatprep.subr.mxu0 0.0
  %2948 = vmatpush1.xpose.msra.mxu0 0.0
  %2949 = vmatprep.subr.mxu0 0.0
  %2950 = vmatpush1.xpose.msra.mxu0 0.0
  %2951 = vmatprep.subr.mxu0 0.0
  %2952 = vmatpush1.xpose.msra.mxu0 0.0
  %2953 = vmatprep.subr.mxu0 0.0
  %2954 = vmatpush1.xpose.msra.mxu0 0.0
  %2955 = vmatprep.subr.mxu0 0.0
  %2956 = vmatpush1.xpose.msra.mxu0 0.0
  %2957 = vmatprep.mubr.f32.mxu0 0.0
  %2958 = vmatmul.mubr.f32.gmra.mrb[0].mxu0 %v2889
  %v2959 = vpop.f32.mrb[0].mxu0
  %v2960 = vadd.f32 0.0, %v2959
  %v2961 = vpop.f32.mrb[0].mxu0
  %2962 = vdwg.mxu0
  %v2963 = vmul.f32 %v2960, 0.35355338
  %v2964 = vsel %vm417, %v2963, -inf
  %2965 = vmax.xlane.f32.xlu0 %v2964
  %v2966 = vpop.xlane.xlu0 %2965
  %v2967 = vsub.f32 %v2963, %v2966
  %v2968 = vmul.f32 %v2967, 1.442695
  %v2969 = vpow.pop %v2968
  %v2970 = vsel %vm417, %v2969, 0.0
  %2971 = vadd.xlane.f32.xlu0 %v2970
  %v2972 = vpop.xlane.xlu0 %2971
  %v2973 = vrcp.pop %v2972
  %v2974 = vmul.f32 %v2969, %v2973
  %2975 = vrot.lane.b32.xlu0 %v2886, 64
  %v2976 = vpop.permute.xlu0 %2975
  %v2978 = vsel %vm431, %v2974, 0
  %v2980 = vsel %vm435, %v2976, 0
  %2982 = vmatprep.subr.mxu0 0.0
  %2983 = vmatpush1.msra.mxu0 %v2980
  %2984 = vmatprep.subr.mxu0 0.0
  %2985 = vmatpush1.msra.mxu0 0.0
  %2986 = vmatprep.subr.mxu0 0.0
  %2987 = vmatpush1.msra.mxu0 0.0
  %2988 = vmatprep.subr.mxu0 0.0
  %2989 = vmatpush1.msra.mxu0 0.0
  %2990 = vmatprep.subr.mxu0 0.0
  %2991 = vmatpush1.msra.mxu0 0.0
  %2992 = vmatprep.subr.mxu0 0.0
  %2993 = vmatpush1.msra.mxu0 0.0
  %2994 = vmatprep.subr.mxu0 0.0
  %2995 = vmatpush1.msra.mxu0 0.0
  %2996 = vmatprep.subr.mxu0 0.0
  %2997 = vmatpush1.msra.mxu0 0.0
  %2998 = vmatprep.subr.mxu0 0.0
  %2999 = vmatpush1.msra.mxu0 0.0
  %3000 = vmatprep.subr.mxu0 0.0
  %3001 = vmatpush1.msra.mxu0 0.0
  %3002 = vmatprep.subr.mxu0 0.0
  %3003 = vmatpush1.msra.mxu0 0.0
  %3004 = vmatprep.subr.mxu0 0.0
  %3005 = vmatpush1.msra.mxu0 0.0
  %3006 = vmatprep.subr.mxu0 0.0
  %3007 = vmatpush1.msra.mxu0 0.0
  %3008 = vmatprep.subr.mxu0 0.0
  %3009 = vmatpush1.msra.mxu0 0.0
  %3010 = vmatprep.subr.mxu0 0.0
  %3011 = vmatpush1.msra.mxu0 0.0
  %3012 = vmatprep.subr.mxu0 0.0
  %3013 = vmatpush1.msra.mxu0 0.0
  %3014 = vmatprep.subr.mxu0 0.0
  %3015 = vmatpush1.msra.mxu0 0.0
  %3016 = vmatprep.subr.mxu0 0.0
  %3017 = vmatpush1.msra.mxu0 0.0
  %3018 = vmatprep.subr.mxu0 0.0
  %3019 = vmatpush1.msra.mxu0 0.0
  %3020 = vmatprep.subr.mxu0 0.0
  %3021 = vmatpush1.msra.mxu0 0.0
  %3022 = vmatprep.subr.mxu0 0.0
  %3023 = vmatpush1.msra.mxu0 0.0
  %3024 = vmatprep.subr.mxu0 0.0
  %3025 = vmatpush1.msra.mxu0 0.0
  %3026 = vmatprep.subr.mxu0 0.0
  %3027 = vmatpush1.msra.mxu0 0.0
  %3028 = vmatprep.subr.mxu0 0.0
  %3029 = vmatpush1.msra.mxu0 0.0
  %3030 = vmatprep.subr.mxu0 0.0
  %3031 = vmatpush1.msra.mxu0 0.0
  %3032 = vmatprep.subr.mxu0 0.0
  %3033 = vmatpush1.msra.mxu0 0.0
  %3034 = vmatprep.subr.mxu0 0.0
  %3035 = vmatpush1.msra.mxu0 0.0
  %3036 = vmatprep.subr.mxu0 0.0
  %3037 = vmatpush1.msra.mxu0 0.0
  %3038 = vmatprep.subr.mxu0 0.0
  %3039 = vmatpush1.msra.mxu0 0.0
  %3040 = vmatprep.subr.mxu0 0.0
  %3041 = vmatpush1.msra.mxu0 0.0
  %3042 = vmatprep.subr.mxu0 0.0
  %3043 = vmatpush1.msra.mxu0 0.0
  %3044 = vmatprep.subr.mxu0 0.0
  %3045 = vmatpush1.msra.mxu0 0.0
  %3046 = vmatprep.mubr.f32.mxu0 0.0
  %3047 = vmatmul.mubr.f32.gmra.mrb[0].mxu0 %v2978
  %v3048 = vpop.f32.mrb[0].mxu0
  %v3049 = vadd.f32 0.0, %v3048
  %v3050 = vpop.f32.mrb[0].mxu0
  %3051 = vdwg.mxu0
  %3052 = vst.msk [vmem:[#allocation2 + $0x5] sm:$0x1f] %vm508, %v3049
  %3053 = vrot.lane.b32.xlu0 %v2886, 120
  %v3054 = vpop.permute.xlu0 %3053
  %3055 = vrot.lane.b32.xlu0 %v2886, 88
  %v3056 = vpop.permute.xlu0 %3055
  %v3057 = vsel %vm341, %v3054, 0
  %v3059 = vsel %vm341, %v3056, 0
  %3061 = vmatprep.subr.mxu0 0.0
  %3062 = vmatpush1.xpose.msra.mxu0 %v3059
  %3063 = vmatprep.subr.mxu0 0.0
  %3064 = vmatpush1.xpose.msra.mxu0 0.0
  %3065 = vmatprep.subr.mxu0 0.0
  %3066 = vmatpush1.xpose.msra.mxu0 0.0
  %3067 = vmatprep.subr.mxu0 0.0
  %3068 = vmatpush1.xpose.msra.mxu0 0.0
  %3069 = vmatprep.subr.mxu0 0.0
  %3070 = vmatpush1.xpose.msra.mxu0 0.0
  %3071 = vmatprep.subr.mxu0 0.0
  %3072 = vmatpush1.xpose.msra.mxu0 0.0
  %3073 = vmatprep.subr.mxu0 0.0
  %3074 = vmatpush1.xpose.msra.mxu0 0.0
  %3075 = vmatprep.subr.mxu0 0.0
  %3076 = vmatpush1.xpose.msra.mxu0 0.0
  %3077 = vmatprep.subr.mxu0 0.0
  %3078 = vmatpush1.xpose.msra.mxu0 0.0
  %3079 = vmatprep.subr.mxu0 0.0
  %3080 = vmatpush1.xpose.msra.mxu0 0.0
  %3081 = vmatprep.subr.mxu0 0.0
  %3082 = vmatpush1.xpose.msra.mxu0 0.0
  %3083 = vmatprep.subr.mxu0 0.0
  %3084 = vmatpush1.xpose.msra.mxu0 0.0
  %3085 = vmatprep.subr.mxu0 0.0
  %3086 = vmatpush1.xpose.msra.mxu0 0.0
  %3087 = vmatprep.subr.mxu0 0.0
  %3088 = vmatpush1.xpose.msra.mxu0 0.0
  %3089 = vmatprep.subr.mxu0 0.0
  %3090 = vmatpush1.xpose.msra.mxu0 0.0
  %3091 = vmatprep.subr.mxu0 0.0
  %3092 = vmatpush1.xpose.msra.mxu0 0.0
  %3093 = vmatprep.subr.mxu0 0.0
  %3094 = vmatpush1.xpose.msra.mxu0 0.0
  %3095 = vmatprep.subr.mxu0 0.0
  %3096 = vmatpush1.xpose.msra.mxu0 0.0
  %3097 = vmatprep.subr.mxu0 0.0
  %3098 = vmatpush1.xpose.msra.mxu0 0.0
  %3099 = vmatprep.subr.mxu0 0.0
  %3100 = vmatpush1.xpose.msra.mxu0 0.0
  %3101 = vmatprep.subr.mxu0 0.0
  %3102 = vmatpush1.xpose.msra.mxu0 0.0
  %3103 = vmatprep.subr.mxu0 0.0
  %3104 = vmatpush1.xpose.msra.mxu0 0.0
  %3105 = vmatprep.subr.mxu0 0.0
  %3106 = vmatpush1.xpose.msra.mxu0 0.0
  %3107 = vmatprep.subr.mxu0 0.0
  %3108 = vmatpush1.xpose.msra.mxu0 0.0
  %3109 = vmatprep.subr.mxu0 0.0
  %3110 = vmatpush1.xpose.msra.mxu0 0.0
  %3111 = vmatprep.subr.mxu0 0.0
  %3112 = vmatpush1.xpose.msra.mxu0 0.0
  %3113 = vmatprep.subr.mxu0 0.0
  %3114 = vmatpush1.xpose.msra.mxu0 0.0
  %3115 = vmatprep.subr.mxu0 0.0
  %3116 = vmatpush1.xpose.msra.mxu0 0.0
  %3117 = vmatprep.subr.mxu0 0.0
  %3118 = vmatpush1.xpose.msra.mxu0 0.0
  %3119 = vmatprep.subr.mxu0 0.0
  %3120 = vmatpush1.xpose.msra.mxu0 0.0
  %3121 = vmatprep.subr.mxu0 0.0
  %3122 = vmatpush1.xpose.msra.mxu0 0.0
  %3123 = vmatprep.subr.mxu0 0.0
  %3124 = vmatpush1.xpose.msra.mxu0 0.0
  %3125 = vmatprep.mubr.f32.mxu0 0.0
  %3126 = vmatmul.mubr.f32.gmra.mrb[0].mxu0 %v3057
  %v3127 = vpop.f32.mrb[0].mxu0
  %v3128 = vadd.f32 0.0, %v3127
  %v3129 = vpop.f32.mrb[0].mxu0
  %3130 = vdwg.mxu0
  %v3131 = vmul.f32 %v3128, 0.35355338
  %v3132 = vsel %vm417, %v3131, -inf
  %3133 = vmax.xlane.f32.xlu0 %v3132
  %v3134 = vpop.xlane.xlu0 %3133
  %v3135 = vsub.f32 %v3131, %v3134
  %v3136 = vmul.f32 %v3135, 1.442695
  %v3137 = vpow.pop %v3136
  %v3138 = vsel %vm417, %v3137, 0.0
  %3139 = vadd.xlane.f32.xlu0 %v3138
  %v3140 = vpop.xlane.xlu0 %3139
  %v3141 = vrcp.pop %v3140
  %v3142 = vmul.f32 %v3137, %v3141
  %3143 = vrot.lane.b32.xlu0 %v2886, 56
  %v3144 = vpop.permute.xlu0 %3143
  %v3146 = vsel %vm431, %v3142, 0
  %v3148 = vsel %vm435, %v3144, 0
  %3150 = vmatprep.subr.mxu0 0.0
  %3151 = vmatpush1.msra.mxu0 %v3148
  %3152 = vmatprep.subr.mxu0 0.0
  %3153 = vmatpush1.msra.mxu0 0.0
  %3154 = vmatprep.subr.mxu0 0.0
  %3155 = vmatpush1.msra.mxu0 0.0
  %3156 = vmatprep.subr.mxu0 0.0
  %3157 = vmatpush1.msra.mxu0 0.0
  %3158 = vmatprep.subr.mxu0 0.0
  %3159 = vmatpush1.msra.mxu0 0.0
  %3160 = vmatprep.subr.mxu0 0.0
  %3161 = vmatpush1.msra.mxu0 0.0
  %3162 = vmatprep.subr.mxu0 0.0
  %3163 = vmatpush1.msra.mxu0 0.0
  %3164 = vmatprep.subr.mxu0 0.0
  %3165 = vmatpush1.msra.mxu0 0.0
  %3166 = vmatprep.subr.mxu0 0.0
  %3167 = vmatpush1.msra.mxu0 0.0
  %3168 = vmatprep.subr.mxu0 0.0
  %3169 = vmatpush1.msra.mxu0 0.0
  %3170 = vmatprep.subr.mxu0 0.0
  %3171 = vmatpush1.msra.mxu0 0.0
  %3172 = vmatprep.subr.mxu0 0.0
  %3173 = vmatpush1.msra.mxu0 0.0
  %3174 = vmatprep.subr.mxu0 0.0
  %3175 = vmatpush1.msra.mxu0 0.0
  %3176 = vmatprep.subr.mxu0 0.0
  %3177 = vmatpush1.msra.mxu0 0.0
  %3178 = vmatprep.subr.mxu0 0.0
  %3179 = vmatpush1.msra.mxu0 0.0
  %3180 = vmatprep.subr.mxu0 0.0
  %3181 = vmatpush1.msra.mxu0 0.0
  %3182 = vmatprep.subr.mxu0 0.0
  %3183 = vmatpush1.msra.mxu0 0.0
  %3184 = vmatprep.subr.mxu0 0.0
  %3185 = vmatpush1.msra.mxu0 0.0
  %3186 = vmatprep.subr.mxu0 0.0
  %3187 = vmatpush1.msra.mxu0 0.0
  %3188 = vmatprep.subr.mxu0 0.0
  %3189 = vmatpush1.msra.mxu0 0.0
  %3190 = vmatprep.subr.mxu0 0.0
  %3191 = vmatpush1.msra.mxu0 0.0
  %3192 = vmatprep.subr.mxu0 0.0
  %3193 = vmatpush1.msra.mxu0 0.0
  %3194 = vmatprep.subr.mxu0 0.0
  %3195 = vmatpush1.msra.mxu0 0.0
  %3196 = vmatprep.subr.mxu0 0.0
  %3197 = vmatpush1.msra.mxu0 0.0
  %3198 = vmatprep.subr.mxu0 0.0
  %3199 = vmatpush1.msra.mxu0 0.0
  %3200 = vmatprep.subr.mxu0 0.0
  %3201 = vmatpush1.msra.mxu0 0.0
  %3202 = vmatprep.subr.mxu0 0.0
  %3203 = vmatpush1.msra.mxu0 0.0
  %3204 = vmatprep.subr.mxu0 0.0
  %3205 = vmatpush1.msra.mxu0 0.0
  %3206 = vmatprep.subr.mxu0 0.0
  %3207 = vmatpush1.msra.mxu0 0.0
  %3208 = vmatprep.subr.mxu0 0.0
  %3209 = vmatpush1.msra.mxu0 0.0
  %3210 = vmatprep.subr.mxu0 0.0
  %3211 = vmatpush1.msra.mxu0 0.0
  %3212 = vmatprep.subr.mxu0 0.0
  %3213 = vmatpush1.msra.mxu0 0.0
  %3214 = vmatprep.mubr.f32.mxu0 0.0
  %3215 = vmatmul.mubr.f32.gmra.mrb[0].mxu0 %v3146
  %v3216 = vpop.f32.mrb[0].mxu0
  %v3217 = vadd.f32 0.0, %v3216
  %v3218 = vpop.f32.mrb[0].mxu0
  %3219 = vdwg.mxu0
  %3221 = vrot.lane.b32.xlu0 %v3217, 8
  %v3222 = vpop.permute.xlu0 %3221
  %3224 = vst.msk [vmem:[#allocation2 + $0x5] sm:$0x1f] %vm681, %v3222
  %3225 = vrot.lane.b32.xlu0 %v2886, 112
  %v3226 = vpop.permute.xlu0 %3225
  %3227 = vrot.lane.b32.xlu0 %v2886, 80
  %v3228 = vpop.permute.xlu0 %3227
  %v3229 = vsel %vm341, %v3226, 0
  %v3231 = vsel %vm341, %v3228, 0
  %3233 = vmatprep.subr.mxu0 0.0
  %3234 = vmatpush1.xpose.msra.mxu0 %v3231
  %3235 = vmatprep.subr.mxu0 0.0
  %3236 = vmatpush1.xpose.msra.mxu0 0.0
  %3237 = vmatprep.subr.mxu0 0.0
  %3238 = vmatpush1.xpose.msra.mxu0 0.0
  %3239 = vmatprep.subr.mxu0 0.0
  %3240 = vmatpush1.xpose.msra.mxu0 0.0
  %3241 = vmatprep.subr.mxu0 0.0
  %3242 = vmatpush1.xpose.msra.mxu0 0.0
  %3243 = vmatprep.subr.mxu0 0.0
  %3244 = vmatpush1.xpose.msra.mxu0 0.0
  %3245 = vmatprep.subr.mxu0 0.0
  %3246 = vmatpush1.xpose.msra.mxu0 0.0
  %3247 = vmatprep.subr.mxu0 0.0
  %3248 = vmatpush1.xpose.msra.mxu0 0.0
  %3249 = vmatprep.subr.mxu0 0.0
  %3250 = vmatpush1.xpose.msra.mxu0 0.0
  %3251 = vmatprep.subr.mxu0 0.0
  %3252 = vmatpush1.xpose.msra.mxu0 0.0
  %3253 = vmatprep.subr.mxu0 0.0
  %3254 = vmatpush1.xpose.msra.mxu0 0.0
  %3255 = vmatprep.subr.mxu0 0.0
  %3256 = vmatpush1.xpose.msra.mxu0 0.0
  %3257 = vmatprep.subr.mxu0 0.0
  %3258 = vmatpush1.xpose.msra.mxu0 0.0
  %3259 = vmatprep.subr.mxu0 0.0
  %3260 = vmatpush1.xpose.msra.mxu0 0.0
  %3261 = vmatprep.subr.mxu0 0.0
  %3262 = vmatpush1.xpose.msra.mxu0 0.0
  %3263 = vmatprep.subr.mxu0 0.0
  %3264 = vmatpush1.xpose.msra.mxu0 0.0
  %3265 = vmatprep.subr.mxu0 0.0
  %3266 = vmatpush1.xpose.msra.mxu0 0.0
  %3267 = vmatprep.subr.mxu0 0.0
  %3268 = vmatpush1.xpose.msra.mxu0 0.0
  %3269 = vmatprep.subr.mxu0 0.0
  %3270 = vmatpush1.xpose.msra.mxu0 0.0
  %3271 = vmatprep.subr.mxu0 0.0
  %3272 = vmatpush1.xpose.msra.mxu0 0.0
  %3273 = vmatprep.subr.mxu0 0.0
  %3274 = vmatpush1.xpose.msra.mxu0 0.0
  %3275 = vmatprep.subr.mxu0 0.0
  %3276 = vmatpush1.xpose.msra.mxu0 0.0
  %3277 = vmatprep.subr.mxu0 0.0
  %3278 = vmatpush1.xpose.msra.mxu0 0.0
  %3279 = vmatprep.subr.mxu0 0.0
  %3280 = vmatpush1.xpose.msra.mxu0 0.0
  %3281 = vmatprep.subr.mxu0 0.0
  %3282 = vmatpush1.xpose.msra.mxu0 0.0
  %3283 = vmatprep.subr.mxu0 0.0
  %3284 = vmatpush1.xpose.msra.mxu0 0.0
  %3285 = vmatprep.subr.mxu0 0.0
  %3286 = vmatpush1.xpose.msra.mxu0 0.0
  %3287 = vmatprep.subr.mxu0 0.0
  %3288 = vmatpush1.xpose.msra.mxu0 0.0
  %3289 = vmatprep.subr.mxu0 0.0
  %3290 = vmatpush1.xpose.msra.mxu0 0.0
  %3291 = vmatprep.subr.mxu0 0.0
  %3292 = vmatpush1.xpose.msra.mxu0 0.0
  %3293 = vmatprep.subr.mxu0 0.0
  %3294 = vmatpush1.xpose.msra.mxu0 0.0
  %3295 = vmatprep.subr.mxu0 0.0
  %3296 = vmatpush1.xpose.msra.mxu0 0.0
  %3297 = vmatprep.mubr.f32.mxu0 0.0
  %3298 = vmatmul.mubr.f32.gmra.mrb[0].mxu0 %v3229
  %v3299 = vpop.f32.mrb[0].mxu0
  %v3300 = vadd.f32 0.0, %v3299
  %v3301 = vpop.f32.mrb[0].mxu0
  %3302 = vdwg.mxu0
  %v3303 = vmul.f32 %v3300, 0.35355338
  %v3304 = vsel %vm417, %v3303, -inf
  %3305 = vmax.xlane.f32.xlu0 %v3304
  %v3306 = vpop.xlane.xlu0 %3305
  %v3307 = vsub.f32 %v3303, %v3306
  %v3308 = vmul.f32 %v3307, 1.442695
  %v3309 = vpow.pop %v3308
  %v3310 = vsel %vm417, %v3309, 0.0
  %3311 = vadd.xlane.f32.xlu0 %v3310
  %v3312 = vpop.xlane.xlu0 %3311
  %v3313 = vrcp.pop %v3312
  %v3314 = vmul.f32 %v3309, %v3313
  %3315 = vrot.lane.b32.xlu0 %v2886, 48
  %v3316 = vpop.permute.xlu0 %3315
  %v3318 = vsel %vm431, %v3314, 0
  %v3320 = vsel %vm435, %v3316, 0
  %3322 = vmatprep.subr.mxu0 0.0
  %3323 = vmatpush1.msra.mxu0 %v3320
  %3324 = vmatprep.subr.mxu0 0.0
  %3325 = vmatpush1.msra.mxu0 0.0
  %3326 = vmatprep.subr.mxu0 0.0
  %3327 = vmatpush1.msra.mxu0 0.0
  %3328 = vmatprep.subr.mxu0 0.0
  %3329 = vmatpush1.msra.mxu0 0.0
  %3330 = vmatprep.subr.mxu0 0.0
  %3331 = vmatpush1.msra.mxu0 0.0
  %3332 = vmatprep.subr.mxu0 0.0
  %3333 = vmatpush1.msra.mxu0 0.0
  %3334 = vmatprep.subr.mxu0 0.0
  %3335 = vmatpush1.msra.mxu0 0.0
  %3336 = vmatprep.subr.mxu0 0.0
  %3337 = vmatpush1.msra.mxu0 0.0
  %3338 = vmatprep.subr.mxu0 0.0
  %3339 = vmatpush1.msra.mxu0 0.0
  %3340 = vmatprep.subr.mxu0 0.0
  %3341 = vmatpush1.msra.mxu0 0.0
  %3342 = vmatprep.subr.mxu0 0.0
  %3343 = vmatpush1.msra.mxu0 0.0
  %3344 = vmatprep.subr.mxu0 0.0
  %3345 = vmatpush1.msra.mxu0 0.0
  %3346 = vmatprep.subr.mxu0 0.0
  %3347 = vmatpush1.msra.mxu0 0.0
  %3348 = vmatprep.subr.mxu0 0.0
  %3349 = vmatpush1.msra.mxu0 0.0
  %3350 = vmatprep.subr.mxu0 0.0
  %3351 = vmatpush1.msra.mxu0 0.0
  %3352 = vmatprep.subr.mxu0 0.0
  %3353 = vmatpush1.msra.mxu0 0.0
  %3354 = vmatprep.subr.mxu0 0.0
  %3355 = vmatpush1.msra.mxu0 0.0
  %3356 = vmatprep.subr.mxu0 0.0
  %3357 = vmatpush1.msra.mxu0 0.0
  %3358 = vmatprep.subr.mxu0 0.0
  %3359 = vmatpush1.msra.mxu0 0.0
  %3360 = vmatprep.subr.mxu0 0.0
  %3361 = vmatpush1.msra.mxu0 0.0
  %3362 = vmatprep.subr.mxu0 0.0
  %3363 = vmatpush1.msra.mxu0 0.0
  %3364 = vmatprep.subr.mxu0 0.0
  %3365 = vmatpush1.msra.mxu0 0.0
  %3366 = vmatprep.subr.mxu0 0.0
  %3367 = vmatpush1.msra.mxu0 0.0
  %3368 = vmatprep.subr.mxu0 0.0
  %3369 = vmatpush1.msra.mxu0 0.0
  %3370 = vmatprep.subr.mxu0 0.0
  %3371 = vmatpush1.msra.mxu0 0.0
  %3372 = vmatprep.subr.mxu0 0.0
  %3373 = vmatpush1.msra.mxu0 0.0
  %3374 = vmatprep.subr.mxu0 0.0
  %3375 = vmatpush1.msra.mxu0 0.0
  %3376 = vmatprep.subr.mxu0 0.0
  %3377 = vmatpush1.msra.mxu0 0.0
  %3378 = vmatprep.subr.mxu0 0.0
  %3379 = vmatpush1.msra.mxu0 0.0
  %3380 = vmatprep.subr.mxu0 0.0
  %3381 = vmatpush1.msra.mxu0 0.0
  %3382 = vmatprep.subr.mxu0 0.0
  %3383 = vmatpush1.msra.mxu0 0.0
  %3384 = vmatprep.subr.mxu0 0.0
  %3385 = vmatpush1.msra.mxu0 0.0
  %3386 = vmatprep.mubr.f32.mxu0 0.0
  %3387 = vmatmul.mubr.f32.gmra.mrb[0].mxu0 %v3318
  %v3388 = vpop.f32.mrb[0].mxu0
  %v3389 = vadd.f32 0.0, %v3388
  %v3390 = vpop.f32.mrb[0].mxu0
  %3391 = vdwg.mxu0
  %3393 = vrot.lane.b32.xlu0 %v3389, 16
  %v3394 = vpop.permute.xlu0 %3393
  %3396 = vst.msk [vmem:[#allocation2 + $0x5] sm:$0x1f] %vm854, %v3394
  %3397 = vrot.lane.b32.xlu0 %v2886, 104
  %v3398 = vpop.permute.xlu0 %3397
  %3399 = vrot.lane.b32.xlu0 %v2886, 72
  %v3400 = vpop.permute.xlu0 %3399
  %v3401 = vsel %vm341, %v3398, 0
  %v3403 = vsel %vm341, %v3400, 0
  %3405 = vmatprep.subr.mxu0 0.0
  %3406 = vmatpush1.xpose.msra.mxu0 %v3403
  %3407 = vmatprep.subr.mxu0 0.0
  %3408 = vmatpush1.xpose.msra.mxu0 0.0
  %3409 = vmatprep.subr.mxu0 0.0
  %3410 = vmatpush1.xpose.msra.mxu0 0.0
  %3411 = vmatprep.subr.mxu0 0.0
  %3412 = vmatpush1.xpose.msra.mxu0 0.0
  %3413 = vmatprep.subr.mxu0 0.0
  %3414 = vmatpush1.xpose.msra.mxu0 0.0
  %3415 = vmatprep.subr.mxu0 0.0
  %3416 = vmatpush1.xpose.msra.mxu0 0.0
  %3417 = vmatprep.subr.mxu0 0.0
  %3418 = vmatpush1.xpose.msra.mxu0 0.0
  %3419 = vmatprep.subr.mxu0 0.0
  %3420 = vmatpush1.xpose.msra.mxu0 0.0
  %3421 = vmatprep.subr.mxu0 0.0
  %3422 = vmatpush1.xpose.msra.mxu0 0.0
  %3423 = vmatprep.subr.mxu0 0.0
  %3424 = vmatpush1.xpose.msra.mxu0 0.0
  %3425 = vmatprep.subr.mxu0 0.0
  %3426 = vmatpush1.xpose.msra.mxu0 0.0
  %3427 = vmatprep.subr.mxu0 0.0
  %3428 = vmatpush1.xpose.msra.mxu0 0.0
  %3429 = vmatprep.subr.mxu0 0.0
  %3430 = vmatpush1.xpose.msra.mxu0 0.0
  %3431 = vmatprep.subr.mxu0 0.0
  %3432 = vmatpush1.xpose.msra.mxu0 0.0
  %3433 = vmatprep.subr.mxu0 0.0
  %3434 = vmatpush1.xpose.msra.mxu0 0.0
  %3435 = vmatprep.subr.mxu0 0.0
  %3436 = vmatpush1.xpose.msra.mxu0 0.0
  %3437 = vmatprep.subr.mxu0 0.0
  %3438 = vmatpush1.xpose.msra.mxu0 0.0
  %3439 = vmatprep.subr.mxu0 0.0
  %3440 = vmatpush1.xpose.msra.mxu0 0.0
  %3441 = vmatprep.subr.mxu0 0.0
  %3442 = vmatpush1.xpose.msra.mxu0 0.0
  %3443 = vmatprep.subr.mxu0 0.0
  %3444 = vmatpush1.xpose.msra.mxu0 0.0
  %3445 = vmatprep.subr.mxu0 0.0
  %3446 = vmatpush1.xpose.msra.mxu0 0.0
  %3447 = vmatprep.subr.mxu0 0.0
  %3448 = vmatpush1.xpose.msra.mxu0 0.0
  %3449 = vmatprep.subr.mxu0 0.0
  %3450 = vmatpush1.xpose.msra.mxu0 0.0
  %3451 = vmatprep.subr.mxu0 0.0
  %3452 = vmatpush1.xpose.msra.mxu0 0.0
  %3453 = vmatprep.subr.mxu0 0.0
  %3454 = vmatpush1.xpose.msra.mxu0 0.0
  %3455 = vmatprep.subr.mxu0 0.0
  %3456 = vmatpush1.xpose.msra.mxu0 0.0
  %3457 = vmatprep.subr.mxu0 0.0
  %3458 = vmatpush1.xpose.msra.mxu0 0.0
  %3459 = vmatprep.subr.mxu0 0.0
  %3460 = vmatpush1.xpose.msra.mxu0 0.0
  %3461 = vmatprep.subr.mxu0 0.0
  %3462 = vmatpush1.xpose.msra.mxu0 0.0
  %3463 = vmatprep.subr.mxu0 0.0
  %3464 = vmatpush1.xpose.msra.mxu0 0.0
  %3465 = vmatprep.subr.mxu0 0.0
  %3466 = vmatpush1.xpose.msra.mxu0 0.0
  %3467 = vmatprep.subr.mxu0 0.0
  %3468 = vmatpush1.xpose.msra.mxu0 0.0
  %3469 = vmatprep.mubr.f32.mxu0 0.0
  %3470 = vmatmul.mubr.f32.gmra.mrb[0].mxu0 %v3401
  %v3471 = vpop.f32.mrb[0].mxu0
  %v3472 = vadd.f32 0.0, %v3471
  %v3473 = vpop.f32.mrb[0].mxu0
  %3474 = vdwg.mxu0
  %v3475 = vmul.f32 %v3472, 0.35355338
  %v3476 = vsel %vm417, %v3475, -inf
  %3477 = vmax.xlane.f32.xlu0 %v3476
  %v3478 = vpop.xlane.xlu0 %3477
  %v3479 = vsub.f32 %v3475, %v3478
  %v3480 = vmul.f32 %v3479, 1.442695
  %v3481 = vpow.pop %v3480
  %v3482 = vsel %vm417, %v3481, 0.0
  %3483 = vadd.xlane.f32.xlu0 %v3482
  %v3484 = vpop.xlane.xlu0 %3483
  %v3485 = vrcp.pop %v3484
  %v3486 = vmul.f32 %v3481, %v3485
  %3487 = vrot.lane.b32.xlu0 %v2886, 40
  %v3488 = vpop.permute.xlu0 %3487
  %v3490 = vsel %vm431, %v3486, 0
  %v3492 = vsel %vm435, %v3488, 0
  %3494 = vmatprep.subr.mxu0 0.0
  %3495 = vmatpush1.msra.mxu0 %v3492
  %3496 = vmatprep.subr.mxu0 0.0
  %3497 = vmatpush1.msra.mxu0 0.0
  %3498 = vmatprep.subr.mxu0 0.0
  %3499 = vmatpush1.msra.mxu0 0.0
  %3500 = vmatprep.subr.mxu0 0.0
  %3501 = vmatpush1.msra.mxu0 0.0
  %3502 = vmatprep.subr.mxu0 0.0
  %3503 = vmatpush1.msra.mxu0 0.0
  %3504 = vmatprep.subr.mxu0 0.0
  %3505 = vmatpush1.msra.mxu0 0.0
  %3506 = vmatprep.subr.mxu0 0.0
  %3507 = vmatpush1.msra.mxu0 0.0
  %3508 = vmatprep.subr.mxu0 0.0
  %3509 = vmatpush1.msra.mxu0 0.0
  %3510 = vmatprep.subr.mxu0 0.0
  %3511 = vmatpush1.msra.mxu0 0.0
  %3512 = vmatprep.subr.mxu0 0.0
  %3513 = vmatpush1.msra.mxu0 0.0
  %3514 = vmatprep.subr.mxu0 0.0
  %3515 = vmatpush1.msra.mxu0 0.0
  %3516 = vmatprep.subr.mxu0 0.0
  %3517 = vmatpush1.msra.mxu0 0.0
  %3518 = vmatprep.subr.mxu0 0.0
  %3519 = vmatpush1.msra.mxu0 0.0
  %3520 = vmatprep.subr.mxu0 0.0
  %3521 = vmatpush1.msra.mxu0 0.0
  %3522 = vmatprep.subr.mxu0 0.0
  %3523 = vmatpush1.msra.mxu0 0.0
  %3524 = vmatprep.subr.mxu0 0.0
  %3525 = vmatpush1.msra.mxu0 0.0
  %3526 = vmatprep.subr.mxu0 0.0
  %3527 = vmatpush1.msra.mxu0 0.0
  %3528 = vmatprep.subr.mxu0 0.0
  %3529 = vmatpush1.msra.mxu0 0.0
  %3530 = vmatprep.subr.mxu0 0.0
  %3531 = vmatpush1.msra.mxu0 0.0
  %3532 = vmatprep.subr.mxu0 0.0
  %3533 = vmatpush1.msra.mxu0 0.0
  %3534 = vmatprep.subr.mxu0 0.0
  %3535 = vmatpush1.msra.mxu0 0.0
  %3536 = vmatprep.subr.mxu0 0.0
  %3537 = vmatpush1.msra.mxu0 0.0
  %3538 = vmatprep.subr.mxu0 0.0
  %3539 = vmatpush1.msra.mxu0 0.0
  %3540 = vmatprep.subr.mxu0 0.0
  %3541 = vmatpush1.msra.mxu0 0.0
  %3542 = vmatprep.subr.mxu0 0.0
  %3543 = vmatpush1.msra.mxu0 0.0
  %3544 = vmatprep.subr.mxu0 0.0
  %3545 = vmatpush1.msra.mxu0 0.0
  %3546 = vmatprep.subr.mxu0 0.0
  %3547 = vmatpush1.msra.mxu0 0.0
  %3548 = vmatprep.subr.mxu0 0.0
  %3549 = vmatpush1.msra.mxu0 0.0
  %3550 = vmatprep.subr.mxu0 0.0
  %3551 = vmatpush1.msra.mxu0 0.0
  %3552 = vmatprep.subr.mxu0 0.0
  %3553 = vmatpush1.msra.mxu0 0.0
  %3554 = vmatprep.subr.mxu0 0.0
  %3555 = vmatpush1.msra.mxu0 0.0
  %3556 = vmatprep.subr.mxu0 0.0
  %3557 = vmatpush1.msra.mxu0 0.0
  %3558 = vmatprep.mubr.f32.mxu0 0.0
  %3559 = vmatmul.mubr.f32.gmra.mrb[0].mxu0 %v3490
  %v3560 = vpop.f32.mrb[0].mxu0
  %v3561 = vadd.f32 0.0, %v3560
  %v3562 = vpop.f32.mrb[0].mxu0
  %3563 = vdwg.mxu0
  %3565 = vrot.lane.b32.xlu0 %v3561, 24
  %v3566 = vpop.permute.xlu0 %3565
  %3568 = vst.msk [vmem:[#allocation2 + $0x5] sm:$0x1f] %vm1027, %v3566
  %v3569 = vld [vmem:[#allocation2] sm:$0xff]
  %v3570 = vld [vmem:[#allocation2 + $0x8] sm:$0x3]
  %s3571 = scalar_lea.vmem %s10, 32
  %v3572 = vld [vmem:[%s3571] sm:$0xff]
  %v3573 = vld [vmem:[%s3571 + $0x8] sm:$0xff]
  %v3574 = vld [vmem:[%s3571 + $0x10] sm:$0xff]
  %v3575 = vld [vmem:[%s3571 + $0x18] sm:$0xff]
  %v3577 = vsel %vm201, %v3569, 0
  %v3580 = vsel %vm201, %v3570, 0
  %3582 = vmatprep.subr.mxu0 0.0
  %3583 = vmatpush1.msra.mxu0 %v3572
  %3584 = vmatprep.subr.mxu0 0.0
  %3585 = vmatpush1.msra.mxu0 %v3573
  %3586 = vmatprep.subr.mxu0 0.0
  %3587 = vmatpush1.msra.mxu0 %v3574
  %3588 = vmatprep.subr.mxu0 0.0
  %3589 = vmatpush1.msra.mxu0 %v3575
  %3590 = vmatprep.subr.mxu0 0.0
  %3591 = vmatpush1.msra.mxu0 0.0
  %3592 = vmatprep.subr.mxu0 0.0
  %3593 = vmatpush1.msra.mxu0 0.0
  %3594 = vmatprep.subr.mxu0 0.0
  %3595 = vmatpush1.msra.mxu0 0.0
  %3596 = vmatprep.subr.mxu0 0.0
  %3597 = vmatpush1.msra.mxu0 0.0
  %3598 = vmatprep.subr.mxu0 0.0
  %3599 = vmatpush1.msra.mxu0 0.0
  %3600 = vmatprep.subr.mxu0 0.0
  %3601 = vmatpush1.msra.mxu0 0.0
  %3602 = vmatprep.subr.mxu0 0.0
  %3603 = vmatpush1.msra.mxu0 0.0
  %3604 = vmatprep.subr.mxu0 0.0
  %3605 = vmatpush1.msra.mxu0 0.0
  %3606 = vmatprep.subr.mxu0 0.0
  %3607 = vmatpush1.msra.mxu0 0.0
  %3608 = vmatprep.subr.mxu0 0.0
  %3609 = vmatpush1.msra.mxu0 0.0
  %3610 = vmatprep.subr.mxu0 0.0
  %3611 = vmatpush1.msra.mxu0 0.0
  %3612 = vmatprep.subr.mxu0 0.0
  %3613 = vmatpush1.msra.mxu0 0.0
  %3614 = vmatprep.subr.mxu0 0.0
  %3615 = vmatpush1.msra.mxu0 0.0
  %3616 = vmatprep.subr.mxu0 0.0
  %3617 = vmatpush1.msra.mxu0 0.0
  %3618 = vmatprep.subr.mxu0 0.0
  %3619 = vmatpush1.msra.mxu0 0.0
  %3620 = vmatprep.subr.mxu0 0.0
  %3621 = vmatpush1.msra.mxu0 0.0
  %3622 = vmatprep.subr.mxu0 0.0
  %3623 = vmatpush1.msra.mxu0 0.0
  %3624 = vmatprep.subr.mxu0 0.0
  %3625 = vmatpush1.msra.mxu0 0.0
  %3626 = vmatprep.subr.mxu0 0.0
  %3627 = vmatpush1.msra.mxu0 0.0
  %3628 = vmatprep.subr.mxu0 0.0
  %3629 = vmatpush1.msra.mxu0 0.0
  %3630 = vmatprep.subr.mxu0 0.0
  %3631 = vmatpush1.msra.mxu0 0.0
  %3632 = vmatprep.subr.mxu0 0.0
  %3633 = vmatpush1.msra.mxu0 0.0
  %3634 = vmatprep.subr.mxu0 0.0
  %3635 = vmatpush1.msra.mxu0 0.0
  %3636 = vmatprep.subr.mxu0 0.0
  %3637 = vmatpush1.msra.mxu0 0.0
  %3638 = vmatprep.subr.mxu0 0.0
  %3639 = vmatpush1.msra.mxu0 0.0
  %3640 = vmatprep.subr.mxu0 0.0
  %3641 = vmatpush1.msra.mxu0 0.0
  %3642 = vmatprep.subr.mxu0 0.0
  %3643 = vmatpush1.msra.mxu0 0.0
  %3644 = vmatprep.subr.mxu0 0.0
  %3645 = vmatpush1.msra.mxu0 0.0
  %3646 = vmatprep.mubr.f32.mxu0 0.0
  %3647 = vmatmul.mubr.f32.gmra.mrb[0].mxu0 %v3577
  %v3648 = vpop.f32.mrb[0].mxu0
  %v3649 = vadd.f32 0.0, %v3648
  %v3650 = vpop.f32.mrb[0].mxu0
  %3651 = vmatprep.mubr.f32.mxu0 0.0
  %3652 = vmatmul.mubr.f32.gmra.mrb[0].mxu0 %v3580
  %v3653 = vpop.f32.mrb[0].mxu0
  %v3654 = vadd.f32 0.0, %v3653
  %v3655 = vpop.f32.mrb[0].mxu0
  %3656 = vdwg.mxu0
  %v3657 = vadd.f32 %v2058, %v3649
  %v3658 = vadd.f32 %v2059, %v3654
  %s3659 = scalar_lea.vmem %s11, 1
  %v3660 = vld [vmem:[%s3659] sm:$0x1]
  %v3662 = vlaneseq
  %v3663 = vshrl.u32 %v3662, 7
  %v3664 = vsub.s32 0, %v3663
  %v3665 = vrot.slane %v3660, %v3664
  %v3667 = vadd.f32 %v3657, %v3665
  %v3668 = vadd.f32 %v3658, %v3665
  %s3669 = scalar_lea.vmem %s12, 1
  %v3670 = vld [vmem:[%s3669] sm:$0x1]
  %s3671 = scalar_lea.vmem %s13, 1
  %v3672 = vld [vmem:[%s3671] sm:$0x1]
  %v3673 = vsel %vm201, %v3667, 0.0
  %3674 = vadd.xlane.f32.xlu0 %v3673
  %v3675 = vpop.xlane.xlu0 %3674
  %v3676 = vsel %vm205, %v3668, 0.0
  %3677 = vadd.xlane.f32.xlu0 %v3676
  %v3678 = vpop.xlane.xlu0 %3677
  %v3679 = vmul.f32 %v3675, %v209
  %v3680 = vmul.f32 %v3678, %v209
  %v3681 = vsub.f32 %v3667, %v3679
  %v3682 = vsub.f32 %v3668, %v3680
  %v3683 = vmul.f32 %v3681, %v3681
  %v3684 = vmul.f32 %v3682, %v3682
  %v3685 = vsel %vm201, %v3683, 0.0
  %3686 = vadd.xlane.f32.xlu0 %v3685
  %v3687 = vpop.xlane.xlu0 %3686
  %v3688 = vsel %vm205, %v3684, 0.0
  %3689 = vadd.xlane.f32.xlu0 %v3688
  %v3690 = vpop.xlane.xlu0 %3689
  %v3691 = vmul.f32 %v3687, %v209
  %v3692 = vmul.f32 %v3690, %v209
  %v3693 = vadd.f32 %v3691, 1e-12
  %v3694 = vadd.f32 %v3692, 1e-12
  %v3695 = vrsqrt.pop %v3693
  %v3696 = vrsqrt.pop %v3694
  %v3697 = vmul.f32 %v3681, %v3695
  %v3698 = vmul.f32 %v3682, %v3696
  %v3700 = vlaneseq
  %v3701 = vshrl.u32 %v3700, 7
  %v3702 = vsub.s32 0, %v3701
  %v3703 = vrot.slane %v3670, %v3702
  %v3705 = vmul.f32 %v3697, %v3703
  %v3706 = vmul.f32 %v3698, %v3703
  %v3708 = vlaneseq
  %v3709 = vshrl.u32 %v3708, 7
  %v3710 = vsub.s32 0, %v3709
  %v3711 = vrot.slane %v3672, %v3710
  %v3713 = vadd.f32 %v3705, %v3711
  %v3714 = vadd.f32 %v3706, %v3711
  %s3715 = scalar_lea.vmem %s14, 32
  %v3716 = vld [vmem:[%s3715] sm:$0xff]
  %v3717 = vld [vmem:[%s3715 + $0x8] sm:$0xff]
  %v3718 = vld [vmem:[%s3715 + $0x10] sm:$0xff]
  %v3719 = vld [vmem:[%s3715 + $0x18] sm:$0xff]
  %s3720 = scalar_lea.vmem %s15, 1
  %v3721 = vld [vmem:[%s3720] sm:$0x1]
  %v3723 = vlaneseq
  %v3724 = vshrl.u32 %v3723, 7
  %v3725 = vsub.s32 0, %v3724
  %v3726 = vrot.slane %v3721, %v3725
  %v3729 = vsel %vm201, %v3713, 0
  %v3732 = vsel %vm201, %v3714, 0
  %3734 = vmatprep.subr.mxu0 0.0
  %3735 = vmatpush1.msra.mxu0 %v3716
  %3736 = vmatprep.subr.mxu0 0.0
  %3737 = vmatpush1.msra.mxu0 %v3717
  %3738 = vmatprep.subr.mxu0 0.0
  %3739 = vmatpush1.msra.mxu0 %v3718
  %3740 = vmatprep.subr.mxu0 0.0
  %3741 = vmatpush1.msra.mxu0 %v3719
  %3742 = vmatprep.subr.mxu0 0.0
  %3743 = vmatpush1.msra.mxu0 0.0
  %3744 = vmatprep.subr.mxu0 0.0
  %3745 = vmatpush1.msra.mxu0 0.0
  %3746 = vmatprep.subr.mxu0 0.0
  %3747 = vmatpush1.msra.mxu0 0.0
  %3748 = vmatprep.subr.mxu0 0.0
  %3749 = vmatpush1.msra.mxu0 0.0
  %3750 = vmatprep.subr.mxu0 0.0
  %3751 = vmatpush1.msra.mxu0 0.0
  %3752 = vmatprep.subr.mxu0 0.0
  %3753 = vmatpush1.msra.mxu0 0.0
  %3754 = vmatprep.subr.mxu0 0.0
  %3755 = vmatpush1.msra.mxu0 0.0
  %3756 = vmatprep.subr.mxu0 0.0
  %3757 = vmatpush1.msra.mxu0 0.0
  %3758 = vmatprep.subr.mxu0 0.0
  %3759 = vmatpush1.msra.mxu0 0.0
  %3760 = vmatprep.subr.mxu0 0.0
  %3761 = vmatpush1.msra.mxu0 0.0
  %3762 = vmatprep.subr.mxu0 0.0
  %3763 = vmatpush1.msra.mxu0 0.0
  %3764 = vmatprep.subr.mxu0 0.0
  %3765 = vmatpush1.msra.mxu0 0.0
  %3766 = vmatprep.subr.mxu0 0.0
  %3767 = vmatpush1.msra.mxu0 0.0
  %3768 = vmatprep.subr.mxu0 0.0
  %3769 = vmatpush1.msra.mxu0 0.0
  %3770 = vmatprep.subr.mxu0 0.0
  %3771 = vmatpush1.msra.mxu0 0.0
  %3772 = vmatprep.subr.mxu0 0.0
  %3773 = vmatpush1.msra.mxu0 0.0
  %3774 = vmatprep.subr.mxu0 0.0
  %3775 = vmatpush1.msra.mxu0 0.0
  %3776 = vmatprep.subr.mxu0 0.0
  %3777 = vmatpush1.msra.mxu0 0.0
  %3778 = vmatprep.subr.mxu0 0.0
  %3779 = vmatpush1.msra.mxu0 0.0
  %3780 = vmatprep.subr.mxu0 0.0
  %3781 = vmatpush1.msra.mxu0 0.0
  %3782 = vmatprep.subr.mxu0 0.0
  %3783 = vmatpush1.msra.mxu0 0.0
  %3784 = vmatprep.subr.mxu0 0.0
  %3785 = vmatpush1.msra.mxu0 0.0
  %3786 = vmatprep.subr.mxu0 0.0
  %3787 = vmatpush1.msra.mxu0 0.0
  %3788 = vmatprep.subr.mxu0 0.0
  %3789 = vmatpush1.msra.mxu0 0.0
  %3790 = vmatprep.subr.mxu0 0.0
  %3791 = vmatpush1.msra.mxu0 0.0
  %3792 = vmatprep.subr.mxu0 0.0
  %3793 = vmatpush1.msra.mxu0 0.0
  %3794 = vmatprep.subr.mxu0 0.0
  %3795 = vmatpush1.msra.mxu0 0.0
  %3796 = vmatprep.subr.mxu0 0.0
  %3797 = vmatpush1.msra.mxu0 0.0
  %3798 = vmatprep.mubr.f32.mxu0 0.0
  %3799 = vmatmul.mubr.f32.gmra.mrb[0].mxu0 %v3729
  %v3800 = vpop.f32.mrb[0].mxu0
  %v3801 = vadd.f32 %v3726, %v3800
  %v3802 = vpop.f32.mrb[0].mxu0
  %3803 = vmatprep.mubr.f32.mxu0 0.0
  %3804 = vmatmul.mubr.f32.gmra.mrb[0].mxu0 %v3732
  %v3805 = vpop.f32.mrb[0].mxu0
  %v3806 = vadd.f32 %v3726, %v3805
  %v3807 = vpop.f32.mrb[0].mxu0
  %3808 = vdwg.mxu0
  %v3809 = vmul.f32 %v3801, 0.5
  %v3810 = vmul.f32 %v3806, 0.5
  %v3811 = vmul.f32 %v3801, 0.70710677
  %v3812 = vmul.f32 %v3806, 0.70710677
  %v3813 = verf.f32.pop %v3811
  %v3814 = verf.f32.pop %v3812
  %v3815 = vadd.f32 %v3813, 1.0
  %v3816 = vadd.f32 %v3814, 1.0
  %v3817 = vmul.f32 %v3809, %v3815
  %v3818 = vmul.f32 %v3810, %v3816
  %s3819 = scalar_lea.vmem %s16, 64
  %v3820 = vld [vmem:[%s3819] sm:$0xff]
  %v3821 = vld [vmem:[%s3819 + $0x8] sm:$0xff]
  %v3822 = vld [vmem:[%s3819 + $0x10] sm:$0xff]
  %v3823 = vld [vmem:[%s3819 + $0x18] sm:$0xff]
  %v3824 = vld [vmem:[%s3819 + $0x20] sm:$0xff]
  %v3825 = vld [vmem:[%s3819 + $0x28] sm:$0xff]
  %v3826 = vld [vmem:[%s3819 + $0x30] sm:$0xff]
  %v3827 = vld [vmem:[%s3819 + $0x38] sm:$0xff]
  %v3829 = vsel %vm107, %v3817, 0
  %v3832 = vsel %vm107, %v3818, 0
  %3834 = vmatprep.subr.mxu0 0.0
  %3835 = vmatpush1.msra.mxu0 %v3820
  %3836 = vmatprep.subr.mxu0 0.0
  %3837 = vmatpush1.msra.mxu0 %v3821
  %3838 = vmatprep.subr.mxu0 0.0
  %3839 = vmatpush1.msra.mxu0 %v3822
  %3840 = vmatprep.subr.mxu0 0.0
  %3841 = vmatpush1.msra.mxu0 %v3823
  %3842 = vmatprep.subr.mxu0 0.0
  %3843 = vmatpush1.msra.mxu0 %v3824
  %3844 = vmatprep.subr.mxu0 0.0
  %3845 = vmatpush1.msra.mxu0 %v3825
  %3846 = vmatprep.subr.mxu0 0.0
  %3847 = vmatpush1.msra.mxu0 %v3826
  %3848 = vmatprep.subr.mxu0 0.0
  %3849 = vmatpush1.msra.mxu0 %v3827
  %3850 = vmatprep.subr.mxu0 0.0
  %3851 = vmatpush1.msra.mxu0 0.0
  %3852 = vmatprep.subr.mxu0 0.0
  %3853 = vmatpush1.msra.mxu0 0.0
  %3854 = vmatprep.subr.mxu0 0.0
  %3855 = vmatpush1.msra.mxu0 0.0
  %3856 = vmatprep.subr.mxu0 0.0
  %3857 = vmatpush1.msra.mxu0 0.0
  %3858 = vmatprep.subr.mxu0 0.0
  %3859 = vmatpush1.msra.mxu0 0.0
  %3860 = vmatprep.subr.mxu0 0.0
  %3861 = vmatpush1.msra.mxu0 0.0
  %3862 = vmatprep.subr.mxu0 0.0
  %3863 = vmatpush1.msra.mxu0 0.0
  %3864 = vmatprep.subr.mxu0 0.0
  %3865 = vmatpush1.msra.mxu0 0.0
  %3866 = vmatprep.subr.mxu0 0.0
  %3867 = vmatpush1.msra.mxu0 0.0
  %3868 = vmatprep.subr.mxu0 0.0
  %3869 = vmatpush1.msra.mxu0 0.0
  %3870 = vmatprep.subr.mxu0 0.0
  %3871 = vmatpush1.msra.mxu0 0.0
  %3872 = vmatprep.subr.mxu0 0.0
  %3873 = vmatpush1.msra.mxu0 0.0
  %3874 = vmatprep.subr.mxu0 0.0
  %3875 = vmatpush1.msra.mxu0 0.0
  %3876 = vmatprep.subr.mxu0 0.0
  %3877 = vmatpush1.msra.mxu0 0.0
  %3878 = vmatprep.subr.mxu0 0.0
  %3879 = vmatpush1.msra.mxu0 0.0
  %3880 = vmatprep.subr.mxu0 0.0
  %3881 = vmatpush1.msra.mxu0 0.0
  %3882 = vmatprep.subr.mxu0 0.0
  %3883 = vmatpush1.msra.mxu0 0.0
  %3884 = vmatprep.subr.mxu0 0.0
  %3885 = vmatpush1.msra.mxu0 0.0
  %3886 = vmatprep.subr.mxu0 0.0
  %3887 = vmatpush1.msra.mxu0 0.0
  %3888 = vmatprep.subr.mxu0 0.0
  %3889 = vmatpush1.msra.mxu0 0.0
  %3890 = vmatprep.subr.mxu0 0.0
  %3891 = vmatpush1.msra.mxu0 0.0
  %3892 = vmatprep.subr.mxu0 0.0
  %3893 = vmatpush1.msra.mxu0 0.0
  %3894 = vmatprep.subr.mxu0 0.0
  %3895 = vmatpush1.msra.mxu0 0.0
  %3896 = vmatprep.subr.mxu0 0.0
  %3897 = vmatpush1.msra.mxu0 0.0
  %3898 = vmatprep.mubr.f32.mxu0 0.0
  %3899 = vmatmul.mubr.f32.gmra.mrb[0].mxu0 %v3829
  %v3900 = vpop.f32.mrb[0].mxu0
  %v3901 = vadd.f32 0.0, %v3900
  %v3902 = vpop.f32.mrb[0].mxu0
  %3903 = vmatprep.mubr.f32.mxu0 0.0
  %3904 = vmatmul.mubr.f32.gmra.mrb[0].mxu0 %v3832
  %v3905 = vpop.f32.mrb[0].mxu0
  %v3906 = vpop.f32.mrb[0].mxu0
  %3907 = vdwg.mxu0
  %v3908 = vadd.f32 %v3667, %v3901
  %s3909 = scalar_lea.vmem %s17, 1
  %v3910 = vld [vmem:[%s3909] sm:$0x1]
  %v3912 = vlaneseq
  %v3913 = vshrl.u32 %v3912, 7
  %v3914 = vsub.s32 0, %v3913
  %v3915 = vrot.slane %v3910, %v3914
  %v3917 = vadd.f32 %v3908, %v3915
  %v3918 = vld [vmem:[%s18] sm:$0x1]
  %v3919 = vld [vmem:[%s19] sm:$0x1]
  %v3920 = vsel %vm201, %v3917, 0.0
  %3921 = vadd.xlane.f32.xlu0 %v3920
  %v3922 = vpop.xlane.xlu0 %3921
  %v3923 = vmul.f32 %v3922, %v209
  %v3924 = vsub.f32 %v3917, %v3923
  %v3925 = vmul.f32 %v3924, %v3924
  %v3926 = vsel %vm201, %v3925, 0.0
  %3927 = vadd.xlane.f32.xlu0 %v3926
  %v3928 = vpop.xlane.xlu0 %3927
  %v3929 = vmul.f32 %v3928, %v209
  %v3930 = vadd.f32 %v3929, 1e-12
  %v3931 = vrsqrt.pop %v3930
  %v3932 = vmul.f32 %v3924, %v3931
  %v3934 = vlaneseq
  %v3935 = vshrl.u32 %v3934, 7
  %v3936 = vsub.s32 0, %v3935
  %v3937 = vrot.slane %v3918, %v3936
  %v3939 = vmul.f32 %v3932, %v3937
  %v3941 = vlaneseq
  %v3942 = vshrl.u32 %v3941, 7
  %v3943 = vsub.s32 0, %v3942
  %v3944 = vrot.slane %v3919, %v3943
  %v3946 = vadd.f32 %v3939, %v3944
  %v3947 = vlaneseq
  %v3948 = vand.u32 %v3947, 127
  %v3949 = vld [vmem:[%s1] sm:$0x3]
  %3950 = vset.pattern.permute.xlu0 0
  %3951 = vperm.xlu0 %3950, %v3949
  %v3952 = vpop.permute.xlu0 %3951
  %vm3953 = vcmp.eq.s32.totalorder %v3948, %v3952
  %v3954 = vsel %vm3953, 1, 0
  %v3955 = vcvt.s32.f32 %v3954
  %v3956 = vld [vmem:[%s20] sm:$0xff]
  %v3957 = vld [vmem:[%s20 + $0x8] sm:$0xff]
  %v3958 = vld [vmem:[%s20 + $0x10] sm:$0xff]
  %v3959 = vld [vmem:[%s20 + $0x18] sm:$0xff]
  %v3960 = vld [vmem:[%s21] sm:$0x3]
  %vm3961 = vcmask 15360
  %v3963 = vsel %vm3961, %v3955, 0
  %vm3965 = vcmask 1041408
  %v3967 = vsel %vm3965, %v3960, 0
  %3969 = vmatprep.subr.mxu0 0.0
  %3970 = vmatpush1.msra.mxu0 %v3967
  %3971 = vmatprep.subr.mxu0 0.0
  %3972 = vmatpush1.msra.mxu0 0.0
  %3973 = vmatprep.subr.mxu0 0.0
  %3974 = vmatpush1.msra.mxu0 0.0
  %3975 = vmatprep.subr.mxu0 0.0
  %3976 = vmatpush1.msra.mxu0 0.0
  %3977 = vmatprep.subr.mxu0 0.0
  %3978 = vmatpush1.msra.mxu0 0.0
  %3979 = vmatprep.subr.mxu0 0.0
  %3980 = vmatpush1.msra.mxu0 0.0
  %3981 = vmatprep.subr.mxu0 0.0
  %3982 = vmatpush1.msra.mxu0 0.0
  %3983 = vmatprep.subr.mxu0 0.0
  %3984 = vmatpush1.msra.mxu0 0.0
  %3985 = vmatprep.subr.mxu0 0.0
  %3986 = vmatpush1.msra.mxu0 0.0
  %3987 = vmatprep.subr.mxu0 0.0
  %3988 = vmatpush1.msra.mxu0 0.0
  %3989 = vmatprep.subr.mxu0 0.0
  %3990 = vmatpush1.msra.mxu0 0.0
  %3991 = vmatprep.subr.mxu0 0.0
  %3992 = vmatpush1.msra.mxu0 0.0
  %3993 = vmatprep.subr.mxu0 0.0
  %3994 = vmatpush1.msra.mxu0 0.0
  %3995 = vmatprep.subr.mxu0 0.0
  %3996 = vmatpush1.msra.mxu0 0.0
  %3997 = vmatprep.subr.mxu0 0.0
  %3998 = vmatpush1.msra.mxu0 0.0
  %3999 = vmatprep.subr.mxu0 0.0
  %4000 = vmatpush1.msra.mxu0 0.0
  %4001 = vmatprep.subr.mxu0 0.0
  %4002 = vmatpush1.msra.mxu0 0.0
  %4003 = vmatprep.subr.mxu0 0.0
  %4004 = vmatpush1.msra.mxu0 0.0
  %4005 = vmatprep.subr.mxu0 0.0
  %4006 = vmatpush1.msra.mxu0 0.0
  %4007 = vmatprep.subr.mxu0 0.0
  %4008 = vmatpush1.msra.mxu0 0.0
  %4009 = vmatprep.subr.mxu0 0.0
  %4010 = vmatpush1.msra.mxu0 0.0
  %4011 = vmatprep.subr.mxu0 0.0
  %4012 = vmatpush1.msra.mxu0 0.0
  %4013 = vmatprep.subr.mxu0 0.0
  %4014 = vmatpush1.msra.mxu0 0.0
  %4015 = vmatprep.subr.mxu0 0.0
  %4016 = vmatpush1.msra.mxu0 0.0
  %4017 = vmatprep.subr.mxu0 0.0
  %4018 = vmatpush1.msra.mxu0 0.0
  %4019 = vmatprep.subr.mxu0 0.0
  %4020 = vmatpush1.msra.mxu0 0.0
  %4021 = vmatprep.subr.mxu0 0.0
  %4022 = vmatpush1.msra.mxu0 0.0
  %4023 = vmatprep.subr.mxu0 0.0
  %4024 = vmatpush1.msra.mxu0 0.0
  %4025 = vmatprep.subr.mxu0 0.0
  %4026 = vmatpush1.msra.mxu0 0.0
  %4027 = vmatprep.subr.mxu0 0.0
  %4028 = vmatpush1.msra.mxu0 0.0
  %4029 = vmatprep.subr.mxu0 0.0
  %4030 = vmatpush1.msra.mxu0 0.0
  %4031 = vmatprep.subr.mxu0 0.0
  %4032 = vmatpush1.msra.mxu0 0.0
  %4033 = vmatprep.mubr.f32.mxu0 0.0
  %4034 = vmatmul.mubr.f32.gmra.mrb[0].mxu0 %v3963
  %v4035 = vpop.f32.mrb[0].mxu0
  %v4036 = vadd.f32 0.0, %v4035
  %v4037 = vpop.f32.mrb[0].mxu0
  %4038 = vdwg.mxu0
  %v4040 = vsel %vm201, %v3946, 0
  %4042 = vmatprep.subr.mxu0 0.0
  %4043 = vmatpush1.msra.mxu0 %v3956
  %4044 = vmatprep.subr.mxu0 0.0
  %4045 = vmatpush1.msra.mxu0 %v3957
  %4046 = vmatprep.subr.mxu0 0.0
  %4047 = vmatpush1.msra.mxu0 %v3958
  %4048 = vmatprep.subr.mxu0 0.0
  %4049 = vmatpush1.msra.mxu0 %v3959
  %4050 = vmatprep.subr.mxu0 0.0
  %4051 = vmatpush1.msra.mxu0 0.0
  %4052 = vmatprep.subr.mxu0 0.0
  %4053 = vmatpush1.msra.mxu0 0.0
  %4054 = vmatprep.subr.mxu0 0.0
  %4055 = vmatpush1.msra.mxu0 0.0
  %4056 = vmatprep.subr.mxu0 0.0
  %4057 = vmatpush1.msra.mxu0 0.0
  %4058 = vmatprep.subr.mxu0 0.0
  %4059 = vmatpush1.msra.mxu0 0.0
  %4060 = vmatprep.subr.mxu0 0.0
  %4061 = vmatpush1.msra.mxu0 0.0
  %4062 = vmatprep.subr.mxu0 0.0
  %4063 = vmatpush1.msra.mxu0 0.0
  %4064 = vmatprep.subr.mxu0 0.0
  %4065 = vmatpush1.msra.mxu0 0.0
  %4066 = vmatprep.subr.mxu0 0.0
  %4067 = vmatpush1.msra.mxu0 0.0
  %4068 = vmatprep.subr.mxu0 0.0
  %4069 = vmatpush1.msra.mxu0 0.0
  %4070 = vmatprep.subr.mxu0 0.0
  %4071 = vmatpush1.msra.mxu0 0.0
  %4072 = vmatprep.subr.mxu0 0.0
  %4073 = vmatpush1.msra.mxu0 0.0
  %4074 = vmatprep.subr.mxu0 0.0
  %4075 = vmatpush1.msra.mxu0 0.0
  %4076 = vmatprep.subr.mxu0 0.0
  %4077 = vmatpush1.msra.mxu0 0.0
  %4078 = vmatprep.subr.mxu0 0.0
  %4079 = vmatpush1.msra.mxu0 0.0
  %4080 = vmatprep.subr.mxu0 0.0
  %4081 = vmatpush1.msra.mxu0 0.0
  %4082 = vmatprep.subr.mxu0 0.0
  %4083 = vmatpush1.msra.mxu0 0.0
  %4084 = vmatprep.subr.mxu0 0.0
  %4085 = vmatpush1.msra.mxu0 0.0
  %4086 = vmatprep.subr.mxu0 0.0
  %4087 = vmatpush1.msra.mxu0 0.0
  %4088 = vmatprep.subr.mxu0 0.0
  %4089 = vmatpush1.msra.mxu0 0.0
  %4090 = vmatprep.subr.mxu0 0.0
  %4091 = vmatpush1.msra.mxu0 0.0
  %4092 = vmatprep.subr.mxu0 0.0
  %4093 = vmatpush1.msra.mxu0 0.0
  %4094 = vmatprep.subr.mxu0 0.0
  %4095 = vmatpush1.msra.mxu0 0.0
  %4096 = vmatprep.subr.mxu0 0.0
  %4097 = vmatpush1.msra.mxu0 0.0
  %4098 = vmatprep.subr.mxu0 0.0
  %4099 = vmatpush1.msra.mxu0 0.0
  %4100 = vmatprep.subr.mxu0 0.0
  %4101 = vmatpush1.msra.mxu0 0.0
  %4102 = vmatprep.subr.mxu0 0.0
  %4103 = vmatpush1.msra.mxu0 0.0
  %4104 = vmatprep.subr.mxu0 0.0
  %4105 = vmatpush1.msra.mxu0 0.0
  %4106 = vmatprep.mubr.f32.mxu0 0.0
  %4107 = vmatmul.mubr.f32.gmra.mrb[0].mxu0 %v4040
  %v4108 = vpop.f32.mrb[0].mxu0
  %v4109 = vadd.f32 %v4036, %v4108
  %v4110 = vpop.f32.mrb[0].mxu0
  %4111 = vdwg.mxu0
  %v4112 = vld [vmem:[%s22] sm:$0x1]
  %v4113 = vadd.f32 %v4109, %v4112
  %4114 = vst [vmem:[%s23] sm:$0x1] %v4113
  %v4115 = vld [vmem:[%s20] sm:$0xff]
  %v4116 = vld [vmem:[%s20 + $0x8] sm:$0xff]
  %v4117 = vld [vmem:[%s20 + $0x10] sm:$0xff]
  %v4118 = vld [vmem:[%s20 + $0x18] sm:$0xff]
  %v4119 = vld [vmem:[%s21] sm:$0x3]
  %v4120 = vrot.slane %v3955, 1
  %v4121 = vsel %vm3961, %v4120, 0
  %v4124 = vsel %vm3965, %v4119, 0
  %4126 = vmatprep.subr.mxu0 0.0
  %4127 = vmatpush1.msra.mxu0 %v4124
  %4128 = vmatprep.subr.mxu0 0.0
  %4129 = vmatpush1.msra.mxu0 0.0
  %4130 = vmatprep.subr.mxu0 0.0
  %4131 = vmatpush1.msra.mxu0 0.0
  %4132 = vmatprep.subr.mxu0 0.0
  %4133 = vmatpush1.msra.mxu0 0.0
  %4134 = vmatprep.subr.mxu0 0.0
  %4135 = vmatpush1.msra.mxu0 0.0
  %4136 = vmatprep.subr.mxu0 0.0
  %4137 = vmatpush1.msra.mxu0 0.0
  %4138 = vmatprep.subr.mxu0 0.0
  %4139 = vmatpush1.msra.mxu0 0.0
  %4140 = vmatprep.subr.mxu0 0.0
  %4141 = vmatpush1.msra.mxu0 0.0
  %4142 = vmatprep.subr.mxu0 0.0
  %4143 = vmatpush1.msra.mxu0 0.0
  %4144 = vmatprep.subr.mxu0 0.0
  %4145 = vmatpush1.msra.mxu0 0.0
  %4146 = vmatprep.subr.mxu0 0.0
  %4147 = vmatpush1.msra.mxu0 0.0
  %4148 = vmatprep.subr.mxu0 0.0
  %4149 = vmatpush1.msra.mxu0 0.0
  %4150 = vmatprep.subr.mxu0 0.0
  %4151 = vmatpush1.msra.mxu0 0.0
  %4152 = vmatprep.subr.mxu0 0.0
  %4153 = vmatpush1.msra.mxu0 0.0
  %4154 = vmatprep.subr.mxu0 0.0
  %4155 = vmatpush1.msra.mxu0 0.0
  %4156 = vmatprep.subr.mxu0 0.0
  %4157 = vmatpush1.msra.mxu0 0.0
  %4158 = vmatprep.subr.mxu0 0.0
  %4159 = vmatpush1.msra.mxu0 0.0
  %4160 = vmatprep.subr.mxu0 0.0
  %4161 = vmatpush1.msra.mxu0 0.0
  %4162 = vmatprep.subr.mxu0 0.0
  %4163 = vmatpush1.msra.mxu0 0.0
  %4164 = vmatprep.subr.mxu0 0.0
  %4165 = vmatpush1.msra.mxu0 0.0
  %4166 = vmatprep.subr.mxu0 0.0
  %4167 = vmatpush1.msra.mxu0 0.0
  %4168 = vmatprep.subr.mxu0 0.0
  %4169 = vmatpush1.msra.mxu0 0.0
  %4170 = vmatprep.subr.mxu0 0.0
  %4171 = vmatpush1.msra.mxu0 0.0
  %4172 = vmatprep.subr.mxu0 0.0
  %4173 = vmatpush1.msra.mxu0 0.0
  %4174 = vmatprep.subr.mxu0 0.0
  %4175 = vmatpush1.msra.mxu0 0.0
  %4176 = vmatprep.subr.mxu0 0.0
  %4177 = vmatpush1.msra.mxu0 0.0
  %4178 = vmatprep.subr.mxu0 0.0
  %4179 = vmatpush1.msra.mxu0 0.0
  %4180 = vmatprep.subr.mxu0 0.0
  %4181 = vmatpush1.msra.mxu0 0.0
  %4182 = vmatprep.subr.mxu0 0.0
  %4183 = vmatpush1.msra.mxu0 0.0
  %4184 = vmatprep.subr.mxu0 0.0
  %4185 = vmatpush1.msra.mxu0 0.0
  %4186 = vmatprep.subr.mxu0 0.0
  %4187 = vmatpush1.msra.mxu0 0.0
  %4188 = vmatprep.subr.mxu0 0.0
  %4189 = vmatpush1.msra.mxu0 0.0
  %4190 = vmatprep.mubr.f32.mxu0 0.0
  %4191 = vmatmul.mubr.f32.gmra.mrb[0].mxu0 %v4121
  %v4192 = vpop.f32.mrb[0].mxu0
  %v4193 = vadd.f32 0.0, %v4192
  %v4194 = vpop.f32.mrb[0].mxu0
  %4195 = vdwg.mxu0
  %v4196 = vrot.slane %v3946, 5
  %v4197 = vsel %vm201, %v4196, 0
  %4199 = vmatprep.subr.mxu0 0.0
  %4200 = vmatpush1.msra.mxu0 %v4115
  %4201 = vmatprep.subr.mxu0 0.0
  %4202 = vmatpush1.msra.mxu0 %v4116
  %4203 = vmatprep.subr.mxu0 0.0
  %4204 = vmatpush1.msra.mxu0 %v4117
  %4205 = vmatprep.subr.mxu0 0.0
  %4206 = vmatpush1.msra.mxu0 %v4118
  %4207 = vmatprep.subr.mxu0 0.0
  %4208 = vmatpush1.msra.mxu0 0.0
  %4209 = vmatprep.subr.mxu0 0.0
  %4210 = vmatpush1.msra.mxu0 0.0
  %4211 = vmatprep.subr.mxu0 0.0
  %4212 = vmatpush1.msra.mxu0 0.0
  %4213 = vmatprep.subr.mxu0 0.0
  %4214 = vmatpush1.msra.mxu0 0.0
  %4215 = vmatprep.subr.mxu0 0.0
  %4216 = vmatpush1.msra.mxu0 0.0
  %4217 = vmatprep.subr.mxu0 0.0
  %4218 = vmatpush1.msra.mxu0 0.0
  %4219 = vmatprep.subr.mxu0 0.0
  %4220 = vmatpush1.msra.mxu0 0.0
  %4221 = vmatprep.subr.mxu0 0.0
  %4222 = vmatpush1.msra.mxu0 0.0
  %4223 = vmatprep.subr.mxu0 0.0
  %4224 = vmatpush1.msra.mxu0 0.0
  %4225 = vmatprep.subr.mxu0 0.0
  %4226 = vmatpush1.msra.mxu0 0.0
  %4227 = vmatprep.subr.mxu0 0.0
  %4228 = vmatpush1.msra.mxu0 0.0
  %4229 = vmatprep.subr.mxu0 0.0
  %4230 = vmatpush1.msra.mxu0 0.0
  %4231 = vmatprep.subr.mxu0 0.0
  %4232 = vmatpush1.msra.mxu0 0.0
  %4233 = vmatprep.subr.mxu0 0.0
  %4234 = vmatpush1.msra.mxu0 0.0
  %4235 = vmatprep.subr.mxu0 0.0
  %4236 = vmatpush1.msra.mxu0 0.0
  %4237 = vmatprep.subr.mxu0 0.0
  %4238 = vmatpush1.msra.mxu0 0.0
  %4239 = vmatprep.subr.mxu0 0.0
  %4240 = vmatpush1.msra.mxu0 0.0
  %4241 = vmatprep.subr.mxu0 0.0
  %4242 = vmatpush1.msra.mxu0 0.0
  %4243 = vmatprep.subr.mxu0 0.0
  %4244 = vmatpush1.msra.mxu0 0.0
  %4245 = vmatprep.subr.mxu0 0.0
  %4246 = vmatpush1.msra.mxu0 0.0
  %4247 = vmatprep.subr.mxu0 0.0
  %4248 = vmatpush1.msra.mxu0 0.0
  %4249 = vmatprep.subr.mxu0 0.0
  %4250 = vmatpush1.msra.mxu0 0.0
  %4251 = vmatprep.subr.mxu0 0.0
  %4252 = vmatpush1.msra.mxu0 0.0
  %4253 = vmatprep.subr.mxu0 0.0
  %4254 = vmatpush1.msra.mxu0 0.0
  %4255 = vmatprep.subr.mxu0 0.0
  %4256 = vmatpush1.msra.mxu0 0.0
  %4257 = vmatprep.subr.mxu0 0.0
  %4258 = vmatpush1.msra.mxu0 0.0
  %4259 = vmatprep.subr.mxu0 0.0
  %4260 = vmatpush1.msra.mxu0 0.0
  %4261 = vmatprep.subr.mxu0 0.0
  %4262 = vmatpush1.msra.mxu0 0.0
  %4263 = vmatprep.mubr.f32.mxu0 0.0
  %4264 = vmatmul.mubr.f32.gmra.mrb[0].mxu0 %v4197
  %v4265 = vpop.f32.mrb[0].mxu0
  %v4266 = vadd.f32 %v4193, %v4265
  %v4267 = vpop.f32.mrb[0].mxu0
  %4268 = vdwg.mxu0
  %v4269 = vld [vmem:[%s22] sm:$0x1]
  %v4270 = vadd.f32 %v4266, %v4269
  %4271 = vst [vmem:[%s23 + $0x1] sm:$0x1] %v4270
  // Predicated region
  $region94: #{grip_forward.1} parent=0 // pred_check
    _
  $region95: #{grip_forward.1} parent=0 // pred_check_branch
    %4273 = sbr.rel (0) target = $region97
  $region96: #{grip_forward.1} parent=0 // pred_region
    _
  $region97: #{grip_forward.1} parent=0 // pred_fallthru
    _
  // Predicated region
  $region98: #{grip_forward.1} parent=0 // pred_check
    _
  $region99: #{grip_forward.1} parent=0 // pred_check_branch
    %4275 = sbr.rel (0) target = $region101
  $region100: #{grip_forward.1} parent=0 // pred_region
    _
  $region101: #{grip_forward.1} parent=0 // pred_fallthru
    _

</llo_original>
